<compile_context>
chip_gen: v5e
topology: v5e:2x2
jax: 0.10.0
libtpu: 0.0.40
codegen_flags: <defaults>
</compile_context>

<pallas_src>
import jax
import jax.numpy as jnp
from jax.experimental import pallas as pl
from jax.experimental.pallas import tpu as pltpu


def _make_cat_conv_kernel(c_ins, tk):
    # Static channel offsets of each branch inside the concatenated C_in axis.
    offs = []
    o = 0
    for c in c_ins:
        offs.append(o)
        o += c

    def kernel(x1_ref, x2_ref, x3_ref, x4_ref, w_ref, o_ref, xcat_ref):
        k = pl.program_id(1)

        @pl.when(k == 0)
        def _init():
            # Fused concat: place each branch (cast to bf16) at its 16-row-aligned offset.
            xcat_ref[offs[0]:offs[0] + c_ins[0], :] = x1_ref[...].astype(xcat_ref.dtype)
            xcat_ref[offs[1]:offs[1] + c_ins[1], :] = x2_ref[...].astype(xcat_ref.dtype)
            xcat_ref[offs[2]:offs[2] + c_ins[2], :] = x3_ref[...].astype(xcat_ref.dtype)
            xcat_ref[offs[3]:offs[3] + c_ins[3], :] = x4_ref[...].astype(xcat_ref.dtype)
            # Output block index is invariant across k -> stays resident in VMEM across the
            # reduction axis; use it directly as the f32 accumulator (no scratch, no epilogue).
            o_ref[...] = jnp.zeros_like(o_ref)

        # Partial product for this K block: (C_out_blk, tk)bf16 @ (tk, H*W)bf16 -> f32 acc.
        start = pl.multiple_of(k * tk, tk)
        o_ref[...] += jnp.dot(w_ref[...], xcat_ref[pl.ds(start, tk), :],
                              preferred_element_type=jnp.float32)

    return kernel


def prepare_conv_weight(weight):
    """One-time model-setup step: (C_out, C_in, 1, 1) PyTorch conv weight -> (C_out, C_in)
    bf16 matrix.  Must be done once and folded into the model constants (NOT per call),
    otherwise XLA still streams the f32 weight from HBM and the bandwidth win evaporates."""
    c_out, c_in = int(weight.shape[0]), int(weight.shape[1])
    return weight.reshape(c_out, c_in).astype(jnp.bfloat16)


def cat_conv1x1(xs, w_mat, *, tk=1024, cout_splits=None):
    """xs: list of 4 NCHW (N=1) f32 activations; w_mat: prepared (C_out, C_in) bf16 weight.

    cout_splits: number of C_out blocks on the leading 'parallel' grid axis (2 for v7x's
    two TensorCores).  Pass explicitly for AOT / multi-backend builds; defaults to a
    device-kind sniff with a safe fallback of 1.
    """
    n, _, h, w = xs[0].shape
    assert n == 1, "kernel assumes batch=1 (as in the source module)"
    hw = h * w
    c_ins = [int(x.shape[1]) for x in xs]
    c_in = sum(c_ins)
    c_out = int(w_mat.shape[0])
    assert int(w_mat.shape[1]) == c_in
    assert c_in % tk == 0

    # Free reshapes only — no transposes, no relayouts, no slicing in the wrapper.
    xs_mat = [x.reshape(c, hw) for x, c in zip(xs, c_ins)]        # (C_i, H*W) f32

    if cout_splits is None:
        try:
            kind = jax.devices()[0].device_kind.lower()
        except Exception:  # pragma: no cover - defensive only
            kind = ""
        cout_splits = 2 if "v7" in kind else 1
    if c_out % (8 * cout_splits) != 0:
        cout_splits = 1
    c_out_blk = c_out // cout_splits
    n_k = c_in // tk

    kernel = _make_cat_conv_kernel(c_ins, tk)

    flops = 2 * c_out * c_in * hw
    bytes_accessed = (c_out * c_in * w_mat.dtype.itemsize       # bf16 weight stream
                      + 4 * c_in * hw                           # f32 activations
                      + 4 * c_out * hw)                         # f32 output

    out_mat = pl.pallas_call(
        kernel,
        out_shape=jax.ShapeDtypeStruct((c_out, hw), jnp.float32),
        grid_spec=pltpu.PrefetchScalarGridSpec(
            num_scalar_prefetch=0,
            grid=(cout_splits, n_k),
            in_specs=[pl.BlockSpec((c, hw), lambda j, k: (0, 0)) for c in c_ins]
                     + [pl.BlockSpec((c_out_blk, tk), lambda j, k: (j, k))],
            out_specs=pl.BlockSpec((c_out_blk, hw), lambda j, k: (j, 0)),
            scratch_shapes=[pltpu.VMEM((c_in, hw), jnp.bfloat16)],   # fused concat buffer
        ),
        compiler_params=pltpu.CompilerParams(
            dimension_semantics=("parallel", "arbitrary")),
        cost_estimate=pl.CostEstimate(flops=flops, transcendentals=0,
                                      bytes_accessed=bytes_accessed),
    )(*xs_mat, w_mat)

    # (C_out, H*W) -> (1, C_out, H, W): free reshape.
    return out_mat.reshape(1, c_out, h, w)


if __name__ == "__main__":
    key = jax.random.PRNGKey(0)
    k1, k2, k3, k4, kw = jax.random.split(key, 5)

    # Shapes implied by the module: batch=1, spatial=5x5.
    x264 = jax.random.normal(k1, (1, 320, 5, 5), dtype=jnp.float32)
    x274 = jax.random.normal(k2, (1, 768, 5, 5), dtype=jnp.float32)
    x287 = jax.random.normal(k3, (1, 768, 5, 5), dtype=jnp.float32)
    x291 = jax.random.normal(k4, (1, 192, 5, 5), dtype=jnp.float32)

    # Deterministic conv weight in PyTorch layout (C_out, C_in, 1, 1).
    c_in, c_out = 2048, 320
    w = jax.random.normal(kw, (c_out, c_in, 1, 1), dtype=jnp.float32) * (2.0 / c_in) ** 0.5

    # One-time weight preparation (reshape + bf16 cast folded into the constant).
    w_mat = jax.block_until_ready(prepare_conv_weight(w))

    out = cat_conv1x1([x264, x274, x287, x291], w_mat)
    out = jax.block_until_ready(out)
    assert out.shape == (1, 320, 5, 5), out.shape

    # Reference 1 (tight): same bf16-rounded operands, f32 accumulation.
    x_cat = jnp.concatenate([x264, x274, x287, x291], axis=1).reshape(c_in, 25)
    ref_bf16 = (w_mat.astype(jnp.float32)
                @ x_cat.astype(jnp.bfloat16).astype(jnp.float32)).reshape(1, c_out, 5, 5)
    assert jnp.allclose(out, ref_bf16, atol=5e-3, rtol=5e-3), \
        float(jnp.max(jnp.abs(out - ref_bf16)))

    # Reference 2 (loose): full-f32 module semantics; slack covers bf16 operand rounding.
    ref_f32 = jnp.dot(w[:, :, 0, 0], x_cat,
                      precision=jax.lax.Precision.HIGHEST).reshape(1, c_out, 5, 5)
    assert jnp.allclose(out, ref_f32, atol=1.5e-1, rtol=5e-2), \
        float(jnp.max(jnp.abs(out - ref_f32)))

    print("KERNEL_OK")
</pallas_src>

<mosaic_0001>
module attributes {stable_mosaic.version = 11 : i64} {
  func.func @kernel(%arg0: i32, %arg1: i32, %arg2: memref<320x25xf32, #tpu.memory_space<vmem>>, %arg3: memref<768x25xf32, #tpu.memory_space<vmem>>, %arg4: memref<768x25xf32, #tpu.memory_space<vmem>>, %arg5: memref<192x25xf32, #tpu.memory_space<vmem>>, %arg6: memref<320x1024xbf16, #tpu.memory_space<vmem>>, %arg7: memref<320x25xf32, #tpu.memory_space<vmem>>, %arg8: memref<2048x25xbf16, #tpu.memory_space<vmem>>) attributes {dimension_semantics = [#tpu.dimension_semantics<parallel>, #tpu.dimension_semantics<arbitrary>], iteration_bounds = array<i64: 1, 2>, scalar_prefetch = 0 : i64, scratch_operands = 1 : i64, tpu.core_type = #tpu.core_type<tc>, window_params = [{pipeline_mode = #tpu.pipeline_mode<synchronous>, transform_indices = @transform_0, window_bounds = array<i64: 320, 25>}, {pipeline_mode = #tpu.pipeline_mode<synchronous>, transform_indices = @transform_1, window_bounds = array<i64: 768, 25>}, {pipeline_mode = #tpu.pipeline_mode<synchronous>, transform_indices = @transform_2, window_bounds = array<i64: 768, 25>}, {pipeline_mode = #tpu.pipeline_mode<synchronous>, transform_indices = @transform_3, window_bounds = array<i64: 192, 25>}, {transform_indices = @transform_4, window_bounds = array<i64: 320, 1024>}, {transform_indices = @transform_5, window_bounds = array<i64: 320, 25>}]} {
    %c0_i32 = arith.constant 0 : i32
    %0 = arith.cmpi eq, %arg1, %c0_i32 : i32
    %1 = arith.extui %0 : i1 to i32
    %c0_i32_0 = arith.constant 0 : i32
    %2 = arith.cmpi ne, %1, %c0_i32_0 : i32
    scf.if %2 {
      %c0_7 = arith.constant 0 : index
      %c0_8 = arith.constant 0 : index
      %12 = vector.load %arg2[%c0_7, %c0_8] : memref<320x25xf32, #tpu.memory_space<vmem>>, vector<320x25xf32>
      %13 = arith.truncf %12 : vector<320x25xf32> to vector<320x25xbf16>
      %c0_9 = arith.constant 0 : index
      %c0_10 = arith.constant 0 : index
      %14 = vector.load %arg8[%c0_9, %c0_10] : memref<2048x25xbf16, #tpu.memory_space<vmem>>, vector<320x25xbf16>
      tpu.vector_store %arg8[%c0_9, %c0_10], %13 {strides = array<i32>} : memref<2048x25xbf16, #tpu.memory_space<vmem>>, vector<320x25xbf16>,
      %c0_11 = arith.constant 0 : index
      %c0_12 = arith.constant 0 : index
      %15 = vector.load %arg3[%c0_11, %c0_12] : memref<768x25xf32, #tpu.memory_space<vmem>>, vector<768x25xf32>
      %16 = arith.truncf %15 : vector<768x25xf32> to vector<768x25xbf16>
      %c320 = arith.constant 320 : index
      %c0_13 = arith.constant 0 : index
      %17 = vector.load %arg8[%c320, %c0_13] : memref<2048x25xbf16, #tpu.memory_space<vmem>>, vector<768x25xbf16>
      tpu.vector_store %arg8[%c320, %c0_13], %16 {strides = array<i32>} : memref<2048x25xbf16, #tpu.memory_space<vmem>>, vector<768x25xbf16>,
      %c0_14 = arith.constant 0 : index
      %c0_15 = arith.constant 0 : index
      %18 = vector.load %arg4[%c0_14, %c0_15] : memref<768x25xf32, #tpu.memory_space<vmem>>, vector<768x25xf32>
      %19 = arith.truncf %18 : vector<768x25xf32> to vector<768x25xbf16>
      %c1088 = arith.constant 1088 : index
      %c0_16 = arith.constant 0 : index
      %20 = vector.load %arg8[%c1088, %c0_16] : memref<2048x25xbf16, #tpu.memory_space<vmem>>, vector<768x25xbf16>
      tpu.vector_store %arg8[%c1088, %c0_16], %19 {strides = array<i32>} : memref<2048x25xbf16, #tpu.memory_space<vmem>>, vector<768x25xbf16>,
      %c0_17 = arith.constant 0 : index
      %c0_18 = arith.constant 0 : index
      %21 = vector.load %arg5[%c0_17, %c0_18] : memref<192x25xf32, #tpu.memory_space<vmem>>, vector<192x25xf32>
      %22 = arith.truncf %21 : vector<192x25xf32> to vector<192x25xbf16>
      %c1856 = arith.constant 1856 : index
      %c0_19 = arith.constant 0 : index
      %23 = vector.load %arg8[%c1856, %c0_19] : memref<2048x25xbf16, #tpu.memory_space<vmem>>, vector<192x25xbf16>
      tpu.vector_store %arg8[%c1856, %c0_19], %22 {strides = array<i32>} : memref<2048x25xbf16, #tpu.memory_space<vmem>>, vector<192x25xbf16>,
      %cst_20 = arith.constant 0.000000e+00 : f32
      %24 = vector.broadcast %cst_20 : f32 to vector<320x25xf32>
      %c0_21 = arith.constant 0 : index
      %c0_22 = arith.constant 0 : index
      %25 = vector.load %arg7[%c0_21, %c0_22] : memref<320x25xf32, #tpu.memory_space<vmem>>, vector<320x25xf32>
      tpu.vector_store %arg7[%c0_21, %c0_22], %24 {strides = array<i32>} : memref<320x25xf32, #tpu.memory_space<vmem>>, vector<320x25xf32>,
    } else {
    }
    %c1024_i32 = arith.constant 1024 : i32
    %3 = arith.muli %arg1, %c1024_i32 : i32
    %4 = tpu.assume_multiple %3, 1024 : i32
    %c0 = arith.constant 0 : index
    %c0_1 = arith.constant 0 : index
    %5 = vector.load %arg7[%c0, %c0_1] : memref<320x25xf32, #tpu.memory_space<vmem>>, vector<320x25xf32>
    %c0_2 = arith.constant 0 : index
    %c0_3 = arith.constant 0 : index
    %6 = vector.load %arg6[%c0_2, %c0_3] : memref<320x1024xbf16, #tpu.memory_space<vmem>>, vector<320x1024xbf16>
    %7 = arith.index_cast %4 : i32 to index
    %c0_4 = arith.constant 0 : index
    %8 = vector.load %arg8[%7, %c0_4] : memref<2048x25xbf16, #tpu.memory_space<vmem>>, vector<1024x25xbf16>
    %cst = arith.constant dense<0.000000e+00> : vector<320x25xf32>
    %9 = tpu.matmul %6, %8, %cst {dimension_numbers = #tpu.dot_dimension_numbers<[1], [0], [0], [1], [0, 0, 1, 1], [], []>} : vector<320x1024xbf16>, vector<1024x25xbf16>, vector<320x25xf32> -> vector<320x25xf32>
    %10 = arith.addf %5, %9 : vector<320x25xf32>
    %c0_5 = arith.constant 0 : index
    %c0_6 = arith.constant 0 : index
    %11 = vector.load %arg7[%c0_5, %c0_6] : memref<320x25xf32, #tpu.memory_space<vmem>>, vector<320x25xf32>
    tpu.vector_store %arg7[%c0_5, %c0_6], %10 {strides = array<i32>} : memref<320x25xf32, #tpu.memory_space<vmem>>, vector<320x25xf32>,
    return
  }
  func.func @transform_0(%arg0: i32, %arg1: i32) -> (i32, i32) {
    %c0_i32 = arith.constant 0 : i32
    %c0_i32_0 = arith.constant 0 : i32
    %c0_i32_1 = arith.constant 0 : i32
    return %c0_i32, %c0_i32_0 : i32, i32
  }
  func.func @transform_1(%arg0: i32, %arg1: i32) -> (i32, i32) {
    %c0_i32 = arith.constant 0 : i32
    %c0_i32_0 = arith.constant 0 : i32
    %c0_i32_1 = arith.constant 0 : i32
    return %c0_i32, %c0_i32_0 : i32, i32
  }
  func.func @transform_2(%arg0: i32, %arg1: i32) -> (i32, i32) {
    %c0_i32 = arith.constant 0 : i32
    %c0_i32_0 = arith.constant 0 : i32
    %c0_i32_1 = arith.constant 0 : i32
    return %c0_i32, %c0_i32_0 : i32, i32
  }
  func.func @transform_3(%arg0: i32, %arg1: i32) -> (i32, i32) {
    %c0_i32 = arith.constant 0 : i32
    %c0_i32_0 = arith.constant 0 : i32
    %c0_i32_1 = arith.constant 0 : i32
    return %c0_i32, %c0_i32_0 : i32, i32
  }
  func.func @transform_4(%arg0: i32, %arg1: i32) -> (i32, i32) {
    %c0_i32 = arith.constant 0 : i32
    return %arg0, %arg1 : i32, i32
  }
  func.func @transform_5(%arg0: i32, %arg1: i32) -> (i32, i32) {
    %c0_i32 = arith.constant 0 : i32
    %c0_i32_0 = arith.constant 0 : i32
    return %arg0, %c0_i32 : i32, i32
  }
}

</mosaic_0001>

<llo_original>
// kernel: tpu_custom_call.1
$region0: #{tpu_custom_call.1}
  #allocation0 [shape = 'u32[]', space=smem, size = 0x4, offset = 0x4, fixed_abs, tag = 'smem constant byte address 0x4 - core index']
  #allocation1 [shape = 'u32[72,128]{1,0:T(1,128)}', space=vmem, size = 0x9000, scoped, tag = 'internal scratch']
  #allocation2 [shape = 'bf16[2048,25]{1,0:T(8,128)(2,1)}', space=vmem, size = 0x80000, scoped, tag = 'scratch operand']
  %s0 = inlined_call_operand.vmem [shape: f32[320,25], index: 0, kind: input, shape index: {}]
  %s1 = inlined_call_operand.vmem [shape: f32[768,25], index: 1, kind: input, shape index: {}]
  %s2 = inlined_call_operand.vmem [shape: f32[768,25], index: 2, kind: input, shape index: {}]
  %s3 = inlined_call_operand.vmem [shape: f32[192,25], index: 3, kind: input, shape index: {}]
  %s4 = inlined_call_operand.vmem [shape: bf16[320,2048], index: 4, kind: input, shape index: {}]
  %s5 = inlined_call_operand.vmem [shape: f32[320,25], index: 5, kind: output, shape index: {}]
  %s6 = sld [smem:[#allocation0]]
  $region80: #{tpu_custom_call.1} parent=0
    _
  %s8 = ssub.s32 1, %s6
  %s9 = scalar_select 0, %s8, %s6
  $region1: #{tpu_custom_call.1} parent=0
    #allocation3 [shape = 'u8[1310720]{0}', space=vmem, size = 0x140000, scoped, tag = 'input window, operand 4']
    loop: start=0, step=1, limit=4
    $region2: #{tpu_custom_call.1} parent=1 // loop_pre_header
      _
    $region3: #{tpu_custom_call.1} parent=1 // loop_header
      %s11 = sphi 0, %s15
      %p12 = scmp.ge.s32.totalorder %s11, 4
      %s18 = sphi 0, %s30
      %s19 = sphi 0, %s26
      %s20 = sphi 0, %s18
      %s21 = sphi 0, %s19
      %s22 = sphi 0, %s20
      %s23 = sphi 0, %s21
      %s31 = sphi 0, %s31
      %s33 = sphi 0, %s31
      %s34 = sphi 0, %s33
      %s48 = sphi 0, %s34
      %s52 = sphi 0, %s52
      %s54 = sphi 0, %s52
      %s55 = sphi 0, %s54
      %s69 = sphi 0, %s55
      %s73 = sphi 0, %s73
      %s75 = sphi 0, %s73
      %s76 = sphi 0, %s75
      %s90 = sphi 0, %s76
      %s94 = sphi 0, %s94
      %s96 = sphi 0, %s94
      %s97 = sphi 0, %s96
      %s111 = sphi 0, %s97
      %s119 = sphi 0, %s121
      %s122 = sphi 0, %s119
      %s123 = sphi 0, %s122
      %s139 = sphi 0, %s123
      %s145 = sphi 0, %s147
      %s148 = sphi 0, %s145
      %s149 = sphi 0, %s148
      %s165 = sphi 0, %s149
    $region4: #{tpu_custom_call.1} parent=1 // loop_header_branch
      %14 = sbr.rel (%p12) target = $region8
    $region5: #{tpu_custom_call.1} parent=1 // loop_body
      %s16 = ssub.s32 %s11, 1
      %s17 = ssub.s32 %s11, 2
      %s24 = sadd.s32 1, %s19
      %p25 = scmp.ge.s32.totalorder %s24, 2
      %s26 = scalar_select %p25, 0, %s24
      %s27 = sadd.s32 1, %s18
      %s28 = scalar_select %p25, %s27, %s18
      %p29 = scmp.ge.s32.totalorder %s28, 1
      %s30 = scalar_select %p29, 0, %s28
      %s32 = sadd.s32 %s31, 1
      %p35 = scmp.eq.s32.totalorder %s11, 1
      %p36 = scmp.ne.s32.totalorder %s31, %s33
      %p37 = scmp.eq.s32.totalorder %s11, 0
      %p38 = por %p36, %p37
      %p39 = scmp.ne.s32.totalorder %s31, %s33
      %p40 = scmp.eq.s32.totalorder %s16, 1
      %p41 = por %p39, %p40
      %p42 = scmp.ne.s32.totalorder %s33, %s34
      %p43 = scmp.eq.s32.totalorder %s16, 0
      %p44 = por %p42, %p43
      %p45 = scmp.ne.s32.totalorder %s33, %s34
      %p46 = scmp.eq.s32.totalorder %s17, 1
      %p47 = por %p45, %p46
      %p49 = scmp.ne.s32.totalorder %s34, %s48
      %p50 = scmp.eq.s32.totalorder %s17, 0
      %p51 = por %p49, %p50
      %s53 = sadd.s32 %s52, 1
      %p56 = scmp.eq.s32.totalorder %s11, 1
      %p57 = scmp.ne.s32.totalorder %s52, %s54
      %p58 = scmp.eq.s32.totalorder %s11, 0
      %p59 = por %p57, %p58
      %p60 = scmp.ne.s32.totalorder %s52, %s54
      %p61 = scmp.eq.s32.totalorder %s16, 1
      %p62 = por %p60, %p61
      %p63 = scmp.ne.s32.totalorder %s54, %s55
      %p64 = scmp.eq.s32.totalorder %s16, 0
      %p65 = por %p63, %p64
      %p66 = scmp.ne.s32.totalorder %s54, %s55
      %p67 = scmp.eq.s32.totalorder %s17, 1
      %p68 = por %p66, %p67
      %p70 = scmp.ne.s32.totalorder %s55, %s69
      %p71 = scmp.eq.s32.totalorder %s17, 0
      %p72 = por %p70, %p71
      %s74 = sadd.s32 %s73, 1
      %p77 = scmp.eq.s32.totalorder %s11, 1
      %p78 = scmp.ne.s32.totalorder %s73, %s75
      %p79 = scmp.eq.s32.totalorder %s11, 0
      %p80 = por %p78, %p79
      %p81 = scmp.ne.s32.totalorder %s73, %s75
      %p82 = scmp.eq.s32.totalorder %s16, 1
      %p83 = por %p81, %p82
      %p84 = scmp.ne.s32.totalorder %s75, %s76
      %p85 = scmp.eq.s32.totalorder %s16, 0
      %p86 = por %p84, %p85
      %p87 = scmp.ne.s32.totalorder %s75, %s76
      %p88 = scmp.eq.s32.totalorder %s17, 1
      %p89 = por %p87, %p88
      %p91 = scmp.ne.s32.totalorder %s76, %s90
      %p92 = scmp.eq.s32.totalorder %s17, 0
      %p93 = por %p91, %p92
      %s95 = sadd.s32 %s94, 1
      %p98 = scmp.eq.s32.totalorder %s11, 1
      %p99 = scmp.ne.s32.totalorder %s94, %s96
      %p100 = scmp.eq.s32.totalorder %s11, 0
      %p101 = por %p99, %p100
      %p102 = scmp.ne.s32.totalorder %s94, %s96
      %p103 = scmp.eq.s32.totalorder %s16, 1
      %p104 = por %p102, %p103
      %p105 = scmp.ne.s32.totalorder %s96, %s97
      %p106 = scmp.eq.s32.totalorder %s16, 0
      %p107 = por %p105, %p106
      %p108 = scmp.ne.s32.totalorder %s96, %s97
      %p109 = scmp.eq.s32.totalorder %s17, 1
      %p110 = por %p108, %p109
      %p112 = scmp.ne.s32.totalorder %s97, %s111
      %p113 = scmp.eq.s32.totalorder %s17, 0
      %p114 = por %p112, %p113
      %s115 = ssub.s32 %s18, %s30
      %s116 = ssub.s32 %s19, %s26
      %s117 = sor.u32 %s115, %s116
      %p118 = scmp.eq.s32.totalorder %s117, 0
      %s120 = sadd.s32 %s119, 1
      %s121 = scalar_select %p118, %s119, %s120
      %p124 = pneg %p118
      %p125 = scmp.eq.s32.totalorder %s11, 1
      %p126 = por %p124, %p125
      %p127 = scmp.ne.s32.totalorder %s119, %s122
      %p128 = scmp.eq.s32.totalorder %s11, 0
      %p129 = por %p127, %p128
      %p130 = scmp.ne.s32.totalorder %s119, %s122
      %p131 = scmp.eq.s32.totalorder %s16, 1
      %p132 = por %p130, %p131
      %p133 = scmp.ne.s32.totalorder %s122, %s123
      %p134 = scmp.eq.s32.totalorder %s16, 0
      %p135 = por %p133, %p134
      %p136 = scmp.ne.s32.totalorder %s122, %s123
      %p137 = scmp.eq.s32.totalorder %s17, 1
      %p138 = por %p136, %p137
      %p140 = scmp.ne.s32.totalorder %s123, %s139
      %p141 = scmp.eq.s32.totalorder %s17, 0
      %p142 = por %p140, %p141
      %s143 = ssub.s32 %s18, %s30
      %p144 = scmp.eq.s32.totalorder %s143, 0
      %s146 = sadd.s32 %s145, 1
      %s147 = scalar_select %p144, %s145, %s146
      %p150 = pneg %p144
      %p151 = scmp.eq.s32.totalorder %s11, 1
      %p152 = por %p150, %p151
      %p153 = scmp.ne.s32.totalorder %s145, %s148
      %p154 = scmp.eq.s32.totalorder %s11, 0
      %p155 = por %p153, %p154
      %p156 = scmp.ne.s32.totalorder %s145, %s148
      %p157 = scmp.eq.s32.totalorder %s16, 1
      %p158 = por %p156, %p157
      %p159 = scmp.ne.s32.totalorder %s148, %s149
      %p160 = scmp.eq.s32.totalorder %s16, 0
      %p161 = por %p159, %p160
      %p162 = scmp.ne.s32.totalorder %s148, %s149
      %p163 = scmp.eq.s32.totalorder %s17, 1
      %p164 = por %p162, %p163
      %p166 = scmp.ne.s32.totalorder %s149, %s165
      %p167 = scmp.eq.s32.totalorder %s17, 0
      %p168 = por %p166, %p167
      %p169 = scmp.le.s32.totalorder 1, %s11
      %p170 = scmp.lt.s32.totalorder %s11, 3
      %p171 = pnand %p169, %p170
      %p172 = pneg %p171
      // Predicated region
      $region9: #{tpu_custom_call.1} parent=5 // pred_check
        _
      $region10: #{tpu_custom_call.1} parent=5 // pred_check_branch
        %174 = sbr.rel (%p171) target = $region12
      $region11: #{tpu_custom_call.1} parent=5 // pred_region
        %s175 = ssub.s32 %s11, 1
        // Predicated region
        $region13: #{tpu_custom_call.1} parent=11 // pred_check
          %p176 = pneg %p44
        $region14: #{tpu_custom_call.1} parent=11 // pred_check_branch
          %178 = sbr.rel (%p176) target = $region16
        $region15: #{tpu_custom_call.1} parent=11 // pred_region
          _
        $region16: #{tpu_custom_call.1} parent=11 // pred_fallthru
          _
        // Predicated region
        $region17: #{tpu_custom_call.1} parent=11 // pred_check
          %p179 = pneg %p65
        $region18: #{tpu_custom_call.1} parent=11 // pred_check_branch
          %181 = sbr.rel (%p179) target = $region20
        $region19: #{tpu_custom_call.1} parent=11 // pred_region
          _
        $region20: #{tpu_custom_call.1} parent=11 // pred_fallthru
          _
        // Predicated region
        $region21: #{tpu_custom_call.1} parent=11 // pred_check
          %p182 = pneg %p86
        $region22: #{tpu_custom_call.1} parent=11 // pred_check_branch
          %184 = sbr.rel (%p182) target = $region24
        $region23: #{tpu_custom_call.1} parent=11 // pred_region
          _
        $region24: #{tpu_custom_call.1} parent=11 // pred_fallthru
          _
        // Predicated region
        $region25: #{tpu_custom_call.1} parent=11 // pred_check
          %p185 = pneg %p107
        $region26: #{tpu_custom_call.1} parent=11 // pred_check_branch
          %187 = sbr.rel (%p185) target = $region28
        $region27: #{tpu_custom_call.1} parent=11 // pred_region
          _
        $region28: #{tpu_custom_call.1} parent=11 // pred_fallthru
          _
      $region12: #{tpu_custom_call.1} parent=5 // pred_fallthru
        _
      %p188 = scmp.lt.s32.totalorder %s11, 2
      // Predicated region
      $region29: #{tpu_custom_call.1} parent=5 // pred_check
        %p189 = pneg %p188
      $region30: #{tpu_custom_call.1} parent=5 // pred_check_branch
        %191 = sbr.rel (%p189) target = $region32
      $region31: #{tpu_custom_call.1} parent=5 // pred_region
        // Predicated region
        $region33: #{tpu_custom_call.1} parent=31 // pred_check
          %p192 = pneg %p129
        $region34: #{tpu_custom_call.1} parent=31 // pred_check_branch
          %194 = sbr.rel (%p192) target = $region36
        $region35: #{tpu_custom_call.1} parent=31 // pred_region
          %s195 = sand.u32 %s119, 1
          %s196 = sand.u32 %s119, 1
          %s197 = smul.addr %s196, 1280
          %s198 = scalar_lea.vmem [#allocation3], %s197
          %s199 = smul.u32 40, %s18
          %s200 = smul.u32 8, %s19
          %s201 = smul.addr %s199, 16
          %s202 = sadd.s32 %s200, %s201
          %s203 = smul.addr %s202, 4
          %s204 = scalar_lea.vmem %s4, %s203
          // Predicated region
          $region37: #{tpu_custom_call.1} parent=35 // pred_check
            _
          $region38: #{tpu_custom_call.1} parent=35 // pred_check_branch
            %206 = sbr.rel (0) target = $region40
          $region39: #{tpu_custom_call.1} parent=35 // pred_region
            // Predicated region
            $region41: #{tpu_custom_call.1} parent=39 // pred_check
              _
            $region42: #{tpu_custom_call.1} parent=39 // pred_check_branch
              %208 = sbr.rel (0) target = $region44
            $region43: #{tpu_custom_call.1} parent=39 // pred_region
              loop: start=0, step=1, limit=1
              $region45: #{tpu_custom_call.1} parent=43 // loop_pre_header
                _
              $region46: #{tpu_custom_call.1} parent=43 // loop_header
                %s210 = sphi 0, %s214
                %p211 = scmp.ge.s32.totalorder %s210, 1
                %s215 = sphi %s204, %s204
                %s216 = sphi %s198, %s198
              $region47: #{tpu_custom_call.1} parent=43 // loop_header_branch
                %213 = sbr.rel (%p211) target = $region51
              $region48: #{tpu_custom_call.1} parent=43 // loop_body
                %v217 = vld [vmem:[%s215] sm:$0xff]
                %218 = vst [vmem:[%s216] sm:$0xff] %v217
                %v219 = vld [vmem:[%s215 + $0x8] sm:$0xff]
                %220 = vst [vmem:[%s216 + $0x8] sm:$0xff] %v219
                %v221 = vld [vmem:[%s215 + $0x10] sm:$0xff]
                %222 = vst [vmem:[%s216 + $0x10] sm:$0xff] %v221
                %v223 = vld [vmem:[%s215 + $0x18] sm:$0xff]
                %224 = vst [vmem:[%s216 + $0x18] sm:$0xff] %v223
                %v225 = vld [vmem:[%s215 + $0x40] sm:$0xff]
                %226 = vst [vmem:[%s216 + $0x20] sm:$0xff] %v225
                %v227 = vld [vmem:[%s215 + $0x48] sm:$0xff]
                %228 = vst [vmem:[%s216 + $0x28] sm:$0xff] %v227
                %v229 = vld [vmem:[%s215 + $0x50] sm:$0xff]
                %230 = vst [vmem:[%s216 + $0x30] sm:$0xff] %v229
                %v231 = vld [vmem:[%s215 + $0x58] sm:$0xff]
                %232 = vst [vmem:[%s216 + $0x38] sm:$0xff] %v231
                %v233 = vld [vmem:[%s215 + $0x80] sm:$0xff]
                %234 = vst [vmem:[%s216 + $0x40] sm:$0xff] %v233
                %v235 = vld [vmem:[%s215 + $0x88] sm:$0xff]
                %236 = vst [vmem:[%s216 + $0x48] sm:$0xff] %v235
                %v237 = vld [vmem:[%s215 + $0x90] sm:$0xff]
                %238 = vst [vmem:[%s216 + $0x50] sm:$0xff] %v237
                %v239 = vld [vmem:[%s215 + $0x98] sm:$0xff]
                %240 = vst [vmem:[%s216 + $0x58] sm:$0xff] %v239
                %v241 = vld [vmem:[%s215 + $0xc0] sm:$0xff]
                %242 = vst [vmem:[%s216 + $0x60] sm:$0xff] %v241
                %v243 = vld [vmem:[%s215 + $0xc8] sm:$0xff]
                %244 = vst [vmem:[%s216 + $0x68] sm:$0xff] %v243
                %v245 = vld [vmem:[%s215 + $0xd0] sm:$0xff]
                %246 = vst [vmem:[%s216 + $0x70] sm:$0xff] %v245
                %v247 = vld [vmem:[%s215 + $0xd8] sm:$0xff]
                %248 = vst [vmem:[%s216 + $0x78] sm:$0xff] %v247
                %v249 = vld [vmem:[%s215 + $0x100] sm:$0xff]
                %250 = vst [vmem:[%s216 + $0x80] sm:$0xff] %v249
                %v251 = vld [vmem:[%s215 + $0x108] sm:$0xff]
                %252 = vst [vmem:[%s216 + $0x88] sm:$0xff] %v251
                %v253 = vld [vmem:[%s215 + $0x110] sm:$0xff]
                %254 = vst [vmem:[%s216 + $0x90] sm:$0xff] %v253
                %v255 = vld [vmem:[%s215 + $0x118] sm:$0xff]
                %256 = vst [vmem:[%s216 + $0x98] sm:$0xff] %v255
                %v257 = vld [vmem:[%s215 + $0x140] sm:$0xff]
                %258 = vst [vmem:[%s216 + $0xa0] sm:$0xff] %v257
                %v259 = vld [vmem:[%s215 + $0x148] sm:$0xff]
                %260 = vst [vmem:[%s216 + $0xa8] sm:$0xff] %v259
                %v261 = vld [vmem:[%s215 + $0x150] sm:$0xff]
                %262 = vst [vmem:[%s216 + $0xb0] sm:$0xff] %v261
                %v263 = vld [vmem:[%s215 + $0x158] sm:$0xff]
                %264 = vst [vmem:[%s216 + $0xb8] sm:$0xff] %v263
                %v265 = vld [vmem:[%s215 + $0x180] sm:$0xff]
                %266 = vst [vmem:[%s216 + $0xc0] sm:$0xff] %v265
                %v267 = vld [vmem:[%s215 + $0x188] sm:$0xff]
                %268 = vst [vmem:[%s216 + $0xc8] sm:$0xff] %v267
                %v269 = vld [vmem:[%s215 + $0x190] sm:$0xff]
                %270 = vst [vmem:[%s216 + $0xd0] sm:$0xff] %v269
                %v271 = vld [vmem:[%s215 + $0x198] sm:$0xff]
                %272 = vst [vmem:[%s216 + $0xd8] sm:$0xff] %v271
                %v273 = vld [vmem:[%s215 + $0x1c0] sm:$0xff]
                %274 = vst [vmem:[%s216 + $0xe0] sm:$0xff] %v273
                %v275 = vld [vmem:[%s215 + $0x1c8] sm:$0xff]
                %276 = vst [vmem:[%s216 + $0xe8] sm:$0xff] %v275
                %v277 = vld [vmem:[%s215 + $0x1d0] sm:$0xff]
                %278 = vst [vmem:[%s216 + $0xf0] sm:$0xff] %v277
                %v279 = vld [vmem:[%s215 + $0x1d8] sm:$0xff]
                %280 = vst [vmem:[%s216 + $0xf8] sm:$0xff] %v279
                %v281 = vld [vmem:[%s215 + $0x200] sm:$0xff]
                %282 = vst [vmem:[%s216 + $0x100] sm:$0xff] %v281
                %v283 = vld [vmem:[%s215 + $0x208] sm:$0xff]
                %284 = vst [vmem:[%s216 + $0x108] sm:$0xff] %v283
                %v285 = vld [vmem:[%s215 + $0x210] sm:$0xff]
                %286 = vst [vmem:[%s216 + $0x110] sm:$0xff] %v285
                %v287 = vld [vmem:[%s215 + $0x218] sm:$0xff]
                %288 = vst [vmem:[%s216 + $0x118] sm:$0xff] %v287
                %v289 = vld [vmem:[%s215 + $0x240] sm:$0xff]
                %290 = vst [vmem:[%s216 + $0x120] sm:$0xff] %v289
                %v291 = vld [vmem:[%s215 + $0x248] sm:$0xff]
                %292 = vst [vmem:[%s216 + $0x128] sm:$0xff] %v291
                %v293 = vld [vmem:[%s215 + $0x250] sm:$0xff]
                %294 = vst [vmem:[%s216 + $0x130] sm:$0xff] %v293
                %v295 = vld [vmem:[%s215 + $0x258] sm:$0xff]
                %296 = vst [vmem:[%s216 + $0x138] sm:$0xff] %v295
                %v297 = vld [vmem:[%s215 + $0x280] sm:$0xff]
                %298 = vst [vmem:[%s216 + $0x140] sm:$0xff] %v297
                %v299 = vld [vmem:[%s215 + $0x288] sm:$0xff]
                %300 = vst [vmem:[%s216 + $0x148] sm:$0xff] %v299
                %v301 = vld [vmem:[%s215 + $0x290] sm:$0xff]
                %302 = vst [vmem:[%s216 + $0x150] sm:$0xff] %v301
                %v303 = vld [vmem:[%s215 + $0x298] sm:$0xff]
                %304 = vst [vmem:[%s216 + $0x158] sm:$0xff] %v303
                %v305 = vld [vmem:[%s215 + $0x2c0] sm:$0xff]
                %306 = vst [vmem:[%s216 + $0x160] sm:$0xff] %v305
                %v307 = vld [vmem:[%s215 + $0x2c8] sm:$0xff]
                %308 = vst [vmem:[%s216 + $0x168] sm:$0xff] %v307
                %v309 = vld [vmem:[%s215 + $0x2d0] sm:$0xff]
                %310 = vst [vmem:[%s216 + $0x170] sm:$0xff] %v309
                %v311 = vld [vmem:[%s215 + $0x2d8] sm:$0xff]
                %312 = vst [vmem:[%s216 + $0x178] sm:$0xff] %v311
                %v313 = vld [vmem:[%s215 + $0x300] sm:$0xff]
                %314 = vst [vmem:[%s216 + $0x180] sm:$0xff] %v313
                %v315 = vld [vmem:[%s215 + $0x308] sm:$0xff]
                %316 = vst [vmem:[%s216 + $0x188] sm:$0xff] %v315
                %v317 = vld [vmem:[%s215 + $0x310] sm:$0xff]
                %318 = vst [vmem:[%s216 + $0x190] sm:$0xff] %v317
                %v319 = vld [vmem:[%s215 + $0x318] sm:$0xff]
                %320 = vst [vmem:[%s216 + $0x198] sm:$0xff] %v319
                %v321 = vld [vmem:[%s215 + $0x340] sm:$0xff]
                %322 = vst [vmem:[%s216 + $0x1a0] sm:$0xff] %v321
                %v323 = vld [vmem:[%s215 + $0x348] sm:$0xff]
                %324 = vst [vmem:[%s216 + $0x1a8] sm:$0xff] %v323
                %v325 = vld [vmem:[%s215 + $0x350] sm:$0xff]
                %326 = vst [vmem:[%s216 + $0x1b0] sm:$0xff] %v325
                %v327 = vld [vmem:[%s215 + $0x358] sm:$0xff]
                %328 = vst [vmem:[%s216 + $0x1b8] sm:$0xff] %v327
                %v329 = vld [vmem:[%s215 + $0x380] sm:$0xff]
                %330 = vst [vmem:[%s216 + $0x1c0] sm:$0xff] %v329
                %v331 = vld [vmem:[%s215 + $0x388] sm:$0xff]
                %332 = vst [vmem:[%s216 + $0x1c8] sm:$0xff] %v331
                %v333 = vld [vmem:[%s215 + $0x390] sm:$0xff]
                %334 = vst [vmem:[%s216 + $0x1d0] sm:$0xff] %v333
                %v335 = vld [vmem:[%s215 + $0x398] sm:$0xff]
                %336 = vst [vmem:[%s216 + $0x1d8] sm:$0xff] %v335
                %v337 = vld [vmem:[%s215 + $0x3c0] sm:$0xff]
                %338 = vst [vmem:[%s216 + $0x1e0] sm:$0xff] %v337
                %v339 = vld [vmem:[%s215 + $0x3c8] sm:$0xff]
                %340 = vst [vmem:[%s216 + $0x1e8] sm:$0xff] %v339
                %v341 = vld [vmem:[%s215 + $0x3d0] sm:$0xff]
                %342 = vst [vmem:[%s216 + $0x1f0] sm:$0xff] %v341
                %v343 = vld [vmem:[%s215 + $0x3d8] sm:$0xff]
                %344 = vst [vmem:[%s216 + $0x1f8] sm:$0xff] %v343
                %v345 = vld [vmem:[%s215 + $0x400] sm:$0xff]
                %346 = vst [vmem:[%s216 + $0x200] sm:$0xff] %v345
                %v347 = vld [vmem:[%s215 + $0x408] sm:$0xff]
                %348 = vst [vmem:[%s216 + $0x208] sm:$0xff] %v347
                %v349 = vld [vmem:[%s215 + $0x410] sm:$0xff]
                %350 = vst [vmem:[%s216 + $0x210] sm:$0xff] %v349
                %v351 = vld [vmem:[%s215 + $0x418] sm:$0xff]
                %352 = vst [vmem:[%s216 + $0x218] sm:$0xff] %v351
                %v353 = vld [vmem:[%s215 + $0x440] sm:$0xff]
                %354 = vst [vmem:[%s216 + $0x220] sm:$0xff] %v353
                %v355 = vld [vmem:[%s215 + $0x448] sm:$0xff]
                %356 = vst [vmem:[%s216 + $0x228] sm:$0xff] %v355
                %v357 = vld [vmem:[%s215 + $0x450] sm:$0xff]
                %358 = vst [vmem:[%s216 + $0x230] sm:$0xff] %v357
                %v359 = vld [vmem:[%s215 + $0x458] sm:$0xff]
                %360 = vst [vmem:[%s216 + $0x238] sm:$0xff] %v359
                %v361 = vld [vmem:[%s215 + $0x480] sm:$0xff]
                %362 = vst [vmem:[%s216 + $0x240] sm:$0xff] %v361
                %v363 = vld [vmem:[%s215 + $0x488] sm:$0xff]
                %364 = vst [vmem:[%s216 + $0x248] sm:$0xff] %v363
                %v365 = vld [vmem:[%s215 + $0x490] sm:$0xff]
                %366 = vst [vmem:[%s216 + $0x250] sm:$0xff] %v365
                %v367 = vld [vmem:[%s215 + $0x498] sm:$0xff]
                %368 = vst [vmem:[%s216 + $0x258] sm:$0xff] %v367
                %v369 = vld [vmem:[%s215 + $0x4c0] sm:$0xff]
                %370 = vst [vmem:[%s216 + $0x260] sm:$0xff] %v369
                %v371 = vld [vmem:[%s215 + $0x4c8] sm:$0xff]
                %372 = vst [vmem:[%s216 + $0x268] sm:$0xff] %v371
                %v373 = vld [vmem:[%s215 + $0x4d0] sm:$0xff]
                %374 = vst [vmem:[%s216 + $0x270] sm:$0xff] %v373
                %v375 = vld [vmem:[%s215 + $0x4d8] sm:$0xff]
                %376 = vst [vmem:[%s216 + $0x278] sm:$0xff] %v375
                %v377 = vld [vmem:[%s215 + $0x500] sm:$0xff]
                %378 = vst [vmem:[%s216 + $0x280] sm:$0xff] %v377
                %v379 = vld [vmem:[%s215 + $0x508] sm:$0xff]
                %380 = vst [vmem:[%s216 + $0x288] sm:$0xff] %v379
                %v381 = vld [vmem:[%s215 + $0x510] sm:$0xff]
                %382 = vst [vmem:[%s216 + $0x290] sm:$0xff] %v381
                %v383 = vld [vmem:[%s215 + $0x518] sm:$0xff]
                %384 = vst [vmem:[%s216 + $0x298] sm:$0xff] %v383
                %v385 = vld [vmem:[%s215 + $0x540] sm:$0xff]
                %386 = vst [vmem:[%s216 + $0x2a0] sm:$0xff] %v385
                %v387 = vld [vmem:[%s215 + $0x548] sm:$0xff]
                %388 = vst [vmem:[%s216 + $0x2a8] sm:$0xff] %v387
                %v389 = vld [vmem:[%s215 + $0x550] sm:$0xff]
                %390 = vst [vmem:[%s216 + $0x2b0] sm:$0xff] %v389
                %v391 = vld [vmem:[%s215 + $0x558] sm:$0xff]
                %392 = vst [vmem:[%s216 + $0x2b8] sm:$0xff] %v391
                %v393 = vld [vmem:[%s215 + $0x580] sm:$0xff]
                %394 = vst [vmem:[%s216 + $0x2c0] sm:$0xff] %v393
                %v395 = vld [vmem:[%s215 + $0x588] sm:$0xff]
                %396 = vst [vmem:[%s216 + $0x2c8] sm:$0xff] %v395
                %v397 = vld [vmem:[%s215 + $0x590] sm:$0xff]
                %398 = vst [vmem:[%s216 + $0x2d0] sm:$0xff] %v397
                %v399 = vld [vmem:[%s215 + $0x598] sm:$0xff]
                %400 = vst [vmem:[%s216 + $0x2d8] sm:$0xff] %v399
                %v401 = vld [vmem:[%s215 + $0x5c0] sm:$0xff]
                %402 = vst [vmem:[%s216 + $0x2e0] sm:$0xff] %v401
                %v403 = vld [vmem:[%s215 + $0x5c8] sm:$0xff]
                %404 = vst [vmem:[%s216 + $0x2e8] sm:$0xff] %v403
                %v405 = vld [vmem:[%s215 + $0x5d0] sm:$0xff]
                %406 = vst [vmem:[%s216 + $0x2f0] sm:$0xff] %v405
                %v407 = vld [vmem:[%s215 + $0x5d8] sm:$0xff]
                %408 = vst [vmem:[%s216 + $0x2f8] sm:$0xff] %v407
                %v409 = vld [vmem:[%s215 + $0x600] sm:$0xff]
                %410 = vst [vmem:[%s216 + $0x300] sm:$0xff] %v409
                %v411 = vld [vmem:[%s215 + $0x608] sm:$0xff]
                %412 = vst [vmem:[%s216 + $0x308] sm:$0xff] %v411
                %v413 = vld [vmem:[%s215 + $0x610] sm:$0xff]
                %414 = vst [vmem:[%s216 + $0x310] sm:$0xff] %v413
                %v415 = vld [vmem:[%s215 + $0x618] sm:$0xff]
                %416 = vst [vmem:[%s216 + $0x318] sm:$0xff] %v415
                %v417 = vld [vmem:[%s215 + $0x640] sm:$0xff]
                %418 = vst [vmem:[%s216 + $0x320] sm:$0xff] %v417
                %v419 = vld [vmem:[%s215 + $0x648] sm:$0xff]
                %420 = vst [vmem:[%s216 + $0x328] sm:$0xff] %v419
                %v421 = vld [vmem:[%s215 + $0x650] sm:$0xff]
                %422 = vst [vmem:[%s216 + $0x330] sm:$0xff] %v421
                %v423 = vld [vmem:[%s215 + $0x658] sm:$0xff]
                %424 = vst [vmem:[%s216 + $0x338] sm:$0xff] %v423
                %v425 = vld [vmem:[%s215 + $0x680] sm:$0xff]
                %426 = vst [vmem:[%s216 + $0x340] sm:$0xff] %v425
                %v427 = vld [vmem:[%s215 + $0x688] sm:$0xff]
                %428 = vst [vmem:[%s216 + $0x348] sm:$0xff] %v427
                %v429 = vld [vmem:[%s215 + $0x690] sm:$0xff]
                %430 = vst [vmem:[%s216 + $0x350] sm:$0xff] %v429
                %v431 = vld [vmem:[%s215 + $0x698] sm:$0xff]
                %432 = vst [vmem:[%s216 + $0x358] sm:$0xff] %v431
                %v433 = vld [vmem:[%s215 + $0x6c0] sm:$0xff]
                %434 = vst [vmem:[%s216 + $0x360] sm:$0xff] %v433
                %v435 = vld [vmem:[%s215 + $0x6c8] sm:$0xff]
                %436 = vst [vmem:[%s216 + $0x368] sm:$0xff] %v435
                %v437 = vld [vmem:[%s215 + $0x6d0] sm:$0xff]
                %438 = vst [vmem:[%s216 + $0x370] sm:$0xff] %v437
                %v439 = vld [vmem:[%s215 + $0x6d8] sm:$0xff]
                %440 = vst [vmem:[%s216 + $0x378] sm:$0xff] %v439
                %v441 = vld [vmem:[%s215 + $0x700] sm:$0xff]
                %442 = vst [vmem:[%s216 + $0x380] sm:$0xff] %v441
                %v443 = vld [vmem:[%s215 + $0x708] sm:$0xff]
                %444 = vst [vmem:[%s216 + $0x388] sm:$0xff] %v443
                %v445 = vld [vmem:[%s215 + $0x710] sm:$0xff]
                %446 = vst [vmem:[%s216 + $0x390] sm:$0xff] %v445
                %v447 = vld [vmem:[%s215 + $0x718] sm:$0xff]
                %448 = vst [vmem:[%s216 + $0x398] sm:$0xff] %v447
                %v449 = vld [vmem:[%s215 + $0x740] sm:$0xff]
                %450 = vst [vmem:[%s216 + $0x3a0] sm:$0xff] %v449
                %v451 = vld [vmem:[%s215 + $0x748] sm:$0xff]
                %452 = vst [vmem:[%s216 + $0x3a8] sm:$0xff] %v451
                %v453 = vld [vmem:[%s215 + $0x750] sm:$0xff]
                %454 = vst [vmem:[%s216 + $0x3b0] sm:$0xff] %v453
                %v455 = vld [vmem:[%s215 + $0x758] sm:$0xff]
                %456 = vst [vmem:[%s216 + $0x3b8] sm:$0xff] %v455
                %v457 = vld [vmem:[%s215 + $0x780] sm:$0xff]
                %458 = vst [vmem:[%s216 + $0x3c0] sm:$0xff] %v457
                %v459 = vld [vmem:[%s215 + $0x788] sm:$0xff]
                %460 = vst [vmem:[%s216 + $0x3c8] sm:$0xff] %v459
                %v461 = vld [vmem:[%s215 + $0x790] sm:$0xff]
                %462 = vst [vmem:[%s216 + $0x3d0] sm:$0xff] %v461
                %v463 = vld [vmem:[%s215 + $0x798] sm:$0xff]
                %464 = vst [vmem:[%s216 + $0x3d8] sm:$0xff] %v463
                %v465 = vld [vmem:[%s215 + $0x7c0] sm:$0xff]
                %466 = vst [vmem:[%s216 + $0x3e0] sm:$0xff] %v465
                %v467 = vld [vmem:[%s215 + $0x7c8] sm:$0xff]
                %468 = vst [vmem:[%s216 + $0x3e8] sm:$0xff] %v467
                %v469 = vld [vmem:[%s215 + $0x7d0] sm:$0xff]
                %470 = vst [vmem:[%s216 + $0x3f0] sm:$0xff] %v469
                %v471 = vld [vmem:[%s215 + $0x7d8] sm:$0xff]
                %472 = vst [vmem:[%s216 + $0x3f8] sm:$0xff] %v471
                %v473 = vld [vmem:[%s215 + $0x800] sm:$0xff]
                %474 = vst [vmem:[%s216 + $0x400] sm:$0xff] %v473
                %v475 = vld [vmem:[%s215 + $0x808] sm:$0xff]
                %476 = vst [vmem:[%s216 + $0x408] sm:$0xff] %v475
                %v477 = vld [vmem:[%s215 + $0x810] sm:$0xff]
                %478 = vst [vmem:[%s216 + $0x410] sm:$0xff] %v477
                %v479 = vld [vmem:[%s215 + $0x818] sm:$0xff]
                %480 = vst [vmem:[%s216 + $0x418] sm:$0xff] %v479
                %v481 = vld [vmem:[%s215 + $0x840] sm:$0xff]
                %482 = vst [vmem:[%s216 + $0x420] sm:$0xff] %v481
                %v483 = vld [vmem:[%s215 + $0x848] sm:$0xff]
                %484 = vst [vmem:[%s216 + $0x428] sm:$0xff] %v483
                %v485 = vld [vmem:[%s215 + $0x850] sm:$0xff]
                %486 = vst [vmem:[%s216 + $0x430] sm:$0xff] %v485
                %v487 = vld [vmem:[%s215 + $0x858] sm:$0xff]
                %488 = vst [vmem:[%s216 + $0x438] sm:$0xff] %v487
                %v489 = vld [vmem:[%s215 + $0x880] sm:$0xff]
                %490 = vst [vmem:[%s216 + $0x440] sm:$0xff] %v489
                %v491 = vld [vmem:[%s215 + $0x888] sm:$0xff]
                %492 = vst [vmem:[%s216 + $0x448] sm:$0xff] %v491
                %v493 = vld [vmem:[%s215 + $0x890] sm:$0xff]
                %494 = vst [vmem:[%s216 + $0x450] sm:$0xff] %v493
                %v495 = vld [vmem:[%s215 + $0x898] sm:$0xff]
                %496 = vst [vmem:[%s216 + $0x458] sm:$0xff] %v495
                %v497 = vld [vmem:[%s215 + $0x8c0] sm:$0xff]
                %498 = vst [vmem:[%s216 + $0x460] sm:$0xff] %v497
                %v499 = vld [vmem:[%s215 + $0x8c8] sm:$0xff]
                %500 = vst [vmem:[%s216 + $0x468] sm:$0xff] %v499
                %v501 = vld [vmem:[%s215 + $0x8d0] sm:$0xff]
                %502 = vst [vmem:[%s216 + $0x470] sm:$0xff] %v501
                %v503 = vld [vmem:[%s215 + $0x8d8] sm:$0xff]
                %504 = vst [vmem:[%s216 + $0x478] sm:$0xff] %v503
                %v505 = vld [vmem:[%s215 + $0x900] sm:$0xff]
                %506 = vst [vmem:[%s216 + $0x480] sm:$0xff] %v505
                %v507 = vld [vmem:[%s215 + $0x908] sm:$0xff]
                %508 = vst [vmem:[%s216 + $0x488] sm:$0xff] %v507
                %v509 = vld [vmem:[%s215 + $0x910] sm:$0xff]
                %510 = vst [vmem:[%s216 + $0x490] sm:$0xff] %v509
                %v511 = vld [vmem:[%s215 + $0x918] sm:$0xff]
                %512 = vst [vmem:[%s216 + $0x498] sm:$0xff] %v511
                %v513 = vld [vmem:[%s215 + $0x940] sm:$0xff]
                %514 = vst [vmem:[%s216 + $0x4a0] sm:$0xff] %v513
                %v515 = vld [vmem:[%s215 + $0x948] sm:$0xff]
                %516 = vst [vmem:[%s216 + $0x4a8] sm:$0xff] %v515
                %v517 = vld [vmem:[%s215 + $0x950] sm:$0xff]
                %518 = vst [vmem:[%s216 + $0x4b0] sm:$0xff] %v517
                %v519 = vld [vmem:[%s215 + $0x958] sm:$0xff]
                %520 = vst [vmem:[%s216 + $0x4b8] sm:$0xff] %v519
                %v521 = vld [vmem:[%s215 + $0x980] sm:$0xff]
                %522 = vst [vmem:[%s216 + $0x4c0] sm:$0xff] %v521
                %v523 = vld [vmem:[%s215 + $0x988] sm:$0xff]
                %524 = vst [vmem:[%s216 + $0x4c8] sm:$0xff] %v523
                %v525 = vld [vmem:[%s215 + $0x990] sm:$0xff]
                %526 = vst [vmem:[%s216 + $0x4d0] sm:$0xff] %v525
                %v527 = vld [vmem:[%s215 + $0x998] sm:$0xff]
                %528 = vst [vmem:[%s216 + $0x4d8] sm:$0xff] %v527
                %v529 = vld [vmem:[%s215 + $0x9c0] sm:$0xff]
                %530 = vst [vmem:[%s216 + $0x4e0] sm:$0xff] %v529
                %v531 = vld [vmem:[%s215 + $0x9c8] sm:$0xff]
                %532 = vst [vmem:[%s216 + $0x4e8] sm:$0xff] %v531
                %v533 = vld [vmem:[%s215 + $0x9d0] sm:$0xff]
                %534 = vst [vmem:[%s216 + $0x4f0] sm:$0xff] %v533
                %v535 = vld [vmem:[%s215 + $0x9d8] sm:$0xff]
                %536 = vst [vmem:[%s216 + $0x4f8] sm:$0xff] %v535
              $region49: #{tpu_custom_call.1} parent=43 // loop_footer
                %s214 = sadd.s32 1, %s210
              $region50: #{tpu_custom_call.1} parent=43 // loop_footer_branch
                %209 = sbr.rel target = $region46
              $region51: #{tpu_custom_call.1} parent=43 // loop_exit
                _
            $region44: #{tpu_custom_call.1} parent=39 // pred_fallthru
              _
            // Predicated region
            $region52: #{tpu_custom_call.1} parent=39 // pred_check
              _
            $region53: #{tpu_custom_call.1} parent=39 // pred_check_branch
              %538 = sbr.rel target = $region55
            $region54: #{tpu_custom_call.1} parent=39 // pred_region
              _
            $region55: #{tpu_custom_call.1} parent=39 // pred_fallthru
              _
          $region40: #{tpu_custom_call.1} parent=35 // pred_fallthru
            _
          %539 = vnop
        $region36: #{tpu_custom_call.1} parent=31 // pred_fallthru
          _
      $region32: #{tpu_custom_call.1} parent=5 // pred_fallthru
        _
      %p540 = scmp.le.s32.totalorder 1, %s11
      %p541 = scmp.lt.s32.totalorder %s11, 3
      %p542 = pnand %p540, %p541
      %p543 = pneg %p542
      // Predicated region
      $region56: #{tpu_custom_call.1} parent=5 // pred_check
        _
      $region57: #{tpu_custom_call.1} parent=5 // pred_check_branch
        %545 = sbr.rel (%p542) target = $region59
      $region58: #{tpu_custom_call.1} parent=5 // pred_region
        %s546 = ssub.s32 %s11, 1
        %s547 = sand.u32 %s122, 1
        %s548 = sand.u32 %s122, 1
        %s549 = smul.addr %s548, 1280
        %s550 = scalar_lea.vmem [#allocation3], %s549
        // Predicated region
        $region60: #{tpu_custom_call.1} parent=58 // pred_check
          %p551 = pneg %p135
        $region61: #{tpu_custom_call.1} parent=58 // pred_check_branch
          %553 = sbr.rel (%p551) target = $region63
        $region62: #{tpu_custom_call.1} parent=58 // pred_region
          _
        $region63: #{tpu_custom_call.1} parent=58 // pred_fallthru
          _
        %p554 = pneg %p44
        %p555 = pneg %p41
        %p556 = pneg %p65
        %p557 = pneg %p62
        %p558 = pneg %p86
        %p559 = pneg %p83
        %p560 = pneg %p107
        %p561 = pneg %p104
        %s562 = sand.u32 %s122, 1
        %s563 = sand.u32 %s122, 1
        %s564 = smul.addr %s563, 1280
        %s565 = scalar_lea.vmem [#allocation3], %s564
        %p566 = pneg %p135
        %p567 = pneg %p132
        %p568 = pneg %p161
        %p569 = pneg %p158
        %s570 = smul.u32 40, %s20
        %p571 = scmp.lt.s32.totalorder %s570, 39
        %s572 = scalar_select %p571, %s570, 39
        %s573 = smul.addr %s572, 8
        %s574 = scalar_lea.vmem %s5, %s573
        %s575 = smul.u32 40, %s20
        %s576 = smul.u32 8, %s21
        %s577 = smul.u32 40, %s20
        %p578 = scmp.lt.s32.totalorder %s577, 39
        %s579 = scalar_select %p578, %s577, 39
        %s580 = smul.addr %s579, 8
        %s581 = scalar_lea.vmem %s5, %s580
        %s582 = smul.u32 40, %s20
        %p583 = scmp.eq.s32.totalorder %s21, 0
        // Predicated region
        $region64: #{tpu_custom_call.1} parent=58 // pred_check
          %p584 = pneg %p583
        $region65: #{tpu_custom_call.1} parent=58 // pred_check_branch
          %586 = sbr.rel (%p584) target = $region67
        $region66: #{tpu_custom_call.1} parent=58 // pred_region
          %v587 = vld [vmem:[%s0] sm:$0xff]
          %v588 = vld [vmem:[%s0 + $0x8] sm:$0xff]
          %v589 = vld [vmem:[%s0 + $0x10] sm:$0xff]
          %v590 = vld [vmem:[%s0 + $0x18] sm:$0xff]
          %v591 = vld [vmem:[%s0 + $0x20] sm:$0xff]
          %v592 = vld [vmem:[%s0 + $0x28] sm:$0xff]
          %v593 = vld [vmem:[%s0 + $0x30] sm:$0xff]
          %v594 = vld [vmem:[%s0 + $0x38] sm:$0xff]
          %v595 = vld [vmem:[%s0 + $0x40] sm:$0xff]
          %v596 = vld [vmem:[%s0 + $0x48] sm:$0xff]
          %v597 = vld [vmem:[%s0 + $0x50] sm:$0xff]
          %v598 = vld [vmem:[%s0 + $0x58] sm:$0xff]
          %v599 = vld [vmem:[%s0 + $0x60] sm:$0xff]
          %v600 = vld [vmem:[%s0 + $0x68] sm:$0xff]
          %v601 = vld [vmem:[%s0 + $0x70] sm:$0xff]
          %v602 = vld [vmem:[%s0 + $0x78] sm:$0xff]
          %v603 = vld [vmem:[%s0 + $0x80] sm:$0xff]
          %v604 = vld [vmem:[%s0 + $0x88] sm:$0xff]
          %v605 = vld [vmem:[%s0 + $0x90] sm:$0xff]
          %v606 = vld [vmem:[%s0 + $0x98] sm:$0xff]
          %v607 = vld [vmem:[%s0 + $0xa0] sm:$0xff]
          %v608 = vld [vmem:[%s0 + $0xa8] sm:$0xff]
          %v609 = vld [vmem:[%s0 + $0xb0] sm:$0xff]
          %v610 = vld [vmem:[%s0 + $0xb8] sm:$0xff]
          %v611 = vld [vmem:[%s0 + $0xc0] sm:$0xff]
          %v612 = vld [vmem:[%s0 + $0xc8] sm:$0xff]
          %v613 = vld [vmem:[%s0 + $0xd0] sm:$0xff]
          %v614 = vld [vmem:[%s0 + $0xd8] sm:$0xff]
          %v615 = vld [vmem:[%s0 + $0xe0] sm:$0xff]
          %v616 = vld [vmem:[%s0 + $0xe8] sm:$0xff]
          %v617 = vld [vmem:[%s0 + $0xf0] sm:$0xff]
          %v618 = vld [vmem:[%s0 + $0xf8] sm:$0xff]
          %v619 = vld [vmem:[%s0 + $0x100] sm:$0xff]
          %v620 = vld [vmem:[%s0 + $0x108] sm:$0xff]
          %v621 = vld [vmem:[%s0 + $0x110] sm:$0xff]
          %v622 = vld [vmem:[%s0 + $0x118] sm:$0xff]
          %v623 = vld [vmem:[%s0 + $0x120] sm:$0xff]
          %v624 = vld [vmem:[%s0 + $0x128] sm:$0xff]
          %v625 = vld [vmem:[%s0 + $0x130] sm:$0xff]
          %v626 = vld [vmem:[%s0 + $0x138] sm:$0xff]
          %v627 = vpack.c.bf16 %v587, %v587
          %v628 = vpack.c.bf16 %v588, %v588
          %v629 = vpack.c.bf16 %v589, %v589
          %v630 = vpack.c.bf16 %v590, %v590
          %v631 = vpack.c.bf16 %v591, %v591
          %v632 = vpack.c.bf16 %v592, %v592
          %v633 = vpack.c.bf16 %v593, %v593
          %v634 = vpack.c.bf16 %v594, %v594
          %v635 = vpack.c.bf16 %v595, %v595
          %v636 = vpack.c.bf16 %v596, %v596
          %v637 = vpack.c.bf16 %v597, %v597
          %v638 = vpack.c.bf16 %v598, %v598
          %v639 = vpack.c.bf16 %v599, %v599
          %v640 = vpack.c.bf16 %v600, %v600
          %v641 = vpack.c.bf16 %v601, %v601
          %v642 = vpack.c.bf16 %v602, %v602
          %v643 = vpack.c.bf16 %v603, %v603
          %v644 = vpack.c.bf16 %v604, %v604
          %v645 = vpack.c.bf16 %v605, %v605
          %v646 = vpack.c.bf16 %v606, %v606
          %v647 = vpack.c.bf16 %v607, %v607
          %v648 = vpack.c.bf16 %v608, %v608
          %v649 = vpack.c.bf16 %v609, %v609
          %v650 = vpack.c.bf16 %v610, %v610
          %v651 = vpack.c.bf16 %v611, %v611
          %v652 = vpack.c.bf16 %v612, %v612
          %v653 = vpack.c.bf16 %v613, %v613
          %v654 = vpack.c.bf16 %v614, %v614
          %v655 = vpack.c.bf16 %v615, %v615
          %v656 = vpack.c.bf16 %v616, %v616
          %v657 = vpack.c.bf16 %v617, %v617
          %v658 = vpack.c.bf16 %v618, %v618
          %v659 = vpack.c.bf16 %v619, %v619
          %v660 = vpack.c.bf16 %v620, %v620
          %v661 = vpack.c.bf16 %v621, %v621
          %v662 = vpack.c.bf16 %v622, %v622
          %v663 = vpack.c.bf16 %v623, %v623
          %v664 = vpack.c.bf16 %v624, %v624
          %v665 = vpack.c.bf16 %v625, %v625
          %v666 = vpack.c.bf16 %v626, %v626
          %vm667 = vcmask 199680
          %668 = vst.msk [vmem:[#allocation2] sm:$0xf] %vm667, %v627
          %669 = vst.msk [vmem:[#allocation2 + $0x4] sm:$0xf] %vm667, %v628
          %670 = vst.msk [vmem:[#allocation2 + $0x8] sm:$0xf] %vm667, %v629
          %671 = vst.msk [vmem:[#allocation2 + $0xc] sm:$0xf] %vm667, %v630
          %672 = vst.msk [vmem:[#allocation2 + $0x10] sm:$0xf] %vm667, %v631
          %673 = vst.msk [vmem:[#allocation2 + $0x14] sm:$0xf] %vm667, %v632
          %674 = vst.msk [vmem:[#allocation2 + $0x18] sm:$0xf] %vm667, %v633
          %675 = vst.msk [vmem:[#allocation2 + $0x1c] sm:$0xf] %vm667, %v634
          %676 = vst.msk [vmem:[#allocation2 + $0x20] sm:$0xf] %vm667, %v635
          %677 = vst.msk [vmem:[#allocation2 + $0x24] sm:$0xf] %vm667, %v636
          %678 = vst.msk [vmem:[#allocation2 + $0x28] sm:$0xf] %vm667, %v637
          %679 = vst.msk [vmem:[#allocation2 + $0x2c] sm:$0xf] %vm667, %v638
          %680 = vst.msk [vmem:[#allocation2 + $0x30] sm:$0xf] %vm667, %v639
          %681 = vst.msk [vmem:[#allocation2 + $0x34] sm:$0xf] %vm667, %v640
          %682 = vst.msk [vmem:[#allocation2 + $0x38] sm:$0xf] %vm667, %v641
          %683 = vst.msk [vmem:[#allocation2 + $0x3c] sm:$0xf] %vm667, %v642
          %684 = vst.msk [vmem:[#allocation2 + $0x40] sm:$0xf] %vm667, %v643
          %685 = vst.msk [vmem:[#allocation2 + $0x44] sm:$0xf] %vm667, %v644
          %686 = vst.msk [vmem:[#allocation2 + $0x48] sm:$0xf] %vm667, %v645
          %687 = vst.msk [vmem:[#allocation2 + $0x4c] sm:$0xf] %vm667, %v646
          %688 = vst.msk [vmem:[#allocation2 + $0x50] sm:$0xf] %vm667, %v647
          %689 = vst.msk [vmem:[#allocation2 + $0x54] sm:$0xf] %vm667, %v648
          %690 = vst.msk [vmem:[#allocation2 + $0x58] sm:$0xf] %vm667, %v649
          %691 = vst.msk [vmem:[#allocation2 + $0x5c] sm:$0xf] %vm667, %v650
          %692 = vst.msk [vmem:[#allocation2 + $0x60] sm:$0xf] %vm667, %v651
          %693 = vst.msk [vmem:[#allocation2 + $0x64] sm:$0xf] %vm667, %v652
          %694 = vst.msk [vmem:[#allocation2 + $0x68] sm:$0xf] %vm667, %v653
          %695 = vst.msk [vmem:[#allocation2 + $0x6c] sm:$0xf] %vm667, %v654
          %696 = vst.msk [vmem:[#allocation2 + $0x70] sm:$0xf] %vm667, %v655
          %697 = vst.msk [vmem:[#allocation2 + $0x74] sm:$0xf] %vm667, %v656
          %698 = vst.msk [vmem:[#allocation2 + $0x78] sm:$0xf] %vm667, %v657
          %699 = vst.msk [vmem:[#allocation2 + $0x7c] sm:$0xf] %vm667, %v658
          %700 = vst.msk [vmem:[#allocation2 + $0x80] sm:$0xf] %vm667, %v659
          %701 = vst.msk [vmem:[#allocation2 + $0x84] sm:$0xf] %vm667, %v660
          %702 = vst.msk [vmem:[#allocation2 + $0x88] sm:$0xf] %vm667, %v661
          %703 = vst.msk [vmem:[#allocation2 + $0x8c] sm:$0xf] %vm667, %v662
          %704 = vst.msk [vmem:[#allocation2 + $0x90] sm:$0xf] %vm667, %v663
          %705 = vst.msk [vmem:[#allocation2 + $0x94] sm:$0xf] %vm667, %v664
          %706 = vst.msk [vmem:[#allocation2 + $0x98] sm:$0xf] %vm667, %v665
          %707 = vst.msk [vmem:[#allocation2 + $0x9c] sm:$0xf] %vm667, %v666
          %v708 = vld [vmem:[%s1] sm:$0xff]
          %v709 = vld [vmem:[%s1 + $0x8] sm:$0xff]
          %v710 = vld [vmem:[%s1 + $0x10] sm:$0xff]
          %v711 = vld [vmem:[%s1 + $0x18] sm:$0xff]
          %v712 = vld [vmem:[%s1 + $0x20] sm:$0xff]
          %v713 = vld [vmem:[%s1 + $0x28] sm:$0xff]
          %v714 = vld [vmem:[%s1 + $0x30] sm:$0xff]
          %v715 = vld [vmem:[%s1 + $0x38] sm:$0xff]
          %v716 = vld [vmem:[%s1 + $0x40] sm:$0xff]
          %v717 = vld [vmem:[%s1 + $0x48] sm:$0xff]
          %v718 = vld [vmem:[%s1 + $0x50] sm:$0xff]
          %v719 = vld [vmem:[%s1 + $0x58] sm:$0xff]
          %v720 = vld [vmem:[%s1 + $0x60] sm:$0xff]
          %v721 = vld [vmem:[%s1 + $0x68] sm:$0xff]
          %v722 = vld [vmem:[%s1 + $0x70] sm:$0xff]
          %v723 = vld [vmem:[%s1 + $0x78] sm:$0xff]
          %v724 = vld [vmem:[%s1 + $0x80] sm:$0xff]
          %v725 = vld [vmem:[%s1 + $0x88] sm:$0xff]
          %v726 = vld [vmem:[%s1 + $0x90] sm:$0xff]
          %v727 = vld [vmem:[%s1 + $0x98] sm:$0xff]
          %v728 = vld [vmem:[%s1 + $0xa0] sm:$0xff]
          %v729 = vld [vmem:[%s1 + $0xa8] sm:$0xff]
          %v730 = vld [vmem:[%s1 + $0xb0] sm:$0xff]
          %v731 = vld [vmem:[%s1 + $0xb8] sm:$0xff]
          %v732 = vld [vmem:[%s1 + $0xc0] sm:$0xff]
          %v733 = vld [vmem:[%s1 + $0xc8] sm:$0xff]
          %v734 = vld [vmem:[%s1 + $0xd0] sm:$0xff]
          %v735 = vld [vmem:[%s1 + $0xd8] sm:$0xff]
          %v736 = vld [vmem:[%s1 + $0xe0] sm:$0xff]
          %v737 = vld [vmem:[%s1 + $0xe8] sm:$0xff]
          %v738 = vld [vmem:[%s1 + $0xf0] sm:$0xff]
          %v739 = vld [vmem:[%s1 + $0xf8] sm:$0xff]
          %v740 = vld [vmem:[%s1 + $0x100] sm:$0xff]
          %v741 = vld [vmem:[%s1 + $0x108] sm:$0xff]
          %v742 = vld [vmem:[%s1 + $0x110] sm:$0xff]
          %v743 = vld [vmem:[%s1 + $0x118] sm:$0xff]
          %v744 = vld [vmem:[%s1 + $0x120] sm:$0xff]
          %v745 = vld [vmem:[%s1 + $0x128] sm:$0xff]
          %v746 = vld [vmem:[%s1 + $0x130] sm:$0xff]
          %v747 = vld [vmem:[%s1 + $0x138] sm:$0xff]
          %v748 = vld [vmem:[%s1 + $0x140] sm:$0xff]
          %v749 = vld [vmem:[%s1 + $0x148] sm:$0xff]
          %v750 = vld [vmem:[%s1 + $0x150] sm:$0xff]
          %v751 = vld [vmem:[%s1 + $0x158] sm:$0xff]
          %v752 = vld [vmem:[%s1 + $0x160] sm:$0xff]
          %v753 = vld [vmem:[%s1 + $0x168] sm:$0xff]
          %v754 = vld [vmem:[%s1 + $0x170] sm:$0xff]
          %v755 = vld [vmem:[%s1 + $0x178] sm:$0xff]
          %v756 = vld [vmem:[%s1 + $0x180] sm:$0xff]
          %v757 = vld [vmem:[%s1 + $0x188] sm:$0xff]
          %v758 = vld [vmem:[%s1 + $0x190] sm:$0xff]
          %v759 = vld [vmem:[%s1 + $0x198] sm:$0xff]
          %v760 = vld [vmem:[%s1 + $0x1a0] sm:$0xff]
          %v761 = vld [vmem:[%s1 + $0x1a8] sm:$0xff]
          %v762 = vld [vmem:[%s1 + $0x1b0] sm:$0xff]
          %v763 = vld [vmem:[%s1 + $0x1b8] sm:$0xff]
          %v764 = vld [vmem:[%s1 + $0x1c0] sm:$0xff]
          %v765 = vld [vmem:[%s1 + $0x1c8] sm:$0xff]
          %v766 = vld [vmem:[%s1 + $0x1d0] sm:$0xff]
          %v767 = vld [vmem:[%s1 + $0x1d8] sm:$0xff]
          %v768 = vld [vmem:[%s1 + $0x1e0] sm:$0xff]
          %v769 = vld [vmem:[%s1 + $0x1e8] sm:$0xff]
          %v770 = vld [vmem:[%s1 + $0x1f0] sm:$0xff]
          %v771 = vld [vmem:[%s1 + $0x1f8] sm:$0xff]
          %v772 = vld [vmem:[%s1 + $0x200] sm:$0xff]
          %v773 = vld [vmem:[%s1 + $0x208] sm:$0xff]
          %v774 = vld [vmem:[%s1 + $0x210] sm:$0xff]
          %v775 = vld [vmem:[%s1 + $0x218] sm:$0xff]
          %v776 = vld [vmem:[%s1 + $0x220] sm:$0xff]
          %v777 = vld [vmem:[%s1 + $0x228] sm:$0xff]
          %v778 = vld [vmem:[%s1 + $0x230] sm:$0xff]
          %v779 = vld [vmem:[%s1 + $0x238] sm:$0xff]
          %v780 = vld [vmem:[%s1 + $0x240] sm:$0xff]
          %v781 = vld [vmem:[%s1 + $0x248] sm:$0xff]
          %v782 = vld [vmem:[%s1 + $0x250] sm:$0xff]
          %v783 = vld [vmem:[%s1 + $0x258] sm:$0xff]
          %v784 = vld [vmem:[%s1 + $0x260] sm:$0xff]
          %v785 = vld [vmem:[%s1 + $0x268] sm:$0xff]
          %v786 = vld [vmem:[%s1 + $0x270] sm:$0xff]
          %v787 = vld [vmem:[%s1 + $0x278] sm:$0xff]
          %v788 = vld [vmem:[%s1 + $0x280] sm:$0xff]
          %v789 = vld [vmem:[%s1 + $0x288] sm:$0xff]
          %v790 = vld [vmem:[%s1 + $0x290] sm:$0xff]
          %v791 = vld [vmem:[%s1 + $0x298] sm:$0xff]
          %v792 = vld [vmem:[%s1 + $0x2a0] sm:$0xff]
          %v793 = vld [vmem:[%s1 + $0x2a8] sm:$0xff]
          %v794 = vld [vmem:[%s1 + $0x2b0] sm:$0xff]
          %v795 = vld [vmem:[%s1 + $0x2b8] sm:$0xff]
          %v796 = vld [vmem:[%s1 + $0x2c0] sm:$0xff]
          %v797 = vld [vmem:[%s1 + $0x2c8] sm:$0xff]
          %v798 = vld [vmem:[%s1 + $0x2d0] sm:$0xff]
          %v799 = vld [vmem:[%s1 + $0x2d8] sm:$0xff]
          %v800 = vld [vmem:[%s1 + $0x2e0] sm:$0xff]
          %v801 = vld [vmem:[%s1 + $0x2e8] sm:$0xff]
          %v802 = vld [vmem:[%s1 + $0x2f0] sm:$0xff]
          %v803 = vld [vmem:[%s1 + $0x2f8] sm:$0xff]
          %v804 = vpack.c.bf16 %v708, %v708
          %v805 = vpack.c.bf16 %v709, %v709
          %v806 = vpack.c.bf16 %v710, %v710
          %v807 = vpack.c.bf16 %v711, %v711
          %v808 = vpack.c.bf16 %v712, %v712
          %v809 = vpack.c.bf16 %v713, %v713
          %v810 = vpack.c.bf16 %v714, %v714
          %v811 = vpack.c.bf16 %v715, %v715
          %v812 = vpack.c.bf16 %v716, %v716
          %v813 = vpack.c.bf16 %v717, %v717
          %v814 = vpack.c.bf16 %v718, %v718
          %v815 = vpack.c.bf16 %v719, %v719
          %v816 = vpack.c.bf16 %v720, %v720
          %v817 = vpack.c.bf16 %v721, %v721
          %v818 = vpack.c.bf16 %v722, %v722
          %v819 = vpack.c.bf16 %v723, %v723
          %v820 = vpack.c.bf16 %v724, %v724
          %v821 = vpack.c.bf16 %v725, %v725
          %v822 = vpack.c.bf16 %v726, %v726
          %v823 = vpack.c.bf16 %v727, %v727
          %v824 = vpack.c.bf16 %v728, %v728
          %v825 = vpack.c.bf16 %v729, %v729
          %v826 = vpack.c.bf16 %v730, %v730
          %v827 = vpack.c.bf16 %v731, %v731
          %v828 = vpack.c.bf16 %v732, %v732
          %v829 = vpack.c.bf16 %v733, %v733
          %v830 = vpack.c.bf16 %v734, %v734
          %v831 = vpack.c.bf16 %v735, %v735
          %v832 = vpack.c.bf16 %v736, %v736
          %v833 = vpack.c.bf16 %v737, %v737
          %v834 = vpack.c.bf16 %v738, %v738
          %v835 = vpack.c.bf16 %v739, %v739
          %v836 = vpack.c.bf16 %v740, %v740
          %v837 = vpack.c.bf16 %v741, %v741
          %v838 = vpack.c.bf16 %v742, %v742
          %v839 = vpack.c.bf16 %v743, %v743
          %v840 = vpack.c.bf16 %v744, %v744
          %v841 = vpack.c.bf16 %v745, %v745
          %v842 = vpack.c.bf16 %v746, %v746
          %v843 = vpack.c.bf16 %v747, %v747
          %v844 = vpack.c.bf16 %v748, %v748
          %v845 = vpack.c.bf16 %v749, %v749
          %v846 = vpack.c.bf16 %v750, %v750
          %v847 = vpack.c.bf16 %v751, %v751
          %v848 = vpack.c.bf16 %v752, %v752
          %v849 = vpack.c.bf16 %v753, %v753
          %v850 = vpack.c.bf16 %v754, %v754
          %v851 = vpack.c.bf16 %v755, %v755
          %v852 = vpack.c.bf16 %v756, %v756
          %v853 = vpack.c.bf16 %v757, %v757
          %v854 = vpack.c.bf16 %v758, %v758
          %v855 = vpack.c.bf16 %v759, %v759
          %v856 = vpack.c.bf16 %v760, %v760
          %v857 = vpack.c.bf16 %v761, %v761
          %v858 = vpack.c.bf16 %v762, %v762
          %v859 = vpack.c.bf16 %v763, %v763
          %v860 = vpack.c.bf16 %v764, %v764
          %v861 = vpack.c.bf16 %v765, %v765
          %v862 = vpack.c.bf16 %v766, %v766
          %v863 = vpack.c.bf16 %v767, %v767
          %v864 = vpack.c.bf16 %v768, %v768
          %v865 = vpack.c.bf16 %v769, %v769
          %v866 = vpack.c.bf16 %v770, %v770
          %v867 = vpack.c.bf16 %v771, %v771
          %v868 = vpack.c.bf16 %v772, %v772
          %v869 = vpack.c.bf16 %v773, %v773
          %v870 = vpack.c.bf16 %v774, %v774
          %v871 = vpack.c.bf16 %v775, %v775
          %v872 = vpack.c.bf16 %v776, %v776
          %v873 = vpack.c.bf16 %v777, %v777
          %v874 = vpack.c.bf16 %v778, %v778
          %v875 = vpack.c.bf16 %v779, %v779
          %v876 = vpack.c.bf16 %v780, %v780
          %v877 = vpack.c.bf16 %v781, %v781
          %v878 = vpack.c.bf16 %v782, %v782
          %v879 = vpack.c.bf16 %v783, %v783
          %v880 = vpack.c.bf16 %v784, %v784
          %v881 = vpack.c.bf16 %v785, %v785
          %v882 = vpack.c.bf16 %v786, %v786
          %v883 = vpack.c.bf16 %v787, %v787
          %v884 = vpack.c.bf16 %v788, %v788
          %v885 = vpack.c.bf16 %v789, %v789
          %v886 = vpack.c.bf16 %v790, %v790
          %v887 = vpack.c.bf16 %v791, %v791
          %v888 = vpack.c.bf16 %v792, %v792
          %v889 = vpack.c.bf16 %v793, %v793
          %v890 = vpack.c.bf16 %v794, %v794
          %v891 = vpack.c.bf16 %v795, %v795
          %v892 = vpack.c.bf16 %v796, %v796
          %v893 = vpack.c.bf16 %v797, %v797
          %v894 = vpack.c.bf16 %v798, %v798
          %v895 = vpack.c.bf16 %v799, %v799
          %v896 = vpack.c.bf16 %v800, %v800
          %v897 = vpack.c.bf16 %v801, %v801
          %v898 = vpack.c.bf16 %v802, %v802
          %v899 = vpack.c.bf16 %v803, %v803
          %900 = vst.msk [vmem:[#allocation2 + $0xa0] sm:$0xf] %vm667, %v804
          %901 = vst.msk [vmem:[#allocation2 + $0xa4] sm:$0xf] %vm667, %v805
          %902 = vst.msk [vmem:[#allocation2 + $0xa8] sm:$0xf] %vm667, %v806
          %903 = vst.msk [vmem:[#allocation2 + $0xac] sm:$0xf] %vm667, %v807
          %904 = vst.msk [vmem:[#allocation2 + $0xb0] sm:$0xf] %vm667, %v808
          %905 = vst.msk [vmem:[#allocation2 + $0xb4] sm:$0xf] %vm667, %v809
          %906 = vst.msk [vmem:[#allocation2 + $0xb8] sm:$0xf] %vm667, %v810
          %907 = vst.msk [vmem:[#allocation2 + $0xbc] sm:$0xf] %vm667, %v811
          %908 = vst.msk [vmem:[#allocation2 + $0xc0] sm:$0xf] %vm667, %v812
          %909 = vst.msk [vmem:[#allocation2 + $0xc4] sm:$0xf] %vm667, %v813
          %910 = vst.msk [vmem:[#allocation2 + $0xc8] sm:$0xf] %vm667, %v814
          %911 = vst.msk [vmem:[#allocation2 + $0xcc] sm:$0xf] %vm667, %v815
          %912 = vst.msk [vmem:[#allocation2 + $0xd0] sm:$0xf] %vm667, %v816
          %913 = vst.msk [vmem:[#allocation2 + $0xd4] sm:$0xf] %vm667, %v817
          %914 = vst.msk [vmem:[#allocation2 + $0xd8] sm:$0xf] %vm667, %v818
          %915 = vst.msk [vmem:[#allocation2 + $0xdc] sm:$0xf] %vm667, %v819
          %916 = vst.msk [vmem:[#allocation2 + $0xe0] sm:$0xf] %vm667, %v820
          %917 = vst.msk [vmem:[#allocation2 + $0xe4] sm:$0xf] %vm667, %v821
          %918 = vst.msk [vmem:[#allocation2 + $0xe8] sm:$0xf] %vm667, %v822
          %919 = vst.msk [vmem:[#allocation2 + $0xec] sm:$0xf] %vm667, %v823
          %920 = vst.msk [vmem:[#allocation2 + $0xf0] sm:$0xf] %vm667, %v824
          %921 = vst.msk [vmem:[#allocation2 + $0xf4] sm:$0xf] %vm667, %v825
          %922 = vst.msk [vmem:[#allocation2 + $0xf8] sm:$0xf] %vm667, %v826
          %923 = vst.msk [vmem:[#allocation2 + $0xfc] sm:$0xf] %vm667, %v827
          %924 = vst.msk [vmem:[#allocation2 + $0x100] sm:$0xf] %vm667, %v828
          %925 = vst.msk [vmem:[#allocation2 + $0x104] sm:$0xf] %vm667, %v829
          %926 = vst.msk [vmem:[#allocation2 + $0x108] sm:$0xf] %vm667, %v830
          %927 = vst.msk [vmem:[#allocation2 + $0x10c] sm:$0xf] %vm667, %v831
          %928 = vst.msk [vmem:[#allocation2 + $0x110] sm:$0xf] %vm667, %v832
          %929 = vst.msk [vmem:[#allocation2 + $0x114] sm:$0xf] %vm667, %v833
          %930 = vst.msk [vmem:[#allocation2 + $0x118] sm:$0xf] %vm667, %v834
          %931 = vst.msk [vmem:[#allocation2 + $0x11c] sm:$0xf] %vm667, %v835
          %932 = vst.msk [vmem:[#allocation2 + $0x120] sm:$0xf] %vm667, %v836
          %933 = vst.msk [vmem:[#allocation2 + $0x124] sm:$0xf] %vm667, %v837
          %934 = vst.msk [vmem:[#allocation2 + $0x128] sm:$0xf] %vm667, %v838
          %935 = vst.msk [vmem:[#allocation2 + $0x12c] sm:$0xf] %vm667, %v839
          %936 = vst.msk [vmem:[#allocation2 + $0x130] sm:$0xf] %vm667, %v840
          %937 = vst.msk [vmem:[#allocation2 + $0x134] sm:$0xf] %vm667, %v841
          %938 = vst.msk [vmem:[#allocation2 + $0x138] sm:$0xf] %vm667, %v842
          %939 = vst.msk [vmem:[#allocation2 + $0x13c] sm:$0xf] %vm667, %v843
          %940 = vst.msk [vmem:[#allocation2 + $0x140] sm:$0xf] %vm667, %v844
          %941 = vst.msk [vmem:[#allocation2 + $0x144] sm:$0xf] %vm667, %v845
          %942 = vst.msk [vmem:[#allocation2 + $0x148] sm:$0xf] %vm667, %v846
          %943 = vst.msk [vmem:[#allocation2 + $0x14c] sm:$0xf] %vm667, %v847
          %944 = vst.msk [vmem:[#allocation2 + $0x150] sm:$0xf] %vm667, %v848
          %945 = vst.msk [vmem:[#allocation2 + $0x154] sm:$0xf] %vm667, %v849
          %946 = vst.msk [vmem:[#allocation2 + $0x158] sm:$0xf] %vm667, %v850
          %947 = vst.msk [vmem:[#allocation2 + $0x15c] sm:$0xf] %vm667, %v851
          %948 = vst.msk [vmem:[#allocation2 + $0x160] sm:$0xf] %vm667, %v852
          %949 = vst.msk [vmem:[#allocation2 + $0x164] sm:$0xf] %vm667, %v853
          %950 = vst.msk [vmem:[#allocation2 + $0x168] sm:$0xf] %vm667, %v854
          %951 = vst.msk [vmem:[#allocation2 + $0x16c] sm:$0xf] %vm667, %v855
          %952 = vst.msk [vmem:[#allocation2 + $0x170] sm:$0xf] %vm667, %v856
          %953 = vst.msk [vmem:[#allocation2 + $0x174] sm:$0xf] %vm667, %v857
          %954 = vst.msk [vmem:[#allocation2 + $0x178] sm:$0xf] %vm667, %v858
          %955 = vst.msk [vmem:[#allocation2 + $0x17c] sm:$0xf] %vm667, %v859
          %956 = vst.msk [vmem:[#allocation2 + $0x180] sm:$0xf] %vm667, %v860
          %957 = vst.msk [vmem:[#allocation2 + $0x184] sm:$0xf] %vm667, %v861
          %958 = vst.msk [vmem:[#allocation2 + $0x188] sm:$0xf] %vm667, %v862
          %959 = vst.msk [vmem:[#allocation2 + $0x18c] sm:$0xf] %vm667, %v863
          %960 = vst.msk [vmem:[#allocation2 + $0x190] sm:$0xf] %vm667, %v864
          %961 = vst.msk [vmem:[#allocation2 + $0x194] sm:$0xf] %vm667, %v865
          %962 = vst.msk [vmem:[#allocation2 + $0x198] sm:$0xf] %vm667, %v866
          %963 = vst.msk [vmem:[#allocation2 + $0x19c] sm:$0xf] %vm667, %v867
          %964 = vst.msk [vmem:[#allocation2 + $0x1a0] sm:$0xf] %vm667, %v868
          %965 = vst.msk [vmem:[#allocation2 + $0x1a4] sm:$0xf] %vm667, %v869
          %966 = vst.msk [vmem:[#allocation2 + $0x1a8] sm:$0xf] %vm667, %v870
          %967 = vst.msk [vmem:[#allocation2 + $0x1ac] sm:$0xf] %vm667, %v871
          %968 = vst.msk [vmem:[#allocation2 + $0x1b0] sm:$0xf] %vm667, %v872
          %969 = vst.msk [vmem:[#allocation2 + $0x1b4] sm:$0xf] %vm667, %v873
          %970 = vst.msk [vmem:[#allocation2 + $0x1b8] sm:$0xf] %vm667, %v874
          %971 = vst.msk [vmem:[#allocation2 + $0x1bc] sm:$0xf] %vm667, %v875
          %972 = vst.msk [vmem:[#allocation2 + $0x1c0] sm:$0xf] %vm667, %v876
          %973 = vst.msk [vmem:[#allocation2 + $0x1c4] sm:$0xf] %vm667, %v877
          %974 = vst.msk [vmem:[#allocation2 + $0x1c8] sm:$0xf] %vm667, %v878
          %975 = vst.msk [vmem:[#allocation2 + $0x1cc] sm:$0xf] %vm667, %v879
          %976 = vst.msk [vmem:[#allocation2 + $0x1d0] sm:$0xf] %vm667, %v880
          %977 = vst.msk [vmem:[#allocation2 + $0x1d4] sm:$0xf] %vm667, %v881
          %978 = vst.msk [vmem:[#allocation2 + $0x1d8] sm:$0xf] %vm667, %v882
          %979 = vst.msk [vmem:[#allocation2 + $0x1dc] sm:$0xf] %vm667, %v883
          %980 = vst.msk [vmem:[#allocation2 + $0x1e0] sm:$0xf] %vm667, %v884
          %981 = vst.msk [vmem:[#allocation2 + $0x1e4] sm:$0xf] %vm667, %v885
          %982 = vst.msk [vmem:[#allocation2 + $0x1e8] sm:$0xf] %vm667, %v886
          %983 = vst.msk [vmem:[#allocation2 + $0x1ec] sm:$0xf] %vm667, %v887
          %984 = vst.msk [vmem:[#allocation2 + $0x1f0] sm:$0xf] %vm667, %v888
          %985 = vst.msk [vmem:[#allocation2 + $0x1f4] sm:$0xf] %vm667, %v889
          %986 = vst.msk [vmem:[#allocation2 + $0x1f8] sm:$0xf] %vm667, %v890
          %987 = vst.msk [vmem:[#allocation2 + $0x1fc] sm:$0xf] %vm667, %v891
          %988 = vst.msk [vmem:[#allocation2 + $0x200] sm:$0xf] %vm667, %v892
          %989 = vst.msk [vmem:[#allocation2 + $0x204] sm:$0xf] %vm667, %v893
          %990 = vst.msk [vmem:[#allocation2 + $0x208] sm:$0xf] %vm667, %v894
          %991 = vst.msk [vmem:[#allocation2 + $0x20c] sm:$0xf] %vm667, %v895
          %992 = vst.msk [vmem:[#allocation2 + $0x210] sm:$0xf] %vm667, %v896
          %993 = vst.msk [vmem:[#allocation2 + $0x214] sm:$0xf] %vm667, %v897
          %994 = vst.msk [vmem:[#allocation2 + $0x218] sm:$0xf] %vm667, %v898
          %995 = vst.msk [vmem:[#allocation2 + $0x21c] sm:$0xf] %vm667, %v899
          %v996 = vld [vmem:[%s2] sm:$0xff]
          %v997 = vld [vmem:[%s2 + $0x8] sm:$0xff]
          %v998 = vld [vmem:[%s2 + $0x10] sm:$0xff]
          %v999 = vld [vmem:[%s2 + $0x18] sm:$0xff]
          %v1000 = vld [vmem:[%s2 + $0x20] sm:$0xff]
          %v1001 = vld [vmem:[%s2 + $0x28] sm:$0xff]
          %v1002 = vld [vmem:[%s2 + $0x30] sm:$0xff]
          %v1003 = vld [vmem:[%s2 + $0x38] sm:$0xff]
          %v1004 = vld [vmem:[%s2 + $0x40] sm:$0xff]
          %v1005 = vld [vmem:[%s2 + $0x48] sm:$0xff]
          %v1006 = vld [vmem:[%s2 + $0x50] sm:$0xff]
          %v1007 = vld [vmem:[%s2 + $0x58] sm:$0xff]
          %v1008 = vld [vmem:[%s2 + $0x60] sm:$0xff]
          %v1009 = vld [vmem:[%s2 + $0x68] sm:$0xff]
          %v1010 = vld [vmem:[%s2 + $0x70] sm:$0xff]
          %v1011 = vld [vmem:[%s2 + $0x78] sm:$0xff]
          %v1012 = vld [vmem:[%s2 + $0x80] sm:$0xff]
          %v1013 = vld [vmem:[%s2 + $0x88] sm:$0xff]
          %v1014 = vld [vmem:[%s2 + $0x90] sm:$0xff]
          %v1015 = vld [vmem:[%s2 + $0x98] sm:$0xff]
          %v1016 = vld [vmem:[%s2 + $0xa0] sm:$0xff]
          %v1017 = vld [vmem:[%s2 + $0xa8] sm:$0xff]
          %v1018 = vld [vmem:[%s2 + $0xb0] sm:$0xff]
          %v1019 = vld [vmem:[%s2 + $0xb8] sm:$0xff]
          %v1020 = vld [vmem:[%s2 + $0xc0] sm:$0xff]
          %v1021 = vld [vmem:[%s2 + $0xc8] sm:$0xff]
          %v1022 = vld [vmem:[%s2 + $0xd0] sm:$0xff]
          %v1023 = vld [vmem:[%s2 + $0xd8] sm:$0xff]
          %v1024 = vld [vmem:[%s2 + $0xe0] sm:$0xff]
          %v1025 = vld [vmem:[%s2 + $0xe8] sm:$0xff]
          %v1026 = vld [vmem:[%s2 + $0xf0] sm:$0xff]
          %v1027 = vld [vmem:[%s2 + $0xf8] sm:$0xff]
          %v1028 = vld [vmem:[%s2 + $0x100] sm:$0xff]
          %v1029 = vld [vmem:[%s2 + $0x108] sm:$0xff]
          %v1030 = vld [vmem:[%s2 + $0x110] sm:$0xff]
          %v1031 = vld [vmem:[%s2 + $0x118] sm:$0xff]
          %v1032 = vld [vmem:[%s2 + $0x120] sm:$0xff]
          %v1033 = vld [vmem:[%s2 + $0x128] sm:$0xff]
          %v1034 = vld [vmem:[%s2 + $0x130] sm:$0xff]
          %v1035 = vld [vmem:[%s2 + $0x138] sm:$0xff]
          %v1036 = vld [vmem:[%s2 + $0x140] sm:$0xff]
          %v1037 = vld [vmem:[%s2 + $0x148] sm:$0xff]
          %v1038 = vld [vmem:[%s2 + $0x150] sm:$0xff]
          %v1039 = vld [vmem:[%s2 + $0x158] sm:$0xff]
          %v1040 = vld [vmem:[%s2 + $0x160] sm:$0xff]
          %v1041 = vld [vmem:[%s2 + $0x168] sm:$0xff]
          %v1042 = vld [vmem:[%s2 + $0x170] sm:$0xff]
          %v1043 = vld [vmem:[%s2 + $0x178] sm:$0xff]
          %v1044 = vld [vmem:[%s2 + $0x180] sm:$0xff]
          %v1045 = vld [vmem:[%s2 + $0x188] sm:$0xff]
          %v1046 = vld [vmem:[%s2 + $0x190] sm:$0xff]
          %v1047 = vld [vmem:[%s2 + $0x198] sm:$0xff]
          %v1048 = vld [vmem:[%s2 + $0x1a0] sm:$0xff]
          %v1049 = vld [vmem:[%s2 + $0x1a8] sm:$0xff]
          %v1050 = vld [vmem:[%s2 + $0x1b0] sm:$0xff]
          %v1051 = vld [vmem:[%s2 + $0x1b8] sm:$0xff]
          %v1052 = vld [vmem:[%s2 + $0x1c0] sm:$0xff]
          %v1053 = vld [vmem:[%s2 + $0x1c8] sm:$0xff]
          %v1054 = vld [vmem:[%s2 + $0x1d0] sm:$0xff]
          %v1055 = vld [vmem:[%s2 + $0x1d8] sm:$0xff]
          %v1056 = vld [vmem:[%s2 + $0x1e0] sm:$0xff]
          %v1057 = vld [vmem:[%s2 + $0x1e8] sm:$0xff]
          %v1058 = vld [vmem:[%s2 + $0x1f0] sm:$0xff]
          %v1059 = vld [vmem:[%s2 + $0x1f8] sm:$0xff]
          %v1060 = vld [vmem:[%s2 + $0x200] sm:$0xff]
          %v1061 = vld [vmem:[%s2 + $0x208] sm:$0xff]
          %v1062 = vld [vmem:[%s2 + $0x210] sm:$0xff]
          %v1063 = vld [vmem:[%s2 + $0x218] sm:$0xff]
          %v1064 = vld [vmem:[%s2 + $0x220] sm:$0xff]
          %v1065 = vld [vmem:[%s2 + $0x228] sm:$0xff]
          %v1066 = vld [vmem:[%s2 + $0x230] sm:$0xff]
          %v1067 = vld [vmem:[%s2 + $0x238] sm:$0xff]
          %v1068 = vld [vmem:[%s2 + $0x240] sm:$0xff]
          %v1069 = vld [vmem:[%s2 + $0x248] sm:$0xff]
          %v1070 = vld [vmem:[%s2 + $0x250] sm:$0xff]
          %v1071 = vld [vmem:[%s2 + $0x258] sm:$0xff]
          %v1072 = vld [vmem:[%s2 + $0x260] sm:$0xff]
          %v1073 = vld [vmem:[%s2 + $0x268] sm:$0xff]
          %v1074 = vld [vmem:[%s2 + $0x270] sm:$0xff]
          %v1075 = vld [vmem:[%s2 + $0x278] sm:$0xff]
          %v1076 = vld [vmem:[%s2 + $0x280] sm:$0xff]
          %v1077 = vld [vmem:[%s2 + $0x288] sm:$0xff]
          %v1078 = vld [vmem:[%s2 + $0x290] sm:$0xff]
          %v1079 = vld [vmem:[%s2 + $0x298] sm:$0xff]
          %v1080 = vld [vmem:[%s2 + $0x2a0] sm:$0xff]
          %v1081 = vld [vmem:[%s2 + $0x2a8] sm:$0xff]
          %v1082 = vld [vmem:[%s2 + $0x2b0] sm:$0xff]
          %v1083 = vld [vmem:[%s2 + $0x2b8] sm:$0xff]
          %v1084 = vld [vmem:[%s2 + $0x2c0] sm:$0xff]
          %v1085 = vld [vmem:[%s2 + $0x2c8] sm:$0xff]
          %v1086 = vld [vmem:[%s2 + $0x2d0] sm:$0xff]
          %v1087 = vld [vmem:[%s2 + $0x2d8] sm:$0xff]
          %v1088 = vld [vmem:[%s2 + $0x2e0] sm:$0xff]
          %v1089 = vld [vmem:[%s2 + $0x2e8] sm:$0xff]
          %v1090 = vld [vmem:[%s2 + $0x2f0] sm:$0xff]
          %v1091 = vld [vmem:[%s2 + $0x2f8] sm:$0xff]
          %v1092 = vpack.c.bf16 %v996, %v996
          %v1093 = vpack.c.bf16 %v997, %v997
          %v1094 = vpack.c.bf16 %v998, %v998
          %v1095 = vpack.c.bf16 %v999, %v999
          %v1096 = vpack.c.bf16 %v1000, %v1000
          %v1097 = vpack.c.bf16 %v1001, %v1001
          %v1098 = vpack.c.bf16 %v1002, %v1002
          %v1099 = vpack.c.bf16 %v1003, %v1003
          %v1100 = vpack.c.bf16 %v1004, %v1004
          %v1101 = vpack.c.bf16 %v1005, %v1005
          %v1102 = vpack.c.bf16 %v1006, %v1006
          %v1103 = vpack.c.bf16 %v1007, %v1007
          %v1104 = vpack.c.bf16 %v1008, %v1008
          %v1105 = vpack.c.bf16 %v1009, %v1009
          %v1106 = vpack.c.bf16 %v1010, %v1010
          %v1107 = vpack.c.bf16 %v1011, %v1011
          %v1108 = vpack.c.bf16 %v1012, %v1012
          %v1109 = vpack.c.bf16 %v1013, %v1013
          %v1110 = vpack.c.bf16 %v1014, %v1014
          %v1111 = vpack.c.bf16 %v1015, %v1015
          %v1112 = vpack.c.bf16 %v1016, %v1016
          %v1113 = vpack.c.bf16 %v1017, %v1017
          %v1114 = vpack.c.bf16 %v1018, %v1018
          %v1115 = vpack.c.bf16 %v1019, %v1019
          %v1116 = vpack.c.bf16 %v1020, %v1020
          %v1117 = vpack.c.bf16 %v1021, %v1021
          %v1118 = vpack.c.bf16 %v1022, %v1022
          %v1119 = vpack.c.bf16 %v1023, %v1023
          %v1120 = vpack.c.bf16 %v1024, %v1024
          %v1121 = vpack.c.bf16 %v1025, %v1025
          %v1122 = vpack.c.bf16 %v1026, %v1026
          %v1123 = vpack.c.bf16 %v1027, %v1027
          %v1124 = vpack.c.bf16 %v1028, %v1028
          %v1125 = vpack.c.bf16 %v1029, %v1029
          %v1126 = vpack.c.bf16 %v1030, %v1030
          %v1127 = vpack.c.bf16 %v1031, %v1031
          %v1128 = vpack.c.bf16 %v1032, %v1032
          %v1129 = vpack.c.bf16 %v1033, %v1033
          %v1130 = vpack.c.bf16 %v1034, %v1034
          %v1131 = vpack.c.bf16 %v1035, %v1035
          %v1132 = vpack.c.bf16 %v1036, %v1036
          %v1133 = vpack.c.bf16 %v1037, %v1037
          %v1134 = vpack.c.bf16 %v1038, %v1038
          %v1135 = vpack.c.bf16 %v1039, %v1039
          %v1136 = vpack.c.bf16 %v1040, %v1040
          %v1137 = vpack.c.bf16 %v1041, %v1041
          %v1138 = vpack.c.bf16 %v1042, %v1042
          %v1139 = vpack.c.bf16 %v1043, %v1043
          %v1140 = vpack.c.bf16 %v1044, %v1044
          %v1141 = vpack.c.bf16 %v1045, %v1045
          %v1142 = vpack.c.bf16 %v1046, %v1046
          %v1143 = vpack.c.bf16 %v1047, %v1047
          %v1144 = vpack.c.bf16 %v1048, %v1048
          %v1145 = vpack.c.bf16 %v1049, %v1049
          %v1146 = vpack.c.bf16 %v1050, %v1050
          %v1147 = vpack.c.bf16 %v1051, %v1051
          %v1148 = vpack.c.bf16 %v1052, %v1052
          %v1149 = vpack.c.bf16 %v1053, %v1053
          %v1150 = vpack.c.bf16 %v1054, %v1054
          %v1151 = vpack.c.bf16 %v1055, %v1055
          %v1152 = vpack.c.bf16 %v1056, %v1056
          %v1153 = vpack.c.bf16 %v1057, %v1057
          %v1154 = vpack.c.bf16 %v1058, %v1058
          %v1155 = vpack.c.bf16 %v1059, %v1059
          %v1156 = vpack.c.bf16 %v1060, %v1060
          %v1157 = vpack.c.bf16 %v1061, %v1061
          %v1158 = vpack.c.bf16 %v1062, %v1062
          %v1159 = vpack.c.bf16 %v1063, %v1063
          %v1160 = vpack.c.bf16 %v1064, %v1064
          %v1161 = vpack.c.bf16 %v1065, %v1065
          %v1162 = vpack.c.bf16 %v1066, %v1066
          %v1163 = vpack.c.bf16 %v1067, %v1067
          %v1164 = vpack.c.bf16 %v1068, %v1068
          %v1165 = vpack.c.bf16 %v1069, %v1069
          %v1166 = vpack.c.bf16 %v1070, %v1070
          %v1167 = vpack.c.bf16 %v1071, %v1071
          %v1168 = vpack.c.bf16 %v1072, %v1072
          %v1169 = vpack.c.bf16 %v1073, %v1073
          %v1170 = vpack.c.bf16 %v1074, %v1074
          %v1171 = vpack.c.bf16 %v1075, %v1075
          %v1172 = vpack.c.bf16 %v1076, %v1076
          %v1173 = vpack.c.bf16 %v1077, %v1077
          %v1174 = vpack.c.bf16 %v1078, %v1078
          %v1175 = vpack.c.bf16 %v1079, %v1079
          %v1176 = vpack.c.bf16 %v1080, %v1080
          %v1177 = vpack.c.bf16 %v1081, %v1081
          %v1178 = vpack.c.bf16 %v1082, %v1082
          %v1179 = vpack.c.bf16 %v1083, %v1083
          %v1180 = vpack.c.bf16 %v1084, %v1084
          %v1181 = vpack.c.bf16 %v1085, %v1085
          %v1182 = vpack.c.bf16 %v1086, %v1086
          %v1183 = vpack.c.bf16 %v1087, %v1087
          %v1184 = vpack.c.bf16 %v1088, %v1088
          %v1185 = vpack.c.bf16 %v1089, %v1089
          %v1186 = vpack.c.bf16 %v1090, %v1090
          %v1187 = vpack.c.bf16 %v1091, %v1091
          %1188 = vst.msk [vmem:[#allocation2 + $0x220] sm:$0xf] %vm667, %v1092
          %1189 = vst.msk [vmem:[#allocation2 + $0x224] sm:$0xf] %vm667, %v1093
          %1190 = vst.msk [vmem:[#allocation2 + $0x228] sm:$0xf] %vm667, %v1094
          %1191 = vst.msk [vmem:[#allocation2 + $0x22c] sm:$0xf] %vm667, %v1095
          %1192 = vst.msk [vmem:[#allocation2 + $0x230] sm:$0xf] %vm667, %v1096
          %1193 = vst.msk [vmem:[#allocation2 + $0x234] sm:$0xf] %vm667, %v1097
          %1194 = vst.msk [vmem:[#allocation2 + $0x238] sm:$0xf] %vm667, %v1098
          %1195 = vst.msk [vmem:[#allocation2 + $0x23c] sm:$0xf] %vm667, %v1099
          %1196 = vst.msk [vmem:[#allocation2 + $0x240] sm:$0xf] %vm667, %v1100
          %1197 = vst.msk [vmem:[#allocation2 + $0x244] sm:$0xf] %vm667, %v1101
          %1198 = vst.msk [vmem:[#allocation2 + $0x248] sm:$0xf] %vm667, %v1102
          %1199 = vst.msk [vmem:[#allocation2 + $0x24c] sm:$0xf] %vm667, %v1103
          %1200 = vst.msk [vmem:[#allocation2 + $0x250] sm:$0xf] %vm667, %v1104
          %1201 = vst.msk [vmem:[#allocation2 + $0x254] sm:$0xf] %vm667, %v1105
          %1202 = vst.msk [vmem:[#allocation2 + $0x258] sm:$0xf] %vm667, %v1106
          %1203 = vst.msk [vmem:[#allocation2 + $0x25c] sm:$0xf] %vm667, %v1107
          %1204 = vst.msk [vmem:[#allocation2 + $0x260] sm:$0xf] %vm667, %v1108
          %1205 = vst.msk [vmem:[#allocation2 + $0x264] sm:$0xf] %vm667, %v1109
          %1206 = vst.msk [vmem:[#allocation2 + $0x268] sm:$0xf] %vm667, %v1110
          %1207 = vst.msk [vmem:[#allocation2 + $0x26c] sm:$0xf] %vm667, %v1111
          %1208 = vst.msk [vmem:[#allocation2 + $0x270] sm:$0xf] %vm667, %v1112
          %1209 = vst.msk [vmem:[#allocation2 + $0x274] sm:$0xf] %vm667, %v1113
          %1210 = vst.msk [vmem:[#allocation2 + $0x278] sm:$0xf] %vm667, %v1114
          %1211 = vst.msk [vmem:[#allocation2 + $0x27c] sm:$0xf] %vm667, %v1115
          %1212 = vst.msk [vmem:[#allocation2 + $0x280] sm:$0xf] %vm667, %v1116
          %1213 = vst.msk [vmem:[#allocation2 + $0x284] sm:$0xf] %vm667, %v1117
          %1214 = vst.msk [vmem:[#allocation2 + $0x288] sm:$0xf] %vm667, %v1118
          %1215 = vst.msk [vmem:[#allocation2 + $0x28c] sm:$0xf] %vm667, %v1119
          %1216 = vst.msk [vmem:[#allocation2 + $0x290] sm:$0xf] %vm667, %v1120
          %1217 = vst.msk [vmem:[#allocation2 + $0x294] sm:$0xf] %vm667, %v1121
          %1218 = vst.msk [vmem:[#allocation2 + $0x298] sm:$0xf] %vm667, %v1122
          %1219 = vst.msk [vmem:[#allocation2 + $0x29c] sm:$0xf] %vm667, %v1123
          %1220 = vst.msk [vmem:[#allocation2 + $0x2a0] sm:$0xf] %vm667, %v1124
          %1221 = vst.msk [vmem:[#allocation2 + $0x2a4] sm:$0xf] %vm667, %v1125
          %1222 = vst.msk [vmem:[#allocation2 + $0x2a8] sm:$0xf] %vm667, %v1126
          %1223 = vst.msk [vmem:[#allocation2 + $0x2ac] sm:$0xf] %vm667, %v1127
          %1224 = vst.msk [vmem:[#allocation2 + $0x2b0] sm:$0xf] %vm667, %v1128
          %1225 = vst.msk [vmem:[#allocation2 + $0x2b4] sm:$0xf] %vm667, %v1129
          %1226 = vst.msk [vmem:[#allocation2 + $0x2b8] sm:$0xf] %vm667, %v1130
          %1227 = vst.msk [vmem:[#allocation2 + $0x2bc] sm:$0xf] %vm667, %v1131
          %1228 = vst.msk [vmem:[#allocation2 + $0x2c0] sm:$0xf] %vm667, %v1132
          %1229 = vst.msk [vmem:[#allocation2 + $0x2c4] sm:$0xf] %vm667, %v1133
          %1230 = vst.msk [vmem:[#allocation2 + $0x2c8] sm:$0xf] %vm667, %v1134
          %1231 = vst.msk [vmem:[#allocation2 + $0x2cc] sm:$0xf] %vm667, %v1135
          %1232 = vst.msk [vmem:[#allocation2 + $0x2d0] sm:$0xf] %vm667, %v1136
          %1233 = vst.msk [vmem:[#allocation2 + $0x2d4] sm:$0xf] %vm667, %v1137
          %1234 = vst.msk [vmem:[#allocation2 + $0x2d8] sm:$0xf] %vm667, %v1138
          %1235 = vst.msk [vmem:[#allocation2 + $0x2dc] sm:$0xf] %vm667, %v1139
          %1236 = vst.msk [vmem:[#allocation2 + $0x2e0] sm:$0xf] %vm667, %v1140
          %1237 = vst.msk [vmem:[#allocation2 + $0x2e4] sm:$0xf] %vm667, %v1141
          %1238 = vst.msk [vmem:[#allocation2 + $0x2e8] sm:$0xf] %vm667, %v1142
          %1239 = vst.msk [vmem:[#allocation2 + $0x2ec] sm:$0xf] %vm667, %v1143
          %1240 = vst.msk [vmem:[#allocation2 + $0x2f0] sm:$0xf] %vm667, %v1144
          %1241 = vst.msk [vmem:[#allocation2 + $0x2f4] sm:$0xf] %vm667, %v1145
          %1242 = vst.msk [vmem:[#allocation2 + $0x2f8] sm:$0xf] %vm667, %v1146
          %1243 = vst.msk [vmem:[#allocation2 + $0x2fc] sm:$0xf] %vm667, %v1147
          %1244 = vst.msk [vmem:[#allocation2 + $0x300] sm:$0xf] %vm667, %v1148
          %1245 = vst.msk [vmem:[#allocation2 + $0x304] sm:$0xf] %vm667, %v1149
          %1246 = vst.msk [vmem:[#allocation2 + $0x308] sm:$0xf] %vm667, %v1150
          %1247 = vst.msk [vmem:[#allocation2 + $0x30c] sm:$0xf] %vm667, %v1151
          %1248 = vst.msk [vmem:[#allocation2 + $0x310] sm:$0xf] %vm667, %v1152
          %1249 = vst.msk [vmem:[#allocation2 + $0x314] sm:$0xf] %vm667, %v1153
          %1250 = vst.msk [vmem:[#allocation2 + $0x318] sm:$0xf] %vm667, %v1154
          %1251 = vst.msk [vmem:[#allocation2 + $0x31c] sm:$0xf] %vm667, %v1155
          %1252 = vst.msk [vmem:[#allocation2 + $0x320] sm:$0xf] %vm667, %v1156
          %1253 = vst.msk [vmem:[#allocation2 + $0x324] sm:$0xf] %vm667, %v1157
          %1254 = vst.msk [vmem:[#allocation2 + $0x328] sm:$0xf] %vm667, %v1158
          %1255 = vst.msk [vmem:[#allocation2 + $0x32c] sm:$0xf] %vm667, %v1159
          %1256 = vst.msk [vmem:[#allocation2 + $0x330] sm:$0xf] %vm667, %v1160
          %1257 = vst.msk [vmem:[#allocation2 + $0x334] sm:$0xf] %vm667, %v1161
          %1258 = vst.msk [vmem:[#allocation2 + $0x338] sm:$0xf] %vm667, %v1162
          %1259 = vst.msk [vmem:[#allocation2 + $0x33c] sm:$0xf] %vm667, %v1163
          %1260 = vst.msk [vmem:[#allocation2 + $0x340] sm:$0xf] %vm667, %v1164
          %1261 = vst.msk [vmem:[#allocation2 + $0x344] sm:$0xf] %vm667, %v1165
          %1262 = vst.msk [vmem:[#allocation2 + $0x348] sm:$0xf] %vm667, %v1166
          %1263 = vst.msk [vmem:[#allocation2 + $0x34c] sm:$0xf] %vm667, %v1167
          %1264 = vst.msk [vmem:[#allocation2 + $0x350] sm:$0xf] %vm667, %v1168
          %1265 = vst.msk [vmem:[#allocation2 + $0x354] sm:$0xf] %vm667, %v1169
          %1266 = vst.msk [vmem:[#allocation2 + $0x358] sm:$0xf] %vm667, %v1170
          %1267 = vst.msk [vmem:[#allocation2 + $0x35c] sm:$0xf] %vm667, %v1171
          %1268 = vst.msk [vmem:[#allocation2 + $0x360] sm:$0xf] %vm667, %v1172
          %1269 = vst.msk [vmem:[#allocation2 + $0x364] sm:$0xf] %vm667, %v1173
          %1270 = vst.msk [vmem:[#allocation2 + $0x368] sm:$0xf] %vm667, %v1174
          %1271 = vst.msk [vmem:[#allocation2 + $0x36c] sm:$0xf] %vm667, %v1175
          %1272 = vst.msk [vmem:[#allocation2 + $0x370] sm:$0xf] %vm667, %v1176
          %1273 = vst.msk [vmem:[#allocation2 + $0x374] sm:$0xf] %vm667, %v1177
          %1274 = vst.msk [vmem:[#allocation2 + $0x378] sm:$0xf] %vm667, %v1178
          %1275 = vst.msk [vmem:[#allocation2 + $0x37c] sm:$0xf] %vm667, %v1179
          %1276 = vst.msk [vmem:[#allocation2 + $0x380] sm:$0xf] %vm667, %v1180
          %1277 = vst.msk [vmem:[#allocation2 + $0x384] sm:$0xf] %vm667, %v1181
          %1278 = vst.msk [vmem:[#allocation2 + $0x388] sm:$0xf] %vm667, %v1182
          %1279 = vst.msk [vmem:[#allocation2 + $0x38c] sm:$0xf] %vm667, %v1183
          %1280 = vst.msk [vmem:[#allocation2 + $0x390] sm:$0xf] %vm667, %v1184
          %1281 = vst.msk [vmem:[#allocation2 + $0x394] sm:$0xf] %vm667, %v1185
          %1282 = vst.msk [vmem:[#allocation2 + $0x398] sm:$0xf] %vm667, %v1186
          %1283 = vst.msk [vmem:[#allocation2 + $0x39c] sm:$0xf] %vm667, %v1187
          %v1284 = vld [vmem:[%s3] sm:$0xff]
          %v1285 = vld [vmem:[%s3 + $0x8] sm:$0xff]
          %v1286 = vld [vmem:[%s3 + $0x10] sm:$0xff]
          %v1287 = vld [vmem:[%s3 + $0x18] sm:$0xff]
          %v1288 = vld [vmem:[%s3 + $0x20] sm:$0xff]
          %v1289 = vld [vmem:[%s3 + $0x28] sm:$0xff]
          %v1290 = vld [vmem:[%s3 + $0x30] sm:$0xff]
          %v1291 = vld [vmem:[%s3 + $0x38] sm:$0xff]
          %v1292 = vld [vmem:[%s3 + $0x40] sm:$0xff]
          %v1293 = vld [vmem:[%s3 + $0x48] sm:$0xff]
          %v1294 = vld [vmem:[%s3 + $0x50] sm:$0xff]
          %v1295 = vld [vmem:[%s3 + $0x58] sm:$0xff]
          %v1296 = vld [vmem:[%s3 + $0x60] sm:$0xff]
          %v1297 = vld [vmem:[%s3 + $0x68] sm:$0xff]
          %v1298 = vld [vmem:[%s3 + $0x70] sm:$0xff]
          %v1299 = vld [vmem:[%s3 + $0x78] sm:$0xff]
          %v1300 = vld [vmem:[%s3 + $0x80] sm:$0xff]
          %v1301 = vld [vmem:[%s3 + $0x88] sm:$0xff]
          %v1302 = vld [vmem:[%s3 + $0x90] sm:$0xff]
          %v1303 = vld [vmem:[%s3 + $0x98] sm:$0xff]
          %v1304 = vld [vmem:[%s3 + $0xa0] sm:$0xff]
          %v1305 = vld [vmem:[%s3 + $0xa8] sm:$0xff]
          %v1306 = vld [vmem:[%s3 + $0xb0] sm:$0xff]
          %v1307 = vld [vmem:[%s3 + $0xb8] sm:$0xff]
          %v1308 = vpack.c.bf16 %v1284, %v1284
          %v1309 = vpack.c.bf16 %v1285, %v1285
          %v1310 = vpack.c.bf16 %v1286, %v1286
          %v1311 = vpack.c.bf16 %v1287, %v1287
          %v1312 = vpack.c.bf16 %v1288, %v1288
          %v1313 = vpack.c.bf16 %v1289, %v1289
          %v1314 = vpack.c.bf16 %v1290, %v1290
          %v1315 = vpack.c.bf16 %v1291, %v1291
          %v1316 = vpack.c.bf16 %v1292, %v1292
          %v1317 = vpack.c.bf16 %v1293, %v1293
          %v1318 = vpack.c.bf16 %v1294, %v1294
          %v1319 = vpack.c.bf16 %v1295, %v1295
          %v1320 = vpack.c.bf16 %v1296, %v1296
          %v1321 = vpack.c.bf16 %v1297, %v1297
          %v1322 = vpack.c.bf16 %v1298, %v1298
          %v1323 = vpack.c.bf16 %v1299, %v1299
          %v1324 = vpack.c.bf16 %v1300, %v1300
          %v1325 = vpack.c.bf16 %v1301, %v1301
          %v1326 = vpack.c.bf16 %v1302, %v1302
          %v1327 = vpack.c.bf16 %v1303, %v1303
          %v1328 = vpack.c.bf16 %v1304, %v1304
          %v1329 = vpack.c.bf16 %v1305, %v1305
          %v1330 = vpack.c.bf16 %v1306, %v1306
          %v1331 = vpack.c.bf16 %v1307, %v1307
          %1332 = vst.msk [vmem:[#allocation2 + $0x3a0] sm:$0xf] %vm667, %v1308
          %1333 = vst.msk [vmem:[#allocation2 + $0x3a4] sm:$0xf] %vm667, %v1309
          %1334 = vst.msk [vmem:[#allocation2 + $0x3a8] sm:$0xf] %vm667, %v1310
          %1335 = vst.msk [vmem:[#allocation2 + $0x3ac] sm:$0xf] %vm667, %v1311
          %1336 = vst.msk [vmem:[#allocation2 + $0x3b0] sm:$0xf] %vm667, %v1312
          %1337 = vst.msk [vmem:[#allocation2 + $0x3b4] sm:$0xf] %vm667, %v1313
          %1338 = vst.msk [vmem:[#allocation2 + $0x3b8] sm:$0xf] %vm667, %v1314
          %1339 = vst.msk [vmem:[#allocation2 + $0x3bc] sm:$0xf] %vm667, %v1315
          %1340 = vst.msk [vmem:[#allocation2 + $0x3c0] sm:$0xf] %vm667, %v1316
          %1341 = vst.msk [vmem:[#allocation2 + $0x3c4] sm:$0xf] %vm667, %v1317
          %1342 = vst.msk [vmem:[#allocation2 + $0x3c8] sm:$0xf] %vm667, %v1318
          %1343 = vst.msk [vmem:[#allocation2 + $0x3cc] sm:$0xf] %vm667, %v1319
          %1344 = vst.msk [vmem:[#allocation2 + $0x3d0] sm:$0xf] %vm667, %v1320
          %1345 = vst.msk [vmem:[#allocation2 + $0x3d4] sm:$0xf] %vm667, %v1321
          %1346 = vst.msk [vmem:[#allocation2 + $0x3d8] sm:$0xf] %vm667, %v1322
          %1347 = vst.msk [vmem:[#allocation2 + $0x3dc] sm:$0xf] %vm667, %v1323
          %1348 = vst.msk [vmem:[#allocation2 + $0x3e0] sm:$0xf] %vm667, %v1324
          %1349 = vst.msk [vmem:[#allocation2 + $0x3e4] sm:$0xf] %vm667, %v1325
          %1350 = vst.msk [vmem:[#allocation2 + $0x3e8] sm:$0xf] %vm667, %v1326
          %1351 = vst.msk [vmem:[#allocation2 + $0x3ec] sm:$0xf] %vm667, %v1327
          %1352 = vst.msk [vmem:[#allocation2 + $0x3f0] sm:$0xf] %vm667, %v1328
          %1353 = vst.msk [vmem:[#allocation2 + $0x3f4] sm:$0xf] %vm667, %v1329
          %1354 = vst.msk [vmem:[#allocation2 + $0x3f8] sm:$0xf] %vm667, %v1330
          %1355 = vst.msk [vmem:[#allocation2 + $0x3fc] sm:$0xf] %vm667, %v1331
          %vm1356 = vcmask 203776
          %1357 = vst.msk [vmem:[%s581] sm:$0xff] %vm1356, 0.0
          %1358 = vst.msk [vmem:[%s581 + $0x8] sm:$0xff] %vm1356, 0.0
          %1359 = vst.msk [vmem:[%s581 + $0x10] sm:$0xff] %vm1356, 0.0
          %1360 = vst.msk [vmem:[%s581 + $0x18] sm:$0xff] %vm1356, 0.0
          %1361 = vst.msk [vmem:[%s581 + $0x20] sm:$0xff] %vm1356, 0.0
          %1362 = vst.msk [vmem:[%s581 + $0x28] sm:$0xff] %vm1356, 0.0
          %1363 = vst.msk [vmem:[%s581 + $0x30] sm:$0xff] %vm1356, 0.0
          %1364 = vst.msk [vmem:[%s581 + $0x38] sm:$0xff] %vm1356, 0.0
          %1365 = vst.msk [vmem:[%s581 + $0x40] sm:$0xff] %vm1356, 0.0
          %1366 = vst.msk [vmem:[%s581 + $0x48] sm:$0xff] %vm1356, 0.0
          %1367 = vst.msk [vmem:[%s581 + $0x50] sm:$0xff] %vm1356, 0.0
          %1368 = vst.msk [vmem:[%s581 + $0x58] sm:$0xff] %vm1356, 0.0
          %1369 = vst.msk [vmem:[%s581 + $0x60] sm:$0xff] %vm1356, 0.0
          %1370 = vst.msk [vmem:[%s581 + $0x68] sm:$0xff] %vm1356, 0.0
          %1371 = vst.msk [vmem:[%s581 + $0x70] sm:$0xff] %vm1356, 0.0
          %1372 = vst.msk [vmem:[%s581 + $0x78] sm:$0xff] %vm1356, 0.0
          %1373 = vst.msk [vmem:[%s581 + $0x80] sm:$0xff] %vm1356, 0.0
          %1374 = vst.msk [vmem:[%s581 + $0x88] sm:$0xff] %vm1356, 0.0
          %1375 = vst.msk [vmem:[%s581 + $0x90] sm:$0xff] %vm1356, 0.0
          %1376 = vst.msk [vmem:[%s581 + $0x98] sm:$0xff] %vm1356, 0.0
          %1377 = vst.msk [vmem:[%s581 + $0xa0] sm:$0xff] %vm1356, 0.0
          %1378 = vst.msk [vmem:[%s581 + $0xa8] sm:$0xff] %vm1356, 0.0
          %1379 = vst.msk [vmem:[%s581 + $0xb0] sm:$0xff] %vm1356, 0.0
          %1380 = vst.msk [vmem:[%s581 + $0xb8] sm:$0xff] %vm1356, 0.0
          %1381 = vst.msk [vmem:[%s581 + $0xc0] sm:$0xff] %vm1356, 0.0
          %1382 = vst.msk [vmem:[%s581 + $0xc8] sm:$0xff] %vm1356, 0.0
          %1383 = vst.msk [vmem:[%s581 + $0xd0] sm:$0xff] %vm1356, 0.0
          %1384 = vst.msk [vmem:[%s581 + $0xd8] sm:$0xff] %vm1356, 0.0
          %1385 = vst.msk [vmem:[%s581 + $0xe0] sm:$0xff] %vm1356, 0.0
          %1386 = vst.msk [vmem:[%s581 + $0xe8] sm:$0xff] %vm1356, 0.0
          %1387 = vst.msk [vmem:[%s581 + $0xf0] sm:$0xff] %vm1356, 0.0
          %1388 = vst.msk [vmem:[%s581 + $0xf8] sm:$0xff] %vm1356, 0.0
          %1389 = vst.msk [vmem:[%s581 + $0x100] sm:$0xff] %vm1356, 0.0
          %1390 = vst.msk [vmem:[%s581 + $0x108] sm:$0xff] %vm1356, 0.0
          %1391 = vst.msk [vmem:[%s581 + $0x110] sm:$0xff] %vm1356, 0.0
          %1392 = vst.msk [vmem:[%s581 + $0x118] sm:$0xff] %vm1356, 0.0
          %1393 = vst.msk [vmem:[%s581 + $0x120] sm:$0xff] %vm1356, 0.0
          %1394 = vst.msk [vmem:[%s581 + $0x128] sm:$0xff] %vm1356, 0.0
          %1395 = vst.msk [vmem:[%s581 + $0x130] sm:$0xff] %vm1356, 0.0
          %1396 = vst.msk [vmem:[%s581 + $0x138] sm:$0xff] %vm1356, 0.0
        $region67: #{tpu_custom_call.1} parent=58 // pred_fallthru
          _
        %s1397 = smul.u32 %s21, 1024
        %v1398 = vld [vmem:[%s581] sm:$0xff]
        %v1399 = vld [vmem:[%s581 + $0x8] sm:$0xff]
        %v1400 = vld [vmem:[%s581 + $0x10] sm:$0xff]
        %v1401 = vld [vmem:[%s581 + $0x18] sm:$0xff]
        %v1402 = vld [vmem:[%s581 + $0x20] sm:$0xff]
        %v1403 = vld [vmem:[%s581 + $0x28] sm:$0xff]
        %v1404 = vld [vmem:[%s581 + $0x30] sm:$0xff]
        %v1405 = vld [vmem:[%s581 + $0x38] sm:$0xff]
        %v1406 = vld [vmem:[%s581 + $0x40] sm:$0xff]
        %v1407 = vld [vmem:[%s581 + $0x48] sm:$0xff]
        %v1408 = vld [vmem:[%s581 + $0x50] sm:$0xff]
        %v1409 = vld [vmem:[%s581 + $0x58] sm:$0xff]
        %v1410 = vld [vmem:[%s581 + $0x60] sm:$0xff]
        %v1411 = vld [vmem:[%s581 + $0x68] sm:$0xff]
        %v1412 = vld [vmem:[%s581 + $0x70] sm:$0xff]
        %v1413 = vld [vmem:[%s581 + $0x78] sm:$0xff]
        %v1414 = vld [vmem:[%s581 + $0x80] sm:$0xff]
        %v1415 = vld [vmem:[%s581 + $0x88] sm:$0xff]
        %v1416 = vld [vmem:[%s581 + $0x90] sm:$0xff]
        %v1417 = vld [vmem:[%s581 + $0x98] sm:$0xff]
        %v1418 = vld [vmem:[%s581 + $0xa0] sm:$0xff]
        %v1419 = vld [vmem:[%s581 + $0xa8] sm:$0xff]
        %v1420 = vld [vmem:[%s581 + $0xb0] sm:$0xff]
        %v1421 = vld [vmem:[%s581 + $0xb8] sm:$0xff]
        %v1422 = vld [vmem:[%s581 + $0xc0] sm:$0xff]
        %v1423 = vld [vmem:[%s581 + $0xc8] sm:$0xff]
        %v1424 = vld [vmem:[%s581 + $0xd0] sm:$0xff]
        %v1425 = vld [vmem:[%s581 + $0xd8] sm:$0xff]
        %v1426 = vld [vmem:[%s581 + $0xe0] sm:$0xff]
        %v1427 = vld [vmem:[%s581 + $0xe8] sm:$0xff]
        %v1428 = vld [vmem:[%s581 + $0xf0] sm:$0xff]
        %v1429 = vld [vmem:[%s581 + $0xf8] sm:$0xff]
        %v1430 = vld [vmem:[%s581 + $0x100] sm:$0xff]
        %v1431 = vld [vmem:[%s581 + $0x108] sm:$0xff]
        %v1432 = vld [vmem:[%s581 + $0x110] sm:$0xff]
        %v1433 = vld [vmem:[%s581 + $0x118] sm:$0xff]
        %v1434 = vld [vmem:[%s581 + $0x120] sm:$0xff]
        %v1435 = vld [vmem:[%s581 + $0x128] sm:$0xff]
        %v1436 = vld [vmem:[%s581 + $0x130] sm:$0xff]
        %v1437 = vld [vmem:[%s581 + $0x138] sm:$0xff]
        %v1438 = vld [vmem:[%s550] sm:$0xff]
        %v1439 = vld [vmem:[%s550 + $0x8] sm:$0xff]
        %v1440 = vld [vmem:[%s550 + $0x10] sm:$0xff]
        %v1441 = vld [vmem:[%s550 + $0x18] sm:$0xff]
        %v1442 = vld [vmem:[%s550 + $0x20] sm:$0xff]
        %v1443 = vld [vmem:[%s550 + $0x28] sm:$0xff]
        %v1444 = vld [vmem:[%s550 + $0x30] sm:$0xff]
        %v1445 = vld [vmem:[%s550 + $0x38] sm:$0xff]
        %v1446 = vld [vmem:[%s550 + $0x40] sm:$0xff]
        %v1447 = vld [vmem:[%s550 + $0x48] sm:$0xff]
        %v1448 = vld [vmem:[%s550 + $0x50] sm:$0xff]
        %v1449 = vld [vmem:[%s550 + $0x58] sm:$0xff]
        %v1450 = vld [vmem:[%s550 + $0x60] sm:$0xff]
        %v1451 = vld [vmem:[%s550 + $0x68] sm:$0xff]
        %v1452 = vld [vmem:[%s550 + $0x70] sm:$0xff]
        %v1453 = vld [vmem:[%s550 + $0x78] sm:$0xff]
        %v1454 = vld [vmem:[%s550 + $0x80] sm:$0xff]
        %v1455 = vld [vmem:[%s550 + $0x88] sm:$0xff]
        %v1456 = vld [vmem:[%s550 + $0x90] sm:$0xff]
        %v1457 = vld [vmem:[%s550 + $0x98] sm:$0xff]
        %v1458 = vld [vmem:[%s550 + $0xa0] sm:$0xff]
        %v1459 = vld [vmem:[%s550 + $0xa8] sm:$0xff]
        %v1460 = vld [vmem:[%s550 + $0xb0] sm:$0xff]
        %v1461 = vld [vmem:[%s550 + $0xb8] sm:$0xff]
        %v1462 = vld [vmem:[%s550 + $0xc0] sm:$0xff]
        %v1463 = vld [vmem:[%s550 + $0xc8] sm:$0xff]
        %v1464 = vld [vmem:[%s550 + $0xd0] sm:$0xff]
        %v1465 = vld [vmem:[%s550 + $0xd8] sm:$0xff]
        %v1466 = vld [vmem:[%s550 + $0xe0] sm:$0xff]
        %v1467 = vld [vmem:[%s550 + $0xe8] sm:$0xff]
        %v1468 = vld [vmem:[%s550 + $0xf0] sm:$0xff]
        %v1469 = vld [vmem:[%s550 + $0xf8] sm:$0xff]
        %v1470 = vld [vmem:[%s550 + $0x100] sm:$0xff]
        %v1471 = vld [vmem:[%s550 + $0x108] sm:$0xff]
        %v1472 = vld [vmem:[%s550 + $0x110] sm:$0xff]
        %v1473 = vld [vmem:[%s550 + $0x118] sm:$0xff]
        %v1474 = vld [vmem:[%s550 + $0x120] sm:$0xff]
        %v1475 = vld [vmem:[%s550 + $0x128] sm:$0xff]
        %v1476 = vld [vmem:[%s550 + $0x130] sm:$0xff]
        %v1477 = vld [vmem:[%s550 + $0x138] sm:$0xff]
        %v1478 = vld [vmem:[%s550 + $0x140] sm:$0xff]
        %v1479 = vld [vmem:[%s550 + $0x148] sm:$0xff]
        %v1480 = vld [vmem:[%s550 + $0x150] sm:$0xff]
        %v1481 = vld [vmem:[%s550 + $0x158] sm:$0xff]
        %v1482 = vld [vmem:[%s550 + $0x160] sm:$0xff]
        %v1483 = vld [vmem:[%s550 + $0x168] sm:$0xff]
        %v1484 = vld [vmem:[%s550 + $0x170] sm:$0xff]
        %v1485 = vld [vmem:[%s550 + $0x178] sm:$0xff]
        %v1486 = vld [vmem:[%s550 + $0x180] sm:$0xff]
        %v1487 = vld [vmem:[%s550 + $0x188] sm:$0xff]
        %v1488 = vld [vmem:[%s550 + $0x190] sm:$0xff]
        %v1489 = vld [vmem:[%s550 + $0x198] sm:$0xff]
        %v1490 = vld [vmem:[%s550 + $0x1a0] sm:$0xff]
        %v1491 = vld [vmem:[%s550 + $0x1a8] sm:$0xff]
        %v1492 = vld [vmem:[%s550 + $0x1b0] sm:$0xff]
        %v1493 = vld [vmem:[%s550 + $0x1b8] sm:$0xff]
        %v1494 = vld [vmem:[%s550 + $0x1c0] sm:$0xff]
        %v1495 = vld [vmem:[%s550 + $0x1c8] sm:$0xff]
        %v1496 = vld [vmem:[%s550 + $0x1d0] sm:$0xff]
        %v1497 = vld [vmem:[%s550 + $0x1d8] sm:$0xff]
        %v1498 = vld [vmem:[%s550 + $0x1e0] sm:$0xff]
        %v1499 = vld [vmem:[%s550 + $0x1e8] sm:$0xff]
        %v1500 = vld [vmem:[%s550 + $0x1f0] sm:$0xff]
        %v1501 = vld [vmem:[%s550 + $0x1f8] sm:$0xff]
        %v1502 = vld [vmem:[%s550 + $0x200] sm:$0xff]
        %v1503 = vld [vmem:[%s550 + $0x208] sm:$0xff]
        %v1504 = vld [vmem:[%s550 + $0x210] sm:$0xff]
        %v1505 = vld [vmem:[%s550 + $0x218] sm:$0xff]
        %v1506 = vld [vmem:[%s550 + $0x220] sm:$0xff]
        %v1507 = vld [vmem:[%s550 + $0x228] sm:$0xff]
        %v1508 = vld [vmem:[%s550 + $0x230] sm:$0xff]
        %v1509 = vld [vmem:[%s550 + $0x238] sm:$0xff]
        %v1510 = vld [vmem:[%s550 + $0x240] sm:$0xff]
        %v1511 = vld [vmem:[%s550 + $0x248] sm:$0xff]
        %v1512 = vld [vmem:[%s550 + $0x250] sm:$0xff]
        %v1513 = vld [vmem:[%s550 + $0x258] sm:$0xff]
        %v1514 = vld [vmem:[%s550 + $0x260] sm:$0xff]
        %v1515 = vld [vmem:[%s550 + $0x268] sm:$0xff]
        %v1516 = vld [vmem:[%s550 + $0x270] sm:$0xff]
        %v1517 = vld [vmem:[%s550 + $0x278] sm:$0xff]
        %v1518 = vld [vmem:[%s550 + $0x280] sm:$0xff]
        %v1519 = vld [vmem:[%s550 + $0x288] sm:$0xff]
        %v1520 = vld [vmem:[%s550 + $0x290] sm:$0xff]
        %v1521 = vld [vmem:[%s550 + $0x298] sm:$0xff]
        %v1522 = vld [vmem:[%s550 + $0x2a0] sm:$0xff]
        %v1523 = vld [vmem:[%s550 + $0x2a8] sm:$0xff]
        %v1524 = vld [vmem:[%s550 + $0x2b0] sm:$0xff]
        %v1525 = vld [vmem:[%s550 + $0x2b8] sm:$0xff]
        %v1526 = vld [vmem:[%s550 + $0x2c0] sm:$0xff]
        %v1527 = vld [vmem:[%s550 + $0x2c8] sm:$0xff]
        %v1528 = vld [vmem:[%s550 + $0x2d0] sm:$0xff]
        %v1529 = vld [vmem:[%s550 + $0x2d8] sm:$0xff]
        %v1530 = vld [vmem:[%s550 + $0x2e0] sm:$0xff]
        %v1531 = vld [vmem:[%s550 + $0x2e8] sm:$0xff]
        %v1532 = vld [vmem:[%s550 + $0x2f0] sm:$0xff]
        %v1533 = vld [vmem:[%s550 + $0x2f8] sm:$0xff]
        %v1534 = vld [vmem:[%s550 + $0x300] sm:$0xff]
        %v1535 = vld [vmem:[%s550 + $0x308] sm:$0xff]
        %v1536 = vld [vmem:[%s550 + $0x310] sm:$0xff]
        %v1537 = vld [vmem:[%s550 + $0x318] sm:$0xff]
        %v1538 = vld [vmem:[%s550 + $0x320] sm:$0xff]
        %v1539 = vld [vmem:[%s550 + $0x328] sm:$0xff]
        %v1540 = vld [vmem:[%s550 + $0x330] sm:$0xff]
        %v1541 = vld [vmem:[%s550 + $0x338] sm:$0xff]
        %v1542 = vld [vmem:[%s550 + $0x340] sm:$0xff]
        %v1543 = vld [vmem:[%s550 + $0x348] sm:$0xff]
        %v1544 = vld [vmem:[%s550 + $0x350] sm:$0xff]
        %v1545 = vld [vmem:[%s550 + $0x358] sm:$0xff]
        %v1546 = vld [vmem:[%s550 + $0x360] sm:$0xff]
        %v1547 = vld [vmem:[%s550 + $0x368] sm:$0xff]
        %v1548 = vld [vmem:[%s550 + $0x370] sm:$0xff]
        %v1549 = vld [vmem:[%s550 + $0x378] sm:$0xff]
        %v1550 = vld [vmem:[%s550 + $0x380] sm:$0xff]
        %v1551 = vld [vmem:[%s550 + $0x388] sm:$0xff]
        %v1552 = vld [vmem:[%s550 + $0x390] sm:$0xff]
        %v1553 = vld [vmem:[%s550 + $0x398] sm:$0xff]
        %v1554 = vld [vmem:[%s550 + $0x3a0] sm:$0xff]
        %v1555 = vld [vmem:[%s550 + $0x3a8] sm:$0xff]
        %v1556 = vld [vmem:[%s550 + $0x3b0] sm:$0xff]
        %v1557 = vld [vmem:[%s550 + $0x3b8] sm:$0xff]
        %v1558 = vld [vmem:[%s550 + $0x3c0] sm:$0xff]
        %v1559 = vld [vmem:[%s550 + $0x3c8] sm:$0xff]
        %v1560 = vld [vmem:[%s550 + $0x3d0] sm:$0xff]
        %v1561 = vld [vmem:[%s550 + $0x3d8] sm:$0xff]
        %v1562 = vld [vmem:[%s550 + $0x3e0] sm:$0xff]
        %v1563 = vld [vmem:[%s550 + $0x3e8] sm:$0xff]
        %v1564 = vld [vmem:[%s550 + $0x3f0] sm:$0xff]
        %v1565 = vld [vmem:[%s550 + $0x3f8] sm:$0xff]
        %v1566 = vld [vmem:[%s550 + $0x400] sm:$0xff]
        %v1567 = vld [vmem:[%s550 + $0x408] sm:$0xff]
        %v1568 = vld [vmem:[%s550 + $0x410] sm:$0xff]
        %v1569 = vld [vmem:[%s550 + $0x418] sm:$0xff]
        %v1570 = vld [vmem:[%s550 + $0x420] sm:$0xff]
        %v1571 = vld [vmem:[%s550 + $0x428] sm:$0xff]
        %v1572 = vld [vmem:[%s550 + $0x430] sm:$0xff]
        %v1573 = vld [vmem:[%s550 + $0x438] sm:$0xff]
        %v1574 = vld [vmem:[%s550 + $0x440] sm:$0xff]
        %v1575 = vld [vmem:[%s550 + $0x448] sm:$0xff]
        %v1576 = vld [vmem:[%s550 + $0x450] sm:$0xff]
        %v1577 = vld [vmem:[%s550 + $0x458] sm:$0xff]
        %v1578 = vld [vmem:[%s550 + $0x460] sm:$0xff]
        %v1579 = vld [vmem:[%s550 + $0x468] sm:$0xff]
        %v1580 = vld [vmem:[%s550 + $0x470] sm:$0xff]
        %v1581 = vld [vmem:[%s550 + $0x478] sm:$0xff]
        %v1582 = vld [vmem:[%s550 + $0x480] sm:$0xff]
        %v1583 = vld [vmem:[%s550 + $0x488] sm:$0xff]
        %v1584 = vld [vmem:[%s550 + $0x490] sm:$0xff]
        %v1585 = vld [vmem:[%s550 + $0x498] sm:$0xff]
        %v1586 = vld [vmem:[%s550 + $0x4a0] sm:$0xff]
        %v1587 = vld [vmem:[%s550 + $0x4a8] sm:$0xff]
        %v1588 = vld [vmem:[%s550 + $0x4b0] sm:$0xff]
        %v1589 = vld [vmem:[%s550 + $0x4b8] sm:$0xff]
        %v1590 = vld [vmem:[%s550 + $0x4c0] sm:$0xff]
        %v1591 = vld [vmem:[%s550 + $0x4c8] sm:$0xff]
        %v1592 = vld [vmem:[%s550 + $0x4d0] sm:$0xff]
        %v1593 = vld [vmem:[%s550 + $0x4d8] sm:$0xff]
        %v1594 = vld [vmem:[%s550 + $0x4e0] sm:$0xff]
        %v1595 = vld [vmem:[%s550 + $0x4e8] sm:$0xff]
        %v1596 = vld [vmem:[%s550 + $0x4f0] sm:$0xff]
        %v1597 = vld [vmem:[%s550 + $0x4f8] sm:$0xff]
        %s1598 = sshra.s32 %s1397, 3
        %s1599 = sand.u32 %s1397, 7
        %s1600 = smul.addr %s1598, 4
        %s1601 = scalar_lea.vmem [#allocation2], %s1600
        %v1602 = vld [vmem:[%s1601] sm:$0xf]
        %v1603 = vld [vmem:[%s1601 + $0x4] sm:$0xf]
        %v1604 = vld [vmem:[%s1601 + $0x8] sm:$0xf]
        %v1605 = vld [vmem:[%s1601 + $0xc] sm:$0xf]
        %v1606 = vld [vmem:[%s1601 + $0x10] sm:$0xf]
        %v1607 = vld [vmem:[%s1601 + $0x14] sm:$0xf]
        %v1608 = vld [vmem:[%s1601 + $0x18] sm:$0xf]
        %v1609 = vld [vmem:[%s1601 + $0x1c] sm:$0xf]
        %v1610 = vld [vmem:[%s1601 + $0x20] sm:$0xf]
        %v1611 = vld [vmem:[%s1601 + $0x24] sm:$0xf]
        %v1612 = vld [vmem:[%s1601 + $0x28] sm:$0xf]
        %v1613 = vld [vmem:[%s1601 + $0x2c] sm:$0xf]
        %v1614 = vld [vmem:[%s1601 + $0x30] sm:$0xf]
        %v1615 = vld [vmem:[%s1601 + $0x34] sm:$0xf]
        %v1616 = vld [vmem:[%s1601 + $0x38] sm:$0xf]
        %v1617 = vld [vmem:[%s1601 + $0x3c] sm:$0xf]
        %v1618 = vld [vmem:[%s1601 + $0x40] sm:$0xf]
        %v1619 = vld [vmem:[%s1601 + $0x44] sm:$0xf]
        %v1620 = vld [vmem:[%s1601 + $0x48] sm:$0xf]
        %v1621 = vld [vmem:[%s1601 + $0x4c] sm:$0xf]
        %v1622 = vld [vmem:[%s1601 + $0x50] sm:$0xf]
        %v1623 = vld [vmem:[%s1601 + $0x54] sm:$0xf]
        %v1624 = vld [vmem:[%s1601 + $0x58] sm:$0xf]
        %v1625 = vld [vmem:[%s1601 + $0x5c] sm:$0xf]
        %v1626 = vld [vmem:[%s1601 + $0x60] sm:$0xf]
        %v1627 = vld [vmem:[%s1601 + $0x64] sm:$0xf]
        %v1628 = vld [vmem:[%s1601 + $0x68] sm:$0xf]
        %v1629 = vld [vmem:[%s1601 + $0x6c] sm:$0xf]
        %v1630 = vld [vmem:[%s1601 + $0x70] sm:$0xf]
        %v1631 = vld [vmem:[%s1601 + $0x74] sm:$0xf]
        %v1632 = vld [vmem:[%s1601 + $0x78] sm:$0xf]
        %v1633 = vld [vmem:[%s1601 + $0x7c] sm:$0xf]
        %v1634 = vld [vmem:[%s1601 + $0x80] sm:$0xf]
        %v1635 = vld [vmem:[%s1601 + $0x84] sm:$0xf]
        %v1636 = vld [vmem:[%s1601 + $0x88] sm:$0xf]
        %v1637 = vld [vmem:[%s1601 + $0x8c] sm:$0xf]
        %v1638 = vld [vmem:[%s1601 + $0x90] sm:$0xf]
        %v1639 = vld [vmem:[%s1601 + $0x94] sm:$0xf]
        %v1640 = vld [vmem:[%s1601 + $0x98] sm:$0xf]
        %v1641 = vld [vmem:[%s1601 + $0x9c] sm:$0xf]
        %v1642 = vld [vmem:[%s1601 + $0xa0] sm:$0xf]
        %v1643 = vld [vmem:[%s1601 + $0xa4] sm:$0xf]
        %v1644 = vld [vmem:[%s1601 + $0xa8] sm:$0xf]
        %v1645 = vld [vmem:[%s1601 + $0xac] sm:$0xf]
        %v1646 = vld [vmem:[%s1601 + $0xb0] sm:$0xf]
        %v1647 = vld [vmem:[%s1601 + $0xb4] sm:$0xf]
        %v1648 = vld [vmem:[%s1601 + $0xb8] sm:$0xf]
        %v1649 = vld [vmem:[%s1601 + $0xbc] sm:$0xf]
        %v1650 = vld [vmem:[%s1601 + $0xc0] sm:$0xf]
        %v1651 = vld [vmem:[%s1601 + $0xc4] sm:$0xf]
        %v1652 = vld [vmem:[%s1601 + $0xc8] sm:$0xf]
        %v1653 = vld [vmem:[%s1601 + $0xcc] sm:$0xf]
        %v1654 = vld [vmem:[%s1601 + $0xd0] sm:$0xf]
        %v1655 = vld [vmem:[%s1601 + $0xd4] sm:$0xf]
        %v1656 = vld [vmem:[%s1601 + $0xd8] sm:$0xf]
        %v1657 = vld [vmem:[%s1601 + $0xdc] sm:$0xf]
        %v1658 = vld [vmem:[%s1601 + $0xe0] sm:$0xf]
        %v1659 = vld [vmem:[%s1601 + $0xe4] sm:$0xf]
        %v1660 = vld [vmem:[%s1601 + $0xe8] sm:$0xf]
        %v1661 = vld [vmem:[%s1601 + $0xec] sm:$0xf]
        %v1662 = vld [vmem:[%s1601 + $0xf0] sm:$0xf]
        %v1663 = vld [vmem:[%s1601 + $0xf4] sm:$0xf]
        %v1664 = vld [vmem:[%s1601 + $0xf8] sm:$0xf]
        %v1665 = vld [vmem:[%s1601 + $0xfc] sm:$0xf]
        %v1666 = vld [vmem:[%s1601 + $0x100] sm:$0xf]
        %v1667 = vld [vmem:[%s1601 + $0x104] sm:$0xf]
        %v1668 = vld [vmem:[%s1601 + $0x108] sm:$0xf]
        %v1669 = vld [vmem:[%s1601 + $0x10c] sm:$0xf]
        %v1670 = vld [vmem:[%s1601 + $0x110] sm:$0xf]
        %v1671 = vld [vmem:[%s1601 + $0x114] sm:$0xf]
        %v1672 = vld [vmem:[%s1601 + $0x118] sm:$0xf]
        %v1673 = vld [vmem:[%s1601 + $0x11c] sm:$0xf]
        %v1674 = vld [vmem:[%s1601 + $0x120] sm:$0xf]
        %v1675 = vld [vmem:[%s1601 + $0x124] sm:$0xf]
        %v1676 = vld [vmem:[%s1601 + $0x128] sm:$0xf]
        %v1677 = vld [vmem:[%s1601 + $0x12c] sm:$0xf]
        %v1678 = vld [vmem:[%s1601 + $0x130] sm:$0xf]
        %v1679 = vld [vmem:[%s1601 + $0x134] sm:$0xf]
        %v1680 = vld [vmem:[%s1601 + $0x138] sm:$0xf]
        %v1681 = vld [vmem:[%s1601 + $0x13c] sm:$0xf]
        %v1682 = vld [vmem:[%s1601 + $0x140] sm:$0xf]
        %v1683 = vld [vmem:[%s1601 + $0x144] sm:$0xf]
        %v1684 = vld [vmem:[%s1601 + $0x148] sm:$0xf]
        %v1685 = vld [vmem:[%s1601 + $0x14c] sm:$0xf]
        %v1686 = vld [vmem:[%s1601 + $0x150] sm:$0xf]
        %v1687 = vld [vmem:[%s1601 + $0x154] sm:$0xf]
        %v1688 = vld [vmem:[%s1601 + $0x158] sm:$0xf]
        %v1689 = vld [vmem:[%s1601 + $0x15c] sm:$0xf]
        %v1690 = vld [vmem:[%s1601 + $0x160] sm:$0xf]
        %v1691 = vld [vmem:[%s1601 + $0x164] sm:$0xf]
        %v1692 = vld [vmem:[%s1601 + $0x168] sm:$0xf]
        %v1693 = vld [vmem:[%s1601 + $0x16c] sm:$0xf]
        %v1694 = vld [vmem:[%s1601 + $0x170] sm:$0xf]
        %v1695 = vld [vmem:[%s1601 + $0x174] sm:$0xf]
        %v1696 = vld [vmem:[%s1601 + $0x178] sm:$0xf]
        %v1697 = vld [vmem:[%s1601 + $0x17c] sm:$0xf]
        %v1698 = vld [vmem:[%s1601 + $0x180] sm:$0xf]
        %v1699 = vld [vmem:[%s1601 + $0x184] sm:$0xf]
        %v1700 = vld [vmem:[%s1601 + $0x188] sm:$0xf]
        %v1701 = vld [vmem:[%s1601 + $0x18c] sm:$0xf]
        %v1702 = vld [vmem:[%s1601 + $0x190] sm:$0xf]
        %v1703 = vld [vmem:[%s1601 + $0x194] sm:$0xf]
        %v1704 = vld [vmem:[%s1601 + $0x198] sm:$0xf]
        %v1705 = vld [vmem:[%s1601 + $0x19c] sm:$0xf]
        %v1706 = vld [vmem:[%s1601 + $0x1a0] sm:$0xf]
        %v1707 = vld [vmem:[%s1601 + $0x1a4] sm:$0xf]
        %v1708 = vld [vmem:[%s1601 + $0x1a8] sm:$0xf]
        %v1709 = vld [vmem:[%s1601 + $0x1ac] sm:$0xf]
        %v1710 = vld [vmem:[%s1601 + $0x1b0] sm:$0xf]
        %v1711 = vld [vmem:[%s1601 + $0x1b4] sm:$0xf]
        %v1712 = vld [vmem:[%s1601 + $0x1b8] sm:$0xf]
        %v1713 = vld [vmem:[%s1601 + $0x1bc] sm:$0xf]
        %v1714 = vld [vmem:[%s1601 + $0x1c0] sm:$0xf]
        %v1715 = vld [vmem:[%s1601 + $0x1c4] sm:$0xf]
        %v1716 = vld [vmem:[%s1601 + $0x1c8] sm:$0xf]
        %v1717 = vld [vmem:[%s1601 + $0x1cc] sm:$0xf]
        %v1718 = vld [vmem:[%s1601 + $0x1d0] sm:$0xf]
        %v1719 = vld [vmem:[%s1601 + $0x1d4] sm:$0xf]
        %v1720 = vld [vmem:[%s1601 + $0x1d8] sm:$0xf]
        %v1721 = vld [vmem:[%s1601 + $0x1dc] sm:$0xf]
        %v1722 = vld [vmem:[%s1601 + $0x1e0] sm:$0xf]
        %v1723 = vld [vmem:[%s1601 + $0x1e4] sm:$0xf]
        %v1724 = vld [vmem:[%s1601 + $0x1e8] sm:$0xf]
        %v1725 = vld [vmem:[%s1601 + $0x1ec] sm:$0xf]
        %v1726 = vld [vmem:[%s1601 + $0x1f0] sm:$0xf]
        %v1727 = vld [vmem:[%s1601 + $0x1f4] sm:$0xf]
        %v1728 = vld [vmem:[%s1601 + $0x1f8] sm:$0xf]
        %v1729 = vld [vmem:[%s1601 + $0x1fc] sm:$0xf]
        %v1890 = vunpack.c.l.b16 %v1438
        %v1891 = vunpack.c.h.b16 %v1438
        %v1892 = vunpack.c.l.b16 %v1439
        %v1893 = vunpack.c.h.b16 %v1439
        %v1894 = vunpack.c.l.b16 %v1440
        %v1895 = vunpack.c.h.b16 %v1440
        %v1896 = vunpack.c.l.b16 %v1441
        %v1897 = vunpack.c.h.b16 %v1441
        %v1898 = vunpack.c.l.b16 %v1442
        %v1899 = vunpack.c.h.b16 %v1442
        %v1900 = vunpack.c.l.b16 %v1443
        %v1901 = vunpack.c.h.b16 %v1443
        %v1902 = vunpack.c.l.b16 %v1444
        %v1903 = vunpack.c.h.b16 %v1444
        %v1904 = vunpack.c.l.b16 %v1445
        %v1905 = vunpack.c.h.b16 %v1445
        %v1906 = vunpack.c.l.b16 %v1446
        %v1907 = vunpack.c.h.b16 %v1446
        %v1908 = vunpack.c.l.b16 %v1447
        %v1909 = vunpack.c.h.b16 %v1447
        %v1910 = vunpack.c.l.b16 %v1448
        %v1911 = vunpack.c.h.b16 %v1448
        %v1912 = vunpack.c.l.b16 %v1449
        %v1913 = vunpack.c.h.b16 %v1449
        %v1914 = vunpack.c.l.b16 %v1450
        %v1915 = vunpack.c.h.b16 %v1450
        %v1916 = vunpack.c.l.b16 %v1451
        %v1917 = vunpack.c.h.b16 %v1451
        %v1918 = vunpack.c.l.b16 %v1452
        %v1919 = vunpack.c.h.b16 %v1452
        %v1920 = vunpack.c.l.b16 %v1453
        %v1921 = vunpack.c.h.b16 %v1453
        %v1922 = vunpack.c.l.b16 %v1454
        %v1923 = vunpack.c.h.b16 %v1454
        %v1924 = vunpack.c.l.b16 %v1455
        %v1925 = vunpack.c.h.b16 %v1455
        %v1926 = vunpack.c.l.b16 %v1456
        %v1927 = vunpack.c.h.b16 %v1456
        %v1928 = vunpack.c.l.b16 %v1457
        %v1929 = vunpack.c.h.b16 %v1457
        %v1930 = vunpack.c.l.b16 %v1458
        %v1931 = vunpack.c.h.b16 %v1458
        %v1932 = vunpack.c.l.b16 %v1459
        %v1933 = vunpack.c.h.b16 %v1459
        %v1934 = vunpack.c.l.b16 %v1460
        %v1935 = vunpack.c.h.b16 %v1460
        %v1936 = vunpack.c.l.b16 %v1461
        %v1937 = vunpack.c.h.b16 %v1461
        %v1938 = vunpack.c.l.b16 %v1462
        %v1939 = vunpack.c.h.b16 %v1462
        %v1940 = vunpack.c.l.b16 %v1463
        %v1941 = vunpack.c.h.b16 %v1463
        %v1942 = vunpack.c.l.b16 %v1464
        %v1943 = vunpack.c.h.b16 %v1464
        %v1944 = vunpack.c.l.b16 %v1465
        %v1945 = vunpack.c.h.b16 %v1465
        %v1946 = vunpack.c.l.b16 %v1466
        %v1947 = vunpack.c.h.b16 %v1466
        %v1948 = vunpack.c.l.b16 %v1467
        %v1949 = vunpack.c.h.b16 %v1467
        %v1950 = vunpack.c.l.b16 %v1468
        %v1951 = vunpack.c.h.b16 %v1468
        %v1952 = vunpack.c.l.b16 %v1469
        %v1953 = vunpack.c.h.b16 %v1469
        %v1954 = vunpack.c.l.b16 %v1470
        %v1955 = vunpack.c.h.b16 %v1470
        %v1956 = vunpack.c.l.b16 %v1471
        %v1957 = vunpack.c.h.b16 %v1471
        %v1958 = vunpack.c.l.b16 %v1472
        %v1959 = vunpack.c.h.b16 %v1472
        %v1960 = vunpack.c.l.b16 %v1473
        %v1961 = vunpack.c.h.b16 %v1473
        %v1962 = vunpack.c.l.b16 %v1474
        %v1963 = vunpack.c.h.b16 %v1474
        %v1964 = vunpack.c.l.b16 %v1475
        %v1965 = vunpack.c.h.b16 %v1475
        %v1966 = vunpack.c.l.b16 %v1476
        %v1967 = vunpack.c.h.b16 %v1476
        %v1968 = vunpack.c.l.b16 %v1477
        %v1969 = vunpack.c.h.b16 %v1477
        %v1970 = vunpack.c.l.b16 %v1478
        %v1971 = vunpack.c.h.b16 %v1478
        %v1972 = vunpack.c.l.b16 %v1479
        %v1973 = vunpack.c.h.b16 %v1479
        %v1974 = vunpack.c.l.b16 %v1480
        %v1975 = vunpack.c.h.b16 %v1480
        %v1976 = vunpack.c.l.b16 %v1481
        %v1977 = vunpack.c.h.b16 %v1481
        %v1978 = vunpack.c.l.b16 %v1482
        %v1979 = vunpack.c.h.b16 %v1482
        %v1980 = vunpack.c.l.b16 %v1483
        %v1981 = vunpack.c.h.b16 %v1483
        %v1982 = vunpack.c.l.b16 %v1484
        %v1983 = vunpack.c.h.b16 %v1484
        %v1984 = vunpack.c.l.b16 %v1485
        %v1985 = vunpack.c.h.b16 %v1485
        %v1986 = vunpack.c.l.b16 %v1486
        %v1987 = vunpack.c.h.b16 %v1486
        %v1988 = vunpack.c.l.b16 %v1487
        %v1989 = vunpack.c.h.b16 %v1487
        %v1990 = vunpack.c.l.b16 %v1488
        %v1991 = vunpack.c.h.b16 %v1488
        %v1992 = vunpack.c.l.b16 %v1489
        %v1993 = vunpack.c.h.b16 %v1489
        %v1994 = vunpack.c.l.b16 %v1490
        %v1995 = vunpack.c.h.b16 %v1490
        %v1996 = vunpack.c.l.b16 %v1491
        %v1997 = vunpack.c.h.b16 %v1491
        %v1998 = vunpack.c.l.b16 %v1492
        %v1999 = vunpack.c.h.b16 %v1492
        %v2000 = vunpack.c.l.b16 %v1493
        %v2001 = vunpack.c.h.b16 %v1493
        %v2002 = vunpack.c.l.b16 %v1494
        %v2003 = vunpack.c.h.b16 %v1494
        %v2004 = vunpack.c.l.b16 %v1495
        %v2005 = vunpack.c.h.b16 %v1495
        %v2006 = vunpack.c.l.b16 %v1496
        %v2007 = vunpack.c.h.b16 %v1496
        %v2008 = vunpack.c.l.b16 %v1497
        %v2009 = vunpack.c.h.b16 %v1497
        %v2010 = vunpack.c.l.b16 %v1498
        %v2011 = vunpack.c.h.b16 %v1498
        %v2012 = vunpack.c.l.b16 %v1499
        %v2013 = vunpack.c.h.b16 %v1499
        %v2014 = vunpack.c.l.b16 %v1500
        %v2015 = vunpack.c.h.b16 %v1500
        %v2016 = vunpack.c.l.b16 %v1501
        %v2017 = vunpack.c.h.b16 %v1501
        %v2018 = vunpack.c.l.b16 %v1502
        %v2019 = vunpack.c.h.b16 %v1502
        %v2020 = vunpack.c.l.b16 %v1503
        %v2021 = vunpack.c.h.b16 %v1503
        %v2022 = vunpack.c.l.b16 %v1504
        %v2023 = vunpack.c.h.b16 %v1504
        %v2024 = vunpack.c.l.b16 %v1505
        %v2025 = vunpack.c.h.b16 %v1505
        %v2026 = vunpack.c.l.b16 %v1506
        %v2027 = vunpack.c.h.b16 %v1506
        %v2028 = vunpack.c.l.b16 %v1507
        %v2029 = vunpack.c.h.b16 %v1507
        %v2030 = vunpack.c.l.b16 %v1508
        %v2031 = vunpack.c.h.b16 %v1508
        %v2032 = vunpack.c.l.b16 %v1509
        %v2033 = vunpack.c.h.b16 %v1509
        %v2034 = vunpack.c.l.b16 %v1510
        %v2035 = vunpack.c.h.b16 %v1510
        %v2036 = vunpack.c.l.b16 %v1511
        %v2037 = vunpack.c.h.b16 %v1511
        %v2038 = vunpack.c.l.b16 %v1512
        %v2039 = vunpack.c.h.b16 %v1512
        %v2040 = vunpack.c.l.b16 %v1513
        %v2041 = vunpack.c.h.b16 %v1513
        %v2042 = vunpack.c.l.b16 %v1514
        %v2043 = vunpack.c.h.b16 %v1514
        %v2044 = vunpack.c.l.b16 %v1515
        %v2045 = vunpack.c.h.b16 %v1515
        %v2046 = vunpack.c.l.b16 %v1516
        %v2047 = vunpack.c.h.b16 %v1516
        %v2048 = vunpack.c.l.b16 %v1517
        %v2049 = vunpack.c.h.b16 %v1517
        %v2050 = vunpack.c.l.b16 %v1518
        %v2051 = vunpack.c.h.b16 %v1518
        %v2052 = vunpack.c.l.b16 %v1519
        %v2053 = vunpack.c.h.b16 %v1519
        %v2054 = vunpack.c.l.b16 %v1520
        %v2055 = vunpack.c.h.b16 %v1520
        %v2056 = vunpack.c.l.b16 %v1521
        %v2057 = vunpack.c.h.b16 %v1521
        %v2058 = vunpack.c.l.b16 %v1522
        %v2059 = vunpack.c.h.b16 %v1522
        %v2060 = vunpack.c.l.b16 %v1523
        %v2061 = vunpack.c.h.b16 %v1523
        %v2062 = vunpack.c.l.b16 %v1524
        %v2063 = vunpack.c.h.b16 %v1524
        %v2064 = vunpack.c.l.b16 %v1525
        %v2065 = vunpack.c.h.b16 %v1525
        %v2066 = vunpack.c.l.b16 %v1526
        %v2067 = vunpack.c.h.b16 %v1526
        %v2068 = vunpack.c.l.b16 %v1527
        %v2069 = vunpack.c.h.b16 %v1527
        %v2070 = vunpack.c.l.b16 %v1528
        %v2071 = vunpack.c.h.b16 %v1528
        %v2072 = vunpack.c.l.b16 %v1529
        %v2073 = vunpack.c.h.b16 %v1529
        %v2074 = vunpack.c.l.b16 %v1530
        %v2075 = vunpack.c.h.b16 %v1530
        %v2076 = vunpack.c.l.b16 %v1531
        %v2077 = vunpack.c.h.b16 %v1531
        %v2078 = vunpack.c.l.b16 %v1532
        %v2079 = vunpack.c.h.b16 %v1532
        %v2080 = vunpack.c.l.b16 %v1533
        %v2081 = vunpack.c.h.b16 %v1533
        %v2082 = vunpack.c.l.b16 %v1534
        %v2083 = vunpack.c.h.b16 %v1534
        %v2084 = vunpack.c.l.b16 %v1535
        %v2085 = vunpack.c.h.b16 %v1535
        %v2086 = vunpack.c.l.b16 %v1536
        %v2087 = vunpack.c.h.b16 %v1536
        %v2088 = vunpack.c.l.b16 %v1537
        %v2089 = vunpack.c.h.b16 %v1537
        %v2090 = vunpack.c.l.b16 %v1538
        %v2091 = vunpack.c.h.b16 %v1538
        %v2092 = vunpack.c.l.b16 %v1539
        %v2093 = vunpack.c.h.b16 %v1539
        %v2094 = vunpack.c.l.b16 %v1540
        %v2095 = vunpack.c.h.b16 %v1540
        %v2096 = vunpack.c.l.b16 %v1541
        %v2097 = vunpack.c.h.b16 %v1541
        %v2098 = vunpack.c.l.b16 %v1542
        %v2099 = vunpack.c.h.b16 %v1542
        %v2100 = vunpack.c.l.b16 %v1543
        %v2101 = vunpack.c.h.b16 %v1543
        %v2102 = vunpack.c.l.b16 %v1544
        %v2103 = vunpack.c.h.b16 %v1544
        %v2104 = vunpack.c.l.b16 %v1545
        %v2105 = vunpack.c.h.b16 %v1545
        %v2106 = vunpack.c.l.b16 %v1546
        %v2107 = vunpack.c.h.b16 %v1546
        %v2108 = vunpack.c.l.b16 %v1547
        %v2109 = vunpack.c.h.b16 %v1547
        %v2110 = vunpack.c.l.b16 %v1548
        %v2111 = vunpack.c.h.b16 %v1548
        %v2112 = vunpack.c.l.b16 %v1549
        %v2113 = vunpack.c.h.b16 %v1549
        %v2114 = vunpack.c.l.b16 %v1550
        %v2115 = vunpack.c.h.b16 %v1550
        %v2116 = vunpack.c.l.b16 %v1551
        %v2117 = vunpack.c.h.b16 %v1551
        %v2118 = vunpack.c.l.b16 %v1552
        %v2119 = vunpack.c.h.b16 %v1552
        %v2120 = vunpack.c.l.b16 %v1553
        %v2121 = vunpack.c.h.b16 %v1553
        %v2122 = vunpack.c.l.b16 %v1554
        %v2123 = vunpack.c.h.b16 %v1554
        %v2124 = vunpack.c.l.b16 %v1555
        %v2125 = vunpack.c.h.b16 %v1555
        %v2126 = vunpack.c.l.b16 %v1556
        %v2127 = vunpack.c.h.b16 %v1556
        %v2128 = vunpack.c.l.b16 %v1557
        %v2129 = vunpack.c.h.b16 %v1557
        %v2130 = vunpack.c.l.b16 %v1558
        %v2131 = vunpack.c.h.b16 %v1558
        %v2132 = vunpack.c.l.b16 %v1559
        %v2133 = vunpack.c.h.b16 %v1559
        %v2134 = vunpack.c.l.b16 %v1560
        %v2135 = vunpack.c.h.b16 %v1560
        %v2136 = vunpack.c.l.b16 %v1561
        %v2137 = vunpack.c.h.b16 %v1561
        %v2138 = vunpack.c.l.b16 %v1562
        %v2139 = vunpack.c.h.b16 %v1562
        %v2140 = vunpack.c.l.b16 %v1563
        %v2141 = vunpack.c.h.b16 %v1563
        %v2142 = vunpack.c.l.b16 %v1564
        %v2143 = vunpack.c.h.b16 %v1564
        %v2144 = vunpack.c.l.b16 %v1565
        %v2145 = vunpack.c.h.b16 %v1565
        %v2146 = vunpack.c.l.b16 %v1566
        %v2147 = vunpack.c.h.b16 %v1566
        %v2148 = vunpack.c.l.b16 %v1567
        %v2149 = vunpack.c.h.b16 %v1567
        %v2150 = vunpack.c.l.b16 %v1568
        %v2151 = vunpack.c.h.b16 %v1568
        %v2152 = vunpack.c.l.b16 %v1569
        %v2153 = vunpack.c.h.b16 %v1569
        %v2154 = vunpack.c.l.b16 %v1570
        %v2155 = vunpack.c.h.b16 %v1570
        %v2156 = vunpack.c.l.b16 %v1571
        %v2157 = vunpack.c.h.b16 %v1571
        %v2158 = vunpack.c.l.b16 %v1572
        %v2159 = vunpack.c.h.b16 %v1572
        %v2160 = vunpack.c.l.b16 %v1573
        %v2161 = vunpack.c.h.b16 %v1573
        %v2162 = vunpack.c.l.b16 %v1574
        %v2163 = vunpack.c.h.b16 %v1574
        %v2164 = vunpack.c.l.b16 %v1575
        %v2165 = vunpack.c.h.b16 %v1575
        %v2166 = vunpack.c.l.b16 %v1576
        %v2167 = vunpack.c.h.b16 %v1576
        %v2168 = vunpack.c.l.b16 %v1577
        %v2169 = vunpack.c.h.b16 %v1577
        %v2170 = vunpack.c.l.b16 %v1578
        %v2171 = vunpack.c.h.b16 %v1578
        %v2172 = vunpack.c.l.b16 %v1579
        %v2173 = vunpack.c.h.b16 %v1579
        %v2174 = vunpack.c.l.b16 %v1580
        %v2175 = vunpack.c.h.b16 %v1580
        %v2176 = vunpack.c.l.b16 %v1581
        %v2177 = vunpack.c.h.b16 %v1581
        %v2178 = vunpack.c.l.b16 %v1582
        %v2179 = vunpack.c.h.b16 %v1582
        %v2180 = vunpack.c.l.b16 %v1583
        %v2181 = vunpack.c.h.b16 %v1583
        %v2182 = vunpack.c.l.b16 %v1584
        %v2183 = vunpack.c.h.b16 %v1584
        %v2184 = vunpack.c.l.b16 %v1585
        %v2185 = vunpack.c.h.b16 %v1585
        %v2186 = vunpack.c.l.b16 %v1586
        %v2187 = vunpack.c.h.b16 %v1586
        %v2188 = vunpack.c.l.b16 %v1587
        %v2189 = vunpack.c.h.b16 %v1587
        %v2190 = vunpack.c.l.b16 %v1588
        %v2191 = vunpack.c.h.b16 %v1588
        %v2192 = vunpack.c.l.b16 %v1589
        %v2193 = vunpack.c.h.b16 %v1589
        %v2194 = vunpack.c.l.b16 %v1590
        %v2195 = vunpack.c.h.b16 %v1590
        %v2196 = vunpack.c.l.b16 %v1591
        %v2197 = vunpack.c.h.b16 %v1591
        %v2198 = vunpack.c.l.b16 %v1592
        %v2199 = vunpack.c.h.b16 %v1592
        %v2200 = vunpack.c.l.b16 %v1593
        %v2201 = vunpack.c.h.b16 %v1593
        %v2202 = vunpack.c.l.b16 %v1594
        %v2203 = vunpack.c.h.b16 %v1594
        %v2204 = vunpack.c.l.b16 %v1595
        %v2205 = vunpack.c.h.b16 %v1595
        %v2206 = vunpack.c.l.b16 %v1596
        %v2207 = vunpack.c.h.b16 %v1596
        %v2208 = vunpack.c.l.b16 %v1597
        %v2209 = vunpack.c.h.b16 %v1597
        %v2210 = vpack.c.b16 %v1898, %v1890
        %v2211 = vpack.c.b16 %v1899, %v1891
        %v2212 = vpack.c.b16 %v1900, %v1892
        %v2213 = vpack.c.b16 %v1901, %v1893
        %v2214 = vpack.c.b16 %v1902, %v1894
        %v2215 = vpack.c.b16 %v1903, %v1895
        %v2216 = vpack.c.b16 %v1904, %v1896
        %v2217 = vpack.c.b16 %v1905, %v1897
        %v2218 = vpack.c.b16 %v1914, %v1906
        %v2219 = vpack.c.b16 %v1915, %v1907
        %v2220 = vpack.c.b16 %v1916, %v1908
        %v2221 = vpack.c.b16 %v1917, %v1909
        %v2222 = vpack.c.b16 %v1918, %v1910
        %v2223 = vpack.c.b16 %v1919, %v1911
        %v2224 = vpack.c.b16 %v1920, %v1912
        %v2225 = vpack.c.b16 %v1921, %v1913
        %v2226 = vpack.c.b16 %v1930, %v1922
        %v2227 = vpack.c.b16 %v1931, %v1923
        %v2228 = vpack.c.b16 %v1932, %v1924
        %v2229 = vpack.c.b16 %v1933, %v1925
        %v2230 = vpack.c.b16 %v1934, %v1926
        %v2231 = vpack.c.b16 %v1935, %v1927
        %v2232 = vpack.c.b16 %v1936, %v1928
        %v2233 = vpack.c.b16 %v1937, %v1929
        %v2234 = vpack.c.b16 %v1946, %v1938
        %v2235 = vpack.c.b16 %v1947, %v1939
        %v2236 = vpack.c.b16 %v1948, %v1940
        %v2237 = vpack.c.b16 %v1949, %v1941
        %v2238 = vpack.c.b16 %v1950, %v1942
        %v2239 = vpack.c.b16 %v1951, %v1943
        %v2240 = vpack.c.b16 %v1952, %v1944
        %v2241 = vpack.c.b16 %v1953, %v1945
        %v2242 = vpack.c.b16 %v1962, %v1954
        %v2243 = vpack.c.b16 %v1963, %v1955
        %v2244 = vpack.c.b16 %v1964, %v1956
        %v2245 = vpack.c.b16 %v1965, %v1957
        %v2246 = vpack.c.b16 %v1966, %v1958
        %v2247 = vpack.c.b16 %v1967, %v1959
        %v2248 = vpack.c.b16 %v1968, %v1960
        %v2249 = vpack.c.b16 %v1969, %v1961
        %v2250 = vpack.c.b16 %v1978, %v1970
        %v2251 = vpack.c.b16 %v1979, %v1971
        %v2252 = vpack.c.b16 %v1980, %v1972
        %v2253 = vpack.c.b16 %v1981, %v1973
        %v2254 = vpack.c.b16 %v1982, %v1974
        %v2255 = vpack.c.b16 %v1983, %v1975
        %v2256 = vpack.c.b16 %v1984, %v1976
        %v2257 = vpack.c.b16 %v1985, %v1977
        %v2258 = vpack.c.b16 %v1994, %v1986
        %v2259 = vpack.c.b16 %v1995, %v1987
        %v2260 = vpack.c.b16 %v1996, %v1988
        %v2261 = vpack.c.b16 %v1997, %v1989
        %v2262 = vpack.c.b16 %v1998, %v1990
        %v2263 = vpack.c.b16 %v1999, %v1991
        %v2264 = vpack.c.b16 %v2000, %v1992
        %v2265 = vpack.c.b16 %v2001, %v1993
        %v2266 = vpack.c.b16 %v2010, %v2002
        %v2267 = vpack.c.b16 %v2011, %v2003
        %v2268 = vpack.c.b16 %v2012, %v2004
        %v2269 = vpack.c.b16 %v2013, %v2005
        %v2270 = vpack.c.b16 %v2014, %v2006
        %v2271 = vpack.c.b16 %v2015, %v2007
        %v2272 = vpack.c.b16 %v2016, %v2008
        %v2273 = vpack.c.b16 %v2017, %v2009
        %v2274 = vpack.c.b16 %v2026, %v2018
        %v2275 = vpack.c.b16 %v2027, %v2019
        %v2276 = vpack.c.b16 %v2028, %v2020
        %v2277 = vpack.c.b16 %v2029, %v2021
        %v2278 = vpack.c.b16 %v2030, %v2022
        %v2279 = vpack.c.b16 %v2031, %v2023
        %v2280 = vpack.c.b16 %v2032, %v2024
        %v2281 = vpack.c.b16 %v2033, %v2025
        %v2282 = vpack.c.b16 %v2042, %v2034
        %v2283 = vpack.c.b16 %v2043, %v2035
        %v2284 = vpack.c.b16 %v2044, %v2036
        %v2285 = vpack.c.b16 %v2045, %v2037
        %v2286 = vpack.c.b16 %v2046, %v2038
        %v2287 = vpack.c.b16 %v2047, %v2039
        %v2288 = vpack.c.b16 %v2048, %v2040
        %v2289 = vpack.c.b16 %v2049, %v2041
        %v2290 = vpack.c.b16 %v2058, %v2050
        %v2291 = vpack.c.b16 %v2059, %v2051
        %v2292 = vpack.c.b16 %v2060, %v2052
        %v2293 = vpack.c.b16 %v2061, %v2053
        %v2294 = vpack.c.b16 %v2062, %v2054
        %v2295 = vpack.c.b16 %v2063, %v2055
        %v2296 = vpack.c.b16 %v2064, %v2056
        %v2297 = vpack.c.b16 %v2065, %v2057
        %v2298 = vpack.c.b16 %v2074, %v2066
        %v2299 = vpack.c.b16 %v2075, %v2067
        %v2300 = vpack.c.b16 %v2076, %v2068
        %v2301 = vpack.c.b16 %v2077, %v2069
        %v2302 = vpack.c.b16 %v2078, %v2070
        %v2303 = vpack.c.b16 %v2079, %v2071
        %v2304 = vpack.c.b16 %v2080, %v2072
        %v2305 = vpack.c.b16 %v2081, %v2073
        %v2306 = vpack.c.b16 %v2090, %v2082
        %v2307 = vpack.c.b16 %v2091, %v2083
        %v2308 = vpack.c.b16 %v2092, %v2084
        %v2309 = vpack.c.b16 %v2093, %v2085
        %v2310 = vpack.c.b16 %v2094, %v2086
        %v2311 = vpack.c.b16 %v2095, %v2087
        %v2312 = vpack.c.b16 %v2096, %v2088
        %v2313 = vpack.c.b16 %v2097, %v2089
        %v2314 = vpack.c.b16 %v2106, %v2098
        %v2315 = vpack.c.b16 %v2107, %v2099
        %v2316 = vpack.c.b16 %v2108, %v2100
        %v2317 = vpack.c.b16 %v2109, %v2101
        %v2318 = vpack.c.b16 %v2110, %v2102
        %v2319 = vpack.c.b16 %v2111, %v2103
        %v2320 = vpack.c.b16 %v2112, %v2104
        %v2321 = vpack.c.b16 %v2113, %v2105
        %v2322 = vpack.c.b16 %v2122, %v2114
        %v2323 = vpack.c.b16 %v2123, %v2115
        %v2324 = vpack.c.b16 %v2124, %v2116
        %v2325 = vpack.c.b16 %v2125, %v2117
        %v2326 = vpack.c.b16 %v2126, %v2118
        %v2327 = vpack.c.b16 %v2127, %v2119
        %v2328 = vpack.c.b16 %v2128, %v2120
        %v2329 = vpack.c.b16 %v2129, %v2121
        %v2330 = vpack.c.b16 %v2138, %v2130
        %v2331 = vpack.c.b16 %v2139, %v2131
        %v2332 = vpack.c.b16 %v2140, %v2132
        %v2333 = vpack.c.b16 %v2141, %v2133
        %v2334 = vpack.c.b16 %v2142, %v2134
        %v2335 = vpack.c.b16 %v2143, %v2135
        %v2336 = vpack.c.b16 %v2144, %v2136
        %v2337 = vpack.c.b16 %v2145, %v2137
        %v2338 = vpack.c.b16 %v2154, %v2146
        %v2339 = vpack.c.b16 %v2155, %v2147
        %v2340 = vpack.c.b16 %v2156, %v2148
        %v2341 = vpack.c.b16 %v2157, %v2149
        %v2342 = vpack.c.b16 %v2158, %v2150
        %v2343 = vpack.c.b16 %v2159, %v2151
        %v2344 = vpack.c.b16 %v2160, %v2152
        %v2345 = vpack.c.b16 %v2161, %v2153
        %v2346 = vpack.c.b16 %v2170, %v2162
        %v2347 = vpack.c.b16 %v2171, %v2163
        %v2348 = vpack.c.b16 %v2172, %v2164
        %v2349 = vpack.c.b16 %v2173, %v2165
        %v2350 = vpack.c.b16 %v2174, %v2166
        %v2351 = vpack.c.b16 %v2175, %v2167
        %v2352 = vpack.c.b16 %v2176, %v2168
        %v2353 = vpack.c.b16 %v2177, %v2169
        %v2354 = vpack.c.b16 %v2186, %v2178
        %v2355 = vpack.c.b16 %v2187, %v2179
        %v2356 = vpack.c.b16 %v2188, %v2180
        %v2357 = vpack.c.b16 %v2189, %v2181
        %v2358 = vpack.c.b16 %v2190, %v2182
        %v2359 = vpack.c.b16 %v2191, %v2183
        %v2360 = vpack.c.b16 %v2192, %v2184
        %v2361 = vpack.c.b16 %v2193, %v2185
        %v2362 = vpack.c.b16 %v2202, %v2194
        %v2363 = vpack.c.b16 %v2203, %v2195
        %v2364 = vpack.c.b16 %v2204, %v2196
        %v2365 = vpack.c.b16 %v2205, %v2197
        %v2366 = vpack.c.b16 %v2206, %v2198
        %v2367 = vpack.c.b16 %v2207, %v2199
        %v2368 = vpack.c.b16 %v2208, %v2200
        %v2369 = vpack.c.b16 %v2209, %v2201
        %v2658 = vunpack.c.l.b16 %v1602
        %v2659 = vunpack.c.l.b16 %v1603
        %v2660 = vunpack.c.l.b16 %v1604
        %v2661 = vunpack.c.l.b16 %v1605
        %v2662 = vunpack.c.l.b16 %v1606
        %v2663 = vunpack.c.l.b16 %v1607
        %v2664 = vunpack.c.l.b16 %v1608
        %v2665 = vunpack.c.l.b16 %v1609
        %v2666 = vunpack.c.l.b16 %v1610
        %v2667 = vunpack.c.l.b16 %v1611
        %v2668 = vunpack.c.l.b16 %v1612
        %v2669 = vunpack.c.l.b16 %v1613
        %v2670 = vunpack.c.l.b16 %v1614
        %v2671 = vunpack.c.l.b16 %v1615
        %v2672 = vunpack.c.l.b16 %v1616
        %v2673 = vunpack.c.l.b16 %v1617
        %v2674 = vunpack.c.l.b16 %v1618
        %v2675 = vunpack.c.l.b16 %v1619
        %v2676 = vunpack.c.l.b16 %v1620
        %v2677 = vunpack.c.l.b16 %v1621
        %v2678 = vunpack.c.l.b16 %v1622
        %v2679 = vunpack.c.l.b16 %v1623
        %v2680 = vunpack.c.l.b16 %v1624
        %v2681 = vunpack.c.l.b16 %v1625
        %v2682 = vunpack.c.l.b16 %v1626
        %v2683 = vunpack.c.l.b16 %v1627
        %v2684 = vunpack.c.l.b16 %v1628
        %v2685 = vunpack.c.l.b16 %v1629
        %v2686 = vunpack.c.l.b16 %v1630
        %v2687 = vunpack.c.l.b16 %v1631
        %v2688 = vunpack.c.l.b16 %v1632
        %v2689 = vunpack.c.l.b16 %v1633
        %v2690 = vunpack.c.l.b16 %v1634
        %v2691 = vunpack.c.l.b16 %v1635
        %v2692 = vunpack.c.l.b16 %v1636
        %v2693 = vunpack.c.l.b16 %v1637
        %v2694 = vunpack.c.l.b16 %v1638
        %v2695 = vunpack.c.l.b16 %v1639
        %v2696 = vunpack.c.l.b16 %v1640
        %v2697 = vunpack.c.l.b16 %v1641
        %v2698 = vunpack.c.l.b16 %v1642
        %v2699 = vunpack.c.l.b16 %v1643
        %v2700 = vunpack.c.l.b16 %v1644
        %v2701 = vunpack.c.l.b16 %v1645
        %v2702 = vunpack.c.l.b16 %v1646
        %v2703 = vunpack.c.l.b16 %v1647
        %v2704 = vunpack.c.l.b16 %v1648
        %v2705 = vunpack.c.l.b16 %v1649
        %v2706 = vunpack.c.l.b16 %v1650
        %v2707 = vunpack.c.l.b16 %v1651
        %v2708 = vunpack.c.l.b16 %v1652
        %v2709 = vunpack.c.l.b16 %v1653
        %v2710 = vunpack.c.l.b16 %v1654
        %v2711 = vunpack.c.l.b16 %v1655
        %v2712 = vunpack.c.l.b16 %v1656
        %v2713 = vunpack.c.l.b16 %v1657
        %v2714 = vunpack.c.l.b16 %v1658
        %v2715 = vunpack.c.l.b16 %v1659
        %v2716 = vunpack.c.l.b16 %v1660
        %v2717 = vunpack.c.l.b16 %v1661
        %v2718 = vunpack.c.l.b16 %v1662
        %v2719 = vunpack.c.l.b16 %v1663
        %v2720 = vunpack.c.l.b16 %v1664
        %v2721 = vunpack.c.l.b16 %v1665
        %v2722 = vunpack.c.l.b16 %v1666
        %v2723 = vunpack.c.l.b16 %v1667
        %v2724 = vunpack.c.l.b16 %v1668
        %v2725 = vunpack.c.l.b16 %v1669
        %v2726 = vunpack.c.l.b16 %v1670
        %v2727 = vunpack.c.l.b16 %v1671
        %v2728 = vunpack.c.l.b16 %v1672
        %v2729 = vunpack.c.l.b16 %v1673
        %v2730 = vunpack.c.l.b16 %v1674
        %v2731 = vunpack.c.l.b16 %v1675
        %v2732 = vunpack.c.l.b16 %v1676
        %v2733 = vunpack.c.l.b16 %v1677
        %v2734 = vunpack.c.l.b16 %v1678
        %v2735 = vunpack.c.l.b16 %v1679
        %v2736 = vunpack.c.l.b16 %v1680
        %v2737 = vunpack.c.l.b16 %v1681
        %v2738 = vunpack.c.l.b16 %v1682
        %v2739 = vunpack.c.l.b16 %v1683
        %v2740 = vunpack.c.l.b16 %v1684
        %v2741 = vunpack.c.l.b16 %v1685
        %v2742 = vunpack.c.l.b16 %v1686
        %v2743 = vunpack.c.l.b16 %v1687
        %v2744 = vunpack.c.l.b16 %v1688
        %v2745 = vunpack.c.l.b16 %v1689
        %v2746 = vunpack.c.l.b16 %v1690
        %v2747 = vunpack.c.l.b16 %v1691
        %v2748 = vunpack.c.l.b16 %v1692
        %v2749 = vunpack.c.l.b16 %v1693
        %v2750 = vunpack.c.l.b16 %v1694
        %v2751 = vunpack.c.l.b16 %v1695
        %v2752 = vunpack.c.l.b16 %v1696
        %v2753 = vunpack.c.l.b16 %v1697
        %v2754 = vunpack.c.l.b16 %v1698
        %v2755 = vunpack.c.l.b16 %v1699
        %v2756 = vunpack.c.l.b16 %v1700
        %v2757 = vunpack.c.l.b16 %v1701
        %v2758 = vunpack.c.l.b16 %v1702
        %v2759 = vunpack.c.l.b16 %v1703
        %v2760 = vunpack.c.l.b16 %v1704
        %v2761 = vunpack.c.l.b16 %v1705
        %v2762 = vunpack.c.l.b16 %v1706
        %v2763 = vunpack.c.l.b16 %v1707
        %v2764 = vunpack.c.l.b16 %v1708
        %v2765 = vunpack.c.l.b16 %v1709
        %v2766 = vunpack.c.l.b16 %v1710
        %v2767 = vunpack.c.l.b16 %v1711
        %v2768 = vunpack.c.l.b16 %v1712
        %v2769 = vunpack.c.l.b16 %v1713
        %v2770 = vunpack.c.l.b16 %v1714
        %v2771 = vunpack.c.l.b16 %v1715
        %v2772 = vunpack.c.l.b16 %v1716
        %v2773 = vunpack.c.l.b16 %v1717
        %v2774 = vunpack.c.l.b16 %v1718
        %v2775 = vunpack.c.l.b16 %v1719
        %v2776 = vunpack.c.l.b16 %v1720
        %v2777 = vunpack.c.l.b16 %v1721
        %v2778 = vunpack.c.l.b16 %v1722
        %v2779 = vunpack.c.l.b16 %v1723
        %v2780 = vunpack.c.l.b16 %v1724
        %v2781 = vunpack.c.l.b16 %v1725
        %v2782 = vunpack.c.l.b16 %v1726
        %v2783 = vunpack.c.l.b16 %v1727
        %v2784 = vunpack.c.l.b16 %v1728
        %v2785 = vunpack.c.l.b16 %v1729
        %v2786 = vpack.c.b16 %v2659, %v2658
        %v2787 = vpack.c.b16 %v2661, %v2660
        %v2788 = vpack.c.b16 %v2663, %v2662
        %v2789 = vpack.c.b16 %v2665, %v2664
        %v2790 = vpack.c.b16 %v2667, %v2666
        %v2791 = vpack.c.b16 %v2669, %v2668
        %v2792 = vpack.c.b16 %v2671, %v2670
        %v2793 = vpack.c.b16 %v2673, %v2672
        %v2794 = vpack.c.b16 %v2675, %v2674
        %v2795 = vpack.c.b16 %v2677, %v2676
        %v2796 = vpack.c.b16 %v2679, %v2678
        %v2797 = vpack.c.b16 %v2681, %v2680
        %v2798 = vpack.c.b16 %v2683, %v2682
        %v2799 = vpack.c.b16 %v2685, %v2684
        %v2800 = vpack.c.b16 %v2687, %v2686
        %v2801 = vpack.c.b16 %v2689, %v2688
        %v2802 = vpack.c.b16 %v2691, %v2690
        %v2803 = vpack.c.b16 %v2693, %v2692
        %v2804 = vpack.c.b16 %v2695, %v2694
        %v2805 = vpack.c.b16 %v2697, %v2696
        %v2806 = vpack.c.b16 %v2699, %v2698
        %v2807 = vpack.c.b16 %v2701, %v2700
        %v2808 = vpack.c.b16 %v2703, %v2702
        %v2809 = vpack.c.b16 %v2705, %v2704
        %v2810 = vpack.c.b16 %v2707, %v2706
        %v2811 = vpack.c.b16 %v2709, %v2708
        %v2812 = vpack.c.b16 %v2711, %v2710
        %v2813 = vpack.c.b16 %v2713, %v2712
        %v2814 = vpack.c.b16 %v2715, %v2714
        %v2815 = vpack.c.b16 %v2717, %v2716
        %v2816 = vpack.c.b16 %v2719, %v2718
        %v2817 = vpack.c.b16 %v2721, %v2720
        %v2818 = vpack.c.b16 %v2723, %v2722
        %v2819 = vpack.c.b16 %v2725, %v2724
        %v2820 = vpack.c.b16 %v2727, %v2726
        %v2821 = vpack.c.b16 %v2729, %v2728
        %v2822 = vpack.c.b16 %v2731, %v2730
        %v2823 = vpack.c.b16 %v2733, %v2732
        %v2824 = vpack.c.b16 %v2735, %v2734
        %v2825 = vpack.c.b16 %v2737, %v2736
        %v2826 = vpack.c.b16 %v2739, %v2738
        %v2827 = vpack.c.b16 %v2741, %v2740
        %v2828 = vpack.c.b16 %v2743, %v2742
        %v2829 = vpack.c.b16 %v2745, %v2744
        %v2830 = vpack.c.b16 %v2747, %v2746
        %v2831 = vpack.c.b16 %v2749, %v2748
        %v2832 = vpack.c.b16 %v2751, %v2750
        %v2833 = vpack.c.b16 %v2753, %v2752
        %v2834 = vpack.c.b16 %v2755, %v2754
        %v2835 = vpack.c.b16 %v2757, %v2756
        %v2836 = vpack.c.b16 %v2759, %v2758
        %v2837 = vpack.c.b16 %v2761, %v2760
        %v2838 = vpack.c.b16 %v2763, %v2762
        %v2839 = vpack.c.b16 %v2765, %v2764
        %v2840 = vpack.c.b16 %v2767, %v2766
        %v2841 = vpack.c.b16 %v2769, %v2768
        %v2842 = vpack.c.b16 %v2771, %v2770
        %v2843 = vpack.c.b16 %v2773, %v2772
        %v2844 = vpack.c.b16 %v2775, %v2774
        %v2845 = vpack.c.b16 %v2777, %v2776
        %v2846 = vpack.c.b16 %v2779, %v2778
        %v2847 = vpack.c.b16 %v2781, %v2780
        %v2848 = vpack.c.b16 %v2783, %v2782
        %v2849 = vpack.c.b16 %v2785, %v2784
        %2914 = vmatpush.bf16.msra.mxu0 %v2793
        %2915 = vmatpush.bf16.msra.mxu0 %v2792
        %2916 = vmatpush.bf16.msra.mxu0 %v2791
        %2917 = vmatpush.bf16.msra.mxu0 %v2790
        %2918 = vmatpush.bf16.msra.mxu0 %v2789
        %2919 = vmatpush.bf16.msra.mxu0 %v2788
        %2920 = vmatpush.bf16.msra.mxu0 %v2787
        %2921 = vmatpush.bf16.msra.mxu0 %v2786
        %2922 = vmatmul.bf16.gmra.mxu0 %v2210
        %v2923 = vpop.f32.mrf.mxu0
        %v2924 = vadd.f32 0.0, %v2923
        %v2925 = vpop.f32.mrf.mxu0
        %v2926 = vadd.f32 0.0, %v2925
        %2927 = vmatmul.bf16.gmra.mxu0 %v2218
        %v2928 = vpop.f32.mrf.mxu0
        %v2929 = vadd.f32 0.0, %v2928
        %v2930 = vpop.f32.mrf.mxu0
        %v2931 = vadd.f32 0.0, %v2930
        %2932 = vmatmul.bf16.gmra.mxu0 %v2226
        %v2933 = vpop.f32.mrf.mxu0
        %v2934 = vadd.f32 0.0, %v2933
        %v2935 = vpop.f32.mrf.mxu0
        %v2936 = vadd.f32 0.0, %v2935
        %2937 = vmatmul.bf16.gmra.mxu0 %v2234
        %v2938 = vpop.f32.mrf.mxu0
        %v2939 = vadd.f32 0.0, %v2938
        %v2940 = vpop.f32.mrf.mxu0
        %v2941 = vadd.f32 0.0, %v2940
        %2942 = vmatmul.bf16.gmra.mxu0 %v2242
        %v2943 = vpop.f32.mrf.mxu0
        %v2944 = vadd.f32 0.0, %v2943
        %v2945 = vpop.f32.mrf.mxu0
        %v2946 = vadd.f32 0.0, %v2945
        %2947 = vmatmul.bf16.gmra.mxu0 %v2250
        %v2948 = vpop.f32.mrf.mxu0
        %v2949 = vadd.f32 0.0, %v2948
        %v2950 = vpop.f32.mrf.mxu0
        %v2951 = vadd.f32 0.0, %v2950
        %2952 = vmatmul.bf16.gmra.mxu0 %v2258
        %v2953 = vpop.f32.mrf.mxu0
        %v2954 = vadd.f32 0.0, %v2953
        %v2955 = vpop.f32.mrf.mxu0
        %v2956 = vadd.f32 0.0, %v2955
        %2957 = vmatmul.bf16.gmra.mxu0 %v2266
        %v2958 = vpop.f32.mrf.mxu0
        %v2959 = vadd.f32 0.0, %v2958
        %v2960 = vpop.f32.mrf.mxu0
        %v2961 = vadd.f32 0.0, %v2960
        %2962 = vmatmul.bf16.gmra.mxu0 %v2274
        %v2963 = vpop.f32.mrf.mxu0
        %v2964 = vadd.f32 0.0, %v2963
        %v2965 = vpop.f32.mrf.mxu0
        %v2966 = vadd.f32 0.0, %v2965
        %2967 = vmatmul.bf16.gmra.mxu0 %v2282
        %v2968 = vpop.f32.mrf.mxu0
        %v2969 = vadd.f32 0.0, %v2968
        %v2970 = vpop.f32.mrf.mxu0
        %v2971 = vadd.f32 0.0, %v2970
        %2972 = vmatmul.bf16.gmra.mxu0 %v2290
        %v2973 = vpop.f32.mrf.mxu0
        %v2974 = vadd.f32 0.0, %v2973
        %v2975 = vpop.f32.mrf.mxu0
        %v2976 = vadd.f32 0.0, %v2975
        %2977 = vmatmul.bf16.gmra.mxu0 %v2298
        %v2978 = vpop.f32.mrf.mxu0
        %v2979 = vadd.f32 0.0, %v2978
        %v2980 = vpop.f32.mrf.mxu0
        %v2981 = vadd.f32 0.0, %v2980
        %2982 = vmatmul.bf16.gmra.mxu0 %v2306
        %v2983 = vpop.f32.mrf.mxu0
        %v2984 = vadd.f32 0.0, %v2983
        %v2985 = vpop.f32.mrf.mxu0
        %v2986 = vadd.f32 0.0, %v2985
        %2987 = vmatmul.bf16.gmra.mxu0 %v2314
        %v2988 = vpop.f32.mrf.mxu0
        %v2989 = vadd.f32 0.0, %v2988
        %v2990 = vpop.f32.mrf.mxu0
        %v2991 = vadd.f32 0.0, %v2990
        %2992 = vmatmul.bf16.gmra.mxu0 %v2322
        %v2993 = vpop.f32.mrf.mxu0
        %v2994 = vadd.f32 0.0, %v2993
        %v2995 = vpop.f32.mrf.mxu0
        %v2996 = vadd.f32 0.0, %v2995
        %2997 = vmatmul.bf16.gmra.mxu0 %v2330
        %v2998 = vpop.f32.mrf.mxu0
        %v2999 = vadd.f32 0.0, %v2998
        %v3000 = vpop.f32.mrf.mxu0
        %v3001 = vadd.f32 0.0, %v3000
        %3002 = vmatmul.bf16.gmra.mxu0 %v2338
        %v3003 = vpop.f32.mrf.mxu0
        %v3004 = vadd.f32 0.0, %v3003
        %v3005 = vpop.f32.mrf.mxu0
        %v3006 = vadd.f32 0.0, %v3005
        %3007 = vmatmul.bf16.gmra.mxu0 %v2346
        %v3008 = vpop.f32.mrf.mxu0
        %v3009 = vadd.f32 0.0, %v3008
        %v3010 = vpop.f32.mrf.mxu0
        %v3011 = vadd.f32 0.0, %v3010
        %3012 = vmatmul.bf16.gmra.mxu0 %v2354
        %v3013 = vpop.f32.mrf.mxu0
        %v3014 = vadd.f32 0.0, %v3013
        %v3015 = vpop.f32.mrf.mxu0
        %v3016 = vadd.f32 0.0, %v3015
        %3017 = vmatmul.bf16.gmra.mxu0 %v2362
        %v3018 = vpop.f32.mrf.mxu0
        %v3019 = vadd.f32 0.0, %v3018
        %v3020 = vpop.f32.mrf.mxu0
        %v3021 = vadd.f32 0.0, %v3020
        %3022 = vdwg.mxu0
        %3023 = vmatpush.bf16.msra.mxu0 %v2801
        %3024 = vmatpush.bf16.msra.mxu0 %v2800
        %3025 = vmatpush.bf16.msra.mxu0 %v2799
        %3026 = vmatpush.bf16.msra.mxu0 %v2798
        %3027 = vmatpush.bf16.msra.mxu0 %v2797
        %3028 = vmatpush.bf16.msra.mxu0 %v2796
        %3029 = vmatpush.bf16.msra.mxu0 %v2795
        %3030 = vmatpush.bf16.msra.mxu0 %v2794
        %3031 = vmatmul.bf16.gmra.mxu0 %v2211
        %v3032 = vpop.f32.mrf.mxu0
        %v3033 = vadd.f32 %v2924, %v3032
        %v3034 = vpop.f32.mrf.mxu0
        %v3035 = vadd.f32 %v2926, %v3034
        %3036 = vmatmul.bf16.gmra.mxu0 %v2219
        %v3037 = vpop.f32.mrf.mxu0
        %v3038 = vadd.f32 %v2929, %v3037
        %v3039 = vpop.f32.mrf.mxu0
        %v3040 = vadd.f32 %v2931, %v3039
        %3041 = vmatmul.bf16.gmra.mxu0 %v2227
        %v3042 = vpop.f32.mrf.mxu0
        %v3043 = vadd.f32 %v2934, %v3042
        %v3044 = vpop.f32.mrf.mxu0
        %v3045 = vadd.f32 %v2936, %v3044
        %3046 = vmatmul.bf16.gmra.mxu0 %v2235
        %v3047 = vpop.f32.mrf.mxu0
        %v3048 = vadd.f32 %v2939, %v3047
        %v3049 = vpop.f32.mrf.mxu0
        %v3050 = vadd.f32 %v2941, %v3049
        %3051 = vmatmul.bf16.gmra.mxu0 %v2243
        %v3052 = vpop.f32.mrf.mxu0
        %v3053 = vadd.f32 %v2944, %v3052
        %v3054 = vpop.f32.mrf.mxu0
        %v3055 = vadd.f32 %v2946, %v3054
        %3056 = vmatmul.bf16.gmra.mxu0 %v2251
        %v3057 = vpop.f32.mrf.mxu0
        %v3058 = vadd.f32 %v2949, %v3057
        %v3059 = vpop.f32.mrf.mxu0
        %v3060 = vadd.f32 %v2951, %v3059
        %3061 = vmatmul.bf16.gmra.mxu0 %v2259
        %v3062 = vpop.f32.mrf.mxu0
        %v3063 = vadd.f32 %v2954, %v3062
        %v3064 = vpop.f32.mrf.mxu0
        %v3065 = vadd.f32 %v2956, %v3064
        %3066 = vmatmul.bf16.gmra.mxu0 %v2267
        %v3067 = vpop.f32.mrf.mxu0
        %v3068 = vadd.f32 %v2959, %v3067
        %v3069 = vpop.f32.mrf.mxu0
        %v3070 = vadd.f32 %v2961, %v3069
        %3071 = vmatmul.bf16.gmra.mxu0 %v2275
        %v3072 = vpop.f32.mrf.mxu0
        %v3073 = vadd.f32 %v2964, %v3072
        %v3074 = vpop.f32.mrf.mxu0
        %v3075 = vadd.f32 %v2966, %v3074
        %3076 = vmatmul.bf16.gmra.mxu0 %v2283
        %v3077 = vpop.f32.mrf.mxu0
        %v3078 = vadd.f32 %v2969, %v3077
        %v3079 = vpop.f32.mrf.mxu0
        %v3080 = vadd.f32 %v2971, %v3079
        %3081 = vmatmul.bf16.gmra.mxu0 %v2291
        %v3082 = vpop.f32.mrf.mxu0
        %v3083 = vadd.f32 %v2974, %v3082
        %v3084 = vpop.f32.mrf.mxu0
        %v3085 = vadd.f32 %v2976, %v3084
        %3086 = vmatmul.bf16.gmra.mxu0 %v2299
        %v3087 = vpop.f32.mrf.mxu0
        %v3088 = vadd.f32 %v2979, %v3087
        %v3089 = vpop.f32.mrf.mxu0
        %v3090 = vadd.f32 %v2981, %v3089
        %3091 = vmatmul.bf16.gmra.mxu0 %v2307
        %v3092 = vpop.f32.mrf.mxu0
        %v3093 = vadd.f32 %v2984, %v3092
        %v3094 = vpop.f32.mrf.mxu0
        %v3095 = vadd.f32 %v2986, %v3094
        %3096 = vmatmul.bf16.gmra.mxu0 %v2315
        %v3097 = vpop.f32.mrf.mxu0
        %v3098 = vadd.f32 %v2989, %v3097
        %v3099 = vpop.f32.mrf.mxu0
        %v3100 = vadd.f32 %v2991, %v3099
        %3101 = vmatmul.bf16.gmra.mxu0 %v2323
        %v3102 = vpop.f32.mrf.mxu0
        %v3103 = vadd.f32 %v2994, %v3102
        %v3104 = vpop.f32.mrf.mxu0
        %v3105 = vadd.f32 %v2996, %v3104
        %3106 = vmatmul.bf16.gmra.mxu0 %v2331
        %v3107 = vpop.f32.mrf.mxu0
        %v3108 = vadd.f32 %v2999, %v3107
        %v3109 = vpop.f32.mrf.mxu0
        %v3110 = vadd.f32 %v3001, %v3109
        %3111 = vmatmul.bf16.gmra.mxu0 %v2339
        %v3112 = vpop.f32.mrf.mxu0
        %v3113 = vadd.f32 %v3004, %v3112
        %v3114 = vpop.f32.mrf.mxu0
        %v3115 = vadd.f32 %v3006, %v3114
        %3116 = vmatmul.bf16.gmra.mxu0 %v2347
        %v3117 = vpop.f32.mrf.mxu0
        %v3118 = vadd.f32 %v3009, %v3117
        %v3119 = vpop.f32.mrf.mxu0
        %v3120 = vadd.f32 %v3011, %v3119
        %3121 = vmatmul.bf16.gmra.mxu0 %v2355
        %v3122 = vpop.f32.mrf.mxu0
        %v3123 = vadd.f32 %v3014, %v3122
        %v3124 = vpop.f32.mrf.mxu0
        %v3125 = vadd.f32 %v3016, %v3124
        %3126 = vmatmul.bf16.gmra.mxu0 %v2363
        %v3127 = vpop.f32.mrf.mxu0
        %v3128 = vadd.f32 %v3019, %v3127
        %v3129 = vpop.f32.mrf.mxu0
        %v3130 = vadd.f32 %v3021, %v3129
        %3131 = vdwg.mxu0
        %3132 = vmatpush.bf16.msra.mxu0 %v2809
        %3133 = vmatpush.bf16.msra.mxu0 %v2808
        %3134 = vmatpush.bf16.msra.mxu0 %v2807
        %3135 = vmatpush.bf16.msra.mxu0 %v2806
        %3136 = vmatpush.bf16.msra.mxu0 %v2805
        %3137 = vmatpush.bf16.msra.mxu0 %v2804
        %3138 = vmatpush.bf16.msra.mxu0 %v2803
        %3139 = vmatpush.bf16.msra.mxu0 %v2802
        %3140 = vmatmul.bf16.gmra.mxu0 %v2212
        %v3141 = vpop.f32.mrf.mxu0
        %v3142 = vadd.f32 %v3033, %v3141
        %v3143 = vpop.f32.mrf.mxu0
        %v3144 = vadd.f32 %v3035, %v3143
        %3145 = vmatmul.bf16.gmra.mxu0 %v2220
        %v3146 = vpop.f32.mrf.mxu0
        %v3147 = vadd.f32 %v3038, %v3146
        %v3148 = vpop.f32.mrf.mxu0
        %v3149 = vadd.f32 %v3040, %v3148
        %3150 = vmatmul.bf16.gmra.mxu0 %v2228
        %v3151 = vpop.f32.mrf.mxu0
        %v3152 = vadd.f32 %v3043, %v3151
        %v3153 = vpop.f32.mrf.mxu0
        %v3154 = vadd.f32 %v3045, %v3153
        %3155 = vmatmul.bf16.gmra.mxu0 %v2236
        %v3156 = vpop.f32.mrf.mxu0
        %v3157 = vadd.f32 %v3048, %v3156
        %v3158 = vpop.f32.mrf.mxu0
        %v3159 = vadd.f32 %v3050, %v3158
        %3160 = vmatmul.bf16.gmra.mxu0 %v2244
        %v3161 = vpop.f32.mrf.mxu0
        %v3162 = vadd.f32 %v3053, %v3161
        %v3163 = vpop.f32.mrf.mxu0
        %v3164 = vadd.f32 %v3055, %v3163
        %3165 = vmatmul.bf16.gmra.mxu0 %v2252
        %v3166 = vpop.f32.mrf.mxu0
        %v3167 = vadd.f32 %v3058, %v3166
        %v3168 = vpop.f32.mrf.mxu0
        %v3169 = vadd.f32 %v3060, %v3168
        %3170 = vmatmul.bf16.gmra.mxu0 %v2260
        %v3171 = vpop.f32.mrf.mxu0
        %v3172 = vadd.f32 %v3063, %v3171
        %v3173 = vpop.f32.mrf.mxu0
        %v3174 = vadd.f32 %v3065, %v3173
        %3175 = vmatmul.bf16.gmra.mxu0 %v2268
        %v3176 = vpop.f32.mrf.mxu0
        %v3177 = vadd.f32 %v3068, %v3176
        %v3178 = vpop.f32.mrf.mxu0
        %v3179 = vadd.f32 %v3070, %v3178
        %3180 = vmatmul.bf16.gmra.mxu0 %v2276
        %v3181 = vpop.f32.mrf.mxu0
        %v3182 = vadd.f32 %v3073, %v3181
        %v3183 = vpop.f32.mrf.mxu0
        %v3184 = vadd.f32 %v3075, %v3183
        %3185 = vmatmul.bf16.gmra.mxu0 %v2284
        %v3186 = vpop.f32.mrf.mxu0
        %v3187 = vadd.f32 %v3078, %v3186
        %v3188 = vpop.f32.mrf.mxu0
        %v3189 = vadd.f32 %v3080, %v3188
        %3190 = vmatmul.bf16.gmra.mxu0 %v2292
        %v3191 = vpop.f32.mrf.mxu0
        %v3192 = vadd.f32 %v3083, %v3191
        %v3193 = vpop.f32.mrf.mxu0
        %v3194 = vadd.f32 %v3085, %v3193
        %3195 = vmatmul.bf16.gmra.mxu0 %v2300
        %v3196 = vpop.f32.mrf.mxu0
        %v3197 = vadd.f32 %v3088, %v3196
        %v3198 = vpop.f32.mrf.mxu0
        %v3199 = vadd.f32 %v3090, %v3198
        %3200 = vmatmul.bf16.gmra.mxu0 %v2308
        %v3201 = vpop.f32.mrf.mxu0
        %v3202 = vadd.f32 %v3093, %v3201
        %v3203 = vpop.f32.mrf.mxu0
        %v3204 = vadd.f32 %v3095, %v3203
        %3205 = vmatmul.bf16.gmra.mxu0 %v2316
        %v3206 = vpop.f32.mrf.mxu0
        %v3207 = vadd.f32 %v3098, %v3206
        %v3208 = vpop.f32.mrf.mxu0
        %v3209 = vadd.f32 %v3100, %v3208
        %3210 = vmatmul.bf16.gmra.mxu0 %v2324
        %v3211 = vpop.f32.mrf.mxu0
        %v3212 = vadd.f32 %v3103, %v3211
        %v3213 = vpop.f32.mrf.mxu0
        %v3214 = vadd.f32 %v3105, %v3213
        %3215 = vmatmul.bf16.gmra.mxu0 %v2332
        %v3216 = vpop.f32.mrf.mxu0
        %v3217 = vadd.f32 %v3108, %v3216
        %v3218 = vpop.f32.mrf.mxu0
        %v3219 = vadd.f32 %v3110, %v3218
        %3220 = vmatmul.bf16.gmra.mxu0 %v2340
        %v3221 = vpop.f32.mrf.mxu0
        %v3222 = vadd.f32 %v3113, %v3221
        %v3223 = vpop.f32.mrf.mxu0
        %v3224 = vadd.f32 %v3115, %v3223
        %3225 = vmatmul.bf16.gmra.mxu0 %v2348
        %v3226 = vpop.f32.mrf.mxu0
        %v3227 = vadd.f32 %v3118, %v3226
        %v3228 = vpop.f32.mrf.mxu0
        %v3229 = vadd.f32 %v3120, %v3228
        %3230 = vmatmul.bf16.gmra.mxu0 %v2356
        %v3231 = vpop.f32.mrf.mxu0
        %v3232 = vadd.f32 %v3123, %v3231
        %v3233 = vpop.f32.mrf.mxu0
        %v3234 = vadd.f32 %v3125, %v3233
        %3235 = vmatmul.bf16.gmra.mxu0 %v2364
        %v3236 = vpop.f32.mrf.mxu0
        %v3237 = vadd.f32 %v3128, %v3236
        %v3238 = vpop.f32.mrf.mxu0
        %v3239 = vadd.f32 %v3130, %v3238
        %3240 = vdwg.mxu0
        %3241 = vmatpush.bf16.msra.mxu0 %v2817
        %3242 = vmatpush.bf16.msra.mxu0 %v2816
        %3243 = vmatpush.bf16.msra.mxu0 %v2815
        %3244 = vmatpush.bf16.msra.mxu0 %v2814
        %3245 = vmatpush.bf16.msra.mxu0 %v2813
        %3246 = vmatpush.bf16.msra.mxu0 %v2812
        %3247 = vmatpush.bf16.msra.mxu0 %v2811
        %3248 = vmatpush.bf16.msra.mxu0 %v2810
        %3249 = vmatmul.bf16.gmra.mxu0 %v2213
        %v3250 = vpop.f32.mrf.mxu0
        %v3251 = vadd.f32 %v3142, %v3250
        %v3252 = vpop.f32.mrf.mxu0
        %v3253 = vadd.f32 %v3144, %v3252
        %3254 = vmatmul.bf16.gmra.mxu0 %v2221
        %v3255 = vpop.f32.mrf.mxu0
        %v3256 = vadd.f32 %v3147, %v3255
        %v3257 = vpop.f32.mrf.mxu0
        %v3258 = vadd.f32 %v3149, %v3257
        %3259 = vmatmul.bf16.gmra.mxu0 %v2229
        %v3260 = vpop.f32.mrf.mxu0
        %v3261 = vadd.f32 %v3152, %v3260
        %v3262 = vpop.f32.mrf.mxu0
        %v3263 = vadd.f32 %v3154, %v3262
        %3264 = vmatmul.bf16.gmra.mxu0 %v2237
        %v3265 = vpop.f32.mrf.mxu0
        %v3266 = vadd.f32 %v3157, %v3265
        %v3267 = vpop.f32.mrf.mxu0
        %v3268 = vadd.f32 %v3159, %v3267
        %3269 = vmatmul.bf16.gmra.mxu0 %v2245
        %v3270 = vpop.f32.mrf.mxu0
        %v3271 = vadd.f32 %v3162, %v3270
        %v3272 = vpop.f32.mrf.mxu0
        %v3273 = vadd.f32 %v3164, %v3272
        %3274 = vmatmul.bf16.gmra.mxu0 %v2253
        %v3275 = vpop.f32.mrf.mxu0
        %v3276 = vadd.f32 %v3167, %v3275
        %v3277 = vpop.f32.mrf.mxu0
        %v3278 = vadd.f32 %v3169, %v3277
        %3279 = vmatmul.bf16.gmra.mxu0 %v2261
        %v3280 = vpop.f32.mrf.mxu0
        %v3281 = vadd.f32 %v3172, %v3280
        %v3282 = vpop.f32.mrf.mxu0
        %v3283 = vadd.f32 %v3174, %v3282
        %3284 = vmatmul.bf16.gmra.mxu0 %v2269
        %v3285 = vpop.f32.mrf.mxu0
        %v3286 = vadd.f32 %v3177, %v3285
        %v3287 = vpop.f32.mrf.mxu0
        %v3288 = vadd.f32 %v3179, %v3287
        %3289 = vmatmul.bf16.gmra.mxu0 %v2277
        %v3290 = vpop.f32.mrf.mxu0
        %v3291 = vadd.f32 %v3182, %v3290
        %v3292 = vpop.f32.mrf.mxu0
        %v3293 = vadd.f32 %v3184, %v3292
        %3294 = vmatmul.bf16.gmra.mxu0 %v2285
        %v3295 = vpop.f32.mrf.mxu0
        %v3296 = vadd.f32 %v3187, %v3295
        %v3297 = vpop.f32.mrf.mxu0
        %v3298 = vadd.f32 %v3189, %v3297
        %3299 = vmatmul.bf16.gmra.mxu0 %v2293
        %v3300 = vpop.f32.mrf.mxu0
        %v3301 = vadd.f32 %v3192, %v3300
        %v3302 = vpop.f32.mrf.mxu0
        %v3303 = vadd.f32 %v3194, %v3302
        %3304 = vmatmul.bf16.gmra.mxu0 %v2301
        %v3305 = vpop.f32.mrf.mxu0
        %v3306 = vadd.f32 %v3197, %v3305
        %v3307 = vpop.f32.mrf.mxu0
        %v3308 = vadd.f32 %v3199, %v3307
        %3309 = vmatmul.bf16.gmra.mxu0 %v2309
        %v3310 = vpop.f32.mrf.mxu0
        %v3311 = vadd.f32 %v3202, %v3310
        %v3312 = vpop.f32.mrf.mxu0
        %v3313 = vadd.f32 %v3204, %v3312
        %3314 = vmatmul.bf16.gmra.mxu0 %v2317
        %v3315 = vpop.f32.mrf.mxu0
        %v3316 = vadd.f32 %v3207, %v3315
        %v3317 = vpop.f32.mrf.mxu0
        %v3318 = vadd.f32 %v3209, %v3317
        %3319 = vmatmul.bf16.gmra.mxu0 %v2325
        %v3320 = vpop.f32.mrf.mxu0
        %v3321 = vadd.f32 %v3212, %v3320
        %v3322 = vpop.f32.mrf.mxu0
        %v3323 = vadd.f32 %v3214, %v3322
        %3324 = vmatmul.bf16.gmra.mxu0 %v2333
        %v3325 = vpop.f32.mrf.mxu0
        %v3326 = vadd.f32 %v3217, %v3325
        %v3327 = vpop.f32.mrf.mxu0
        %v3328 = vadd.f32 %v3219, %v3327
        %3329 = vmatmul.bf16.gmra.mxu0 %v2341
        %v3330 = vpop.f32.mrf.mxu0
        %v3331 = vadd.f32 %v3222, %v3330
        %v3332 = vpop.f32.mrf.mxu0
        %v3333 = vadd.f32 %v3224, %v3332
        %3334 = vmatmul.bf16.gmra.mxu0 %v2349
        %v3335 = vpop.f32.mrf.mxu0
        %v3336 = vadd.f32 %v3227, %v3335
        %v3337 = vpop.f32.mrf.mxu0
        %v3338 = vadd.f32 %v3229, %v3337
        %3339 = vmatmul.bf16.gmra.mxu0 %v2357
        %v3340 = vpop.f32.mrf.mxu0
        %v3341 = vadd.f32 %v3232, %v3340
        %v3342 = vpop.f32.mrf.mxu0
        %v3343 = vadd.f32 %v3234, %v3342
        %3344 = vmatmul.bf16.gmra.mxu0 %v2365
        %v3345 = vpop.f32.mrf.mxu0
        %v3346 = vadd.f32 %v3237, %v3345
        %v3347 = vpop.f32.mrf.mxu0
        %v3348 = vadd.f32 %v3239, %v3347
        %3349 = vdwg.mxu0
        %3350 = vmatpush.bf16.msra.mxu0 %v2825
        %3351 = vmatpush.bf16.msra.mxu0 %v2824
        %3352 = vmatpush.bf16.msra.mxu0 %v2823
        %3353 = vmatpush.bf16.msra.mxu0 %v2822
        %3354 = vmatpush.bf16.msra.mxu0 %v2821
        %3355 = vmatpush.bf16.msra.mxu0 %v2820
        %3356 = vmatpush.bf16.msra.mxu0 %v2819
        %3357 = vmatpush.bf16.msra.mxu0 %v2818
        %3358 = vmatmul.bf16.gmra.mxu0 %v2214
        %v3359 = vpop.f32.mrf.mxu0
        %v3360 = vadd.f32 %v3251, %v3359
        %v3361 = vpop.f32.mrf.mxu0
        %v3362 = vadd.f32 %v3253, %v3361
        %3363 = vmatmul.bf16.gmra.mxu0 %v2222
        %v3364 = vpop.f32.mrf.mxu0
        %v3365 = vadd.f32 %v3256, %v3364
        %v3366 = vpop.f32.mrf.mxu0
        %v3367 = vadd.f32 %v3258, %v3366
        %3368 = vmatmul.bf16.gmra.mxu0 %v2230
        %v3369 = vpop.f32.mrf.mxu0
        %v3370 = vadd.f32 %v3261, %v3369
        %v3371 = vpop.f32.mrf.mxu0
        %v3372 = vadd.f32 %v3263, %v3371
        %3373 = vmatmul.bf16.gmra.mxu0 %v2238
        %v3374 = vpop.f32.mrf.mxu0
        %v3375 = vadd.f32 %v3266, %v3374
        %v3376 = vpop.f32.mrf.mxu0
        %v3377 = vadd.f32 %v3268, %v3376
        %3378 = vmatmul.bf16.gmra.mxu0 %v2246
        %v3379 = vpop.f32.mrf.mxu0
        %v3380 = vadd.f32 %v3271, %v3379
        %v3381 = vpop.f32.mrf.mxu0
        %v3382 = vadd.f32 %v3273, %v3381
        %3383 = vmatmul.bf16.gmra.mxu0 %v2254
        %v3384 = vpop.f32.mrf.mxu0
        %v3385 = vadd.f32 %v3276, %v3384
        %v3386 = vpop.f32.mrf.mxu0
        %v3387 = vadd.f32 %v3278, %v3386
        %3388 = vmatmul.bf16.gmra.mxu0 %v2262
        %v3389 = vpop.f32.mrf.mxu0
        %v3390 = vadd.f32 %v3281, %v3389
        %v3391 = vpop.f32.mrf.mxu0
        %v3392 = vadd.f32 %v3283, %v3391
        %3393 = vmatmul.bf16.gmra.mxu0 %v2270
        %v3394 = vpop.f32.mrf.mxu0
        %v3395 = vadd.f32 %v3286, %v3394
        %v3396 = vpop.f32.mrf.mxu0
        %v3397 = vadd.f32 %v3288, %v3396
        %3398 = vmatmul.bf16.gmra.mxu0 %v2278
        %v3399 = vpop.f32.mrf.mxu0
        %v3400 = vadd.f32 %v3291, %v3399
        %v3401 = vpop.f32.mrf.mxu0
        %v3402 = vadd.f32 %v3293, %v3401
        %3403 = vmatmul.bf16.gmra.mxu0 %v2286
        %v3404 = vpop.f32.mrf.mxu0
        %v3405 = vadd.f32 %v3296, %v3404
        %v3406 = vpop.f32.mrf.mxu0
        %v3407 = vadd.f32 %v3298, %v3406
        %3408 = vmatmul.bf16.gmra.mxu0 %v2294
        %v3409 = vpop.f32.mrf.mxu0
        %v3410 = vadd.f32 %v3301, %v3409
        %v3411 = vpop.f32.mrf.mxu0
        %v3412 = vadd.f32 %v3303, %v3411
        %3413 = vmatmul.bf16.gmra.mxu0 %v2302
        %v3414 = vpop.f32.mrf.mxu0
        %v3415 = vadd.f32 %v3306, %v3414
        %v3416 = vpop.f32.mrf.mxu0
        %v3417 = vadd.f32 %v3308, %v3416
        %3418 = vmatmul.bf16.gmra.mxu0 %v2310
        %v3419 = vpop.f32.mrf.mxu0
        %v3420 = vadd.f32 %v3311, %v3419
        %v3421 = vpop.f32.mrf.mxu0
        %v3422 = vadd.f32 %v3313, %v3421
        %3423 = vmatmul.bf16.gmra.mxu0 %v2318
        %v3424 = vpop.f32.mrf.mxu0
        %v3425 = vadd.f32 %v3316, %v3424
        %v3426 = vpop.f32.mrf.mxu0
        %v3427 = vadd.f32 %v3318, %v3426
        %3428 = vmatmul.bf16.gmra.mxu0 %v2326
        %v3429 = vpop.f32.mrf.mxu0
        %v3430 = vadd.f32 %v3321, %v3429
        %v3431 = vpop.f32.mrf.mxu0
        %v3432 = vadd.f32 %v3323, %v3431
        %3433 = vmatmul.bf16.gmra.mxu0 %v2334
        %v3434 = vpop.f32.mrf.mxu0
        %v3435 = vadd.f32 %v3326, %v3434
        %v3436 = vpop.f32.mrf.mxu0
        %v3437 = vadd.f32 %v3328, %v3436
        %3438 = vmatmul.bf16.gmra.mxu0 %v2342
        %v3439 = vpop.f32.mrf.mxu0
        %v3440 = vadd.f32 %v3331, %v3439
        %v3441 = vpop.f32.mrf.mxu0
        %v3442 = vadd.f32 %v3333, %v3441
        %3443 = vmatmul.bf16.gmra.mxu0 %v2350
        %v3444 = vpop.f32.mrf.mxu0
        %v3445 = vadd.f32 %v3336, %v3444
        %v3446 = vpop.f32.mrf.mxu0
        %v3447 = vadd.f32 %v3338, %v3446
        %3448 = vmatmul.bf16.gmra.mxu0 %v2358
        %v3449 = vpop.f32.mrf.mxu0
        %v3450 = vadd.f32 %v3341, %v3449
        %v3451 = vpop.f32.mrf.mxu0
        %v3452 = vadd.f32 %v3343, %v3451
        %3453 = vmatmul.bf16.gmra.mxu0 %v2366
        %v3454 = vpop.f32.mrf.mxu0
        %v3455 = vadd.f32 %v3346, %v3454
        %v3456 = vpop.f32.mrf.mxu0
        %v3457 = vadd.f32 %v3348, %v3456
        %3458 = vdwg.mxu0
        %3459 = vmatpush.bf16.msra.mxu0 %v2833
        %3460 = vmatpush.bf16.msra.mxu0 %v2832
        %3461 = vmatpush.bf16.msra.mxu0 %v2831
        %3462 = vmatpush.bf16.msra.mxu0 %v2830
        %3463 = vmatpush.bf16.msra.mxu0 %v2829
        %3464 = vmatpush.bf16.msra.mxu0 %v2828
        %3465 = vmatpush.bf16.msra.mxu0 %v2827
        %3466 = vmatpush.bf16.msra.mxu0 %v2826
        %3467 = vmatmul.bf16.gmra.mxu0 %v2215
        %v3468 = vpop.f32.mrf.mxu0
        %v3469 = vadd.f32 %v3360, %v3468
        %v3470 = vpop.f32.mrf.mxu0
        %v3471 = vadd.f32 %v3362, %v3470
        %3472 = vmatmul.bf16.gmra.mxu0 %v2223
        %v3473 = vpop.f32.mrf.mxu0
        %v3474 = vadd.f32 %v3365, %v3473
        %v3475 = vpop.f32.mrf.mxu0
        %v3476 = vadd.f32 %v3367, %v3475
        %3477 = vmatmul.bf16.gmra.mxu0 %v2231
        %v3478 = vpop.f32.mrf.mxu0
        %v3479 = vadd.f32 %v3370, %v3478
        %v3480 = vpop.f32.mrf.mxu0
        %v3481 = vadd.f32 %v3372, %v3480
        %3482 = vmatmul.bf16.gmra.mxu0 %v2239
        %v3483 = vpop.f32.mrf.mxu0
        %v3484 = vadd.f32 %v3375, %v3483
        %v3485 = vpop.f32.mrf.mxu0
        %v3486 = vadd.f32 %v3377, %v3485
        %3487 = vmatmul.bf16.gmra.mxu0 %v2247
        %v3488 = vpop.f32.mrf.mxu0
        %v3489 = vadd.f32 %v3380, %v3488
        %v3490 = vpop.f32.mrf.mxu0
        %v3491 = vadd.f32 %v3382, %v3490
        %3492 = vmatmul.bf16.gmra.mxu0 %v2255
        %v3493 = vpop.f32.mrf.mxu0
        %v3494 = vadd.f32 %v3385, %v3493
        %v3495 = vpop.f32.mrf.mxu0
        %v3496 = vadd.f32 %v3387, %v3495
        %3497 = vmatmul.bf16.gmra.mxu0 %v2263
        %v3498 = vpop.f32.mrf.mxu0
        %v3499 = vadd.f32 %v3390, %v3498
        %v3500 = vpop.f32.mrf.mxu0
        %v3501 = vadd.f32 %v3392, %v3500
        %3502 = vmatmul.bf16.gmra.mxu0 %v2271
        %v3503 = vpop.f32.mrf.mxu0
        %v3504 = vadd.f32 %v3395, %v3503
        %v3505 = vpop.f32.mrf.mxu0
        %v3506 = vadd.f32 %v3397, %v3505
        %3507 = vmatmul.bf16.gmra.mxu0 %v2279
        %v3508 = vpop.f32.mrf.mxu0
        %v3509 = vadd.f32 %v3400, %v3508
        %v3510 = vpop.f32.mrf.mxu0
        %v3511 = vadd.f32 %v3402, %v3510
        %3512 = vmatmul.bf16.gmra.mxu0 %v2287
        %v3513 = vpop.f32.mrf.mxu0
        %v3514 = vadd.f32 %v3405, %v3513
        %v3515 = vpop.f32.mrf.mxu0
        %v3516 = vadd.f32 %v3407, %v3515
        %3517 = vmatmul.bf16.gmra.mxu0 %v2295
        %v3518 = vpop.f32.mrf.mxu0
        %v3519 = vadd.f32 %v3410, %v3518
        %v3520 = vpop.f32.mrf.mxu0
        %v3521 = vadd.f32 %v3412, %v3520
        %3522 = vmatmul.bf16.gmra.mxu0 %v2303
        %v3523 = vpop.f32.mrf.mxu0
        %v3524 = vadd.f32 %v3415, %v3523
        %v3525 = vpop.f32.mrf.mxu0
        %v3526 = vadd.f32 %v3417, %v3525
        %3527 = vmatmul.bf16.gmra.mxu0 %v2311
        %v3528 = vpop.f32.mrf.mxu0
        %v3529 = vadd.f32 %v3420, %v3528
        %v3530 = vpop.f32.mrf.mxu0
        %v3531 = vadd.f32 %v3422, %v3530
        %3532 = vmatmul.bf16.gmra.mxu0 %v2319
        %v3533 = vpop.f32.mrf.mxu0
        %v3534 = vadd.f32 %v3425, %v3533
        %v3535 = vpop.f32.mrf.mxu0
        %v3536 = vadd.f32 %v3427, %v3535
        %3537 = vmatmul.bf16.gmra.mxu0 %v2327
        %v3538 = vpop.f32.mrf.mxu0
        %v3539 = vadd.f32 %v3430, %v3538
        %v3540 = vpop.f32.mrf.mxu0
        %v3541 = vadd.f32 %v3432, %v3540
        %3542 = vmatmul.bf16.gmra.mxu0 %v2335
        %v3543 = vpop.f32.mrf.mxu0
        %v3544 = vadd.f32 %v3435, %v3543
        %v3545 = vpop.f32.mrf.mxu0
        %v3546 = vadd.f32 %v3437, %v3545
        %3547 = vmatmul.bf16.gmra.mxu0 %v2343
        %v3548 = vpop.f32.mrf.mxu0
        %v3549 = vadd.f32 %v3440, %v3548
        %v3550 = vpop.f32.mrf.mxu0
        %v3551 = vadd.f32 %v3442, %v3550
        %3552 = vmatmul.bf16.gmra.mxu0 %v2351
        %v3553 = vpop.f32.mrf.mxu0
        %v3554 = vadd.f32 %v3445, %v3553
        %v3555 = vpop.f32.mrf.mxu0
        %v3556 = vadd.f32 %v3447, %v3555
        %3557 = vmatmul.bf16.gmra.mxu0 %v2359
        %v3558 = vpop.f32.mrf.mxu0
        %v3559 = vadd.f32 %v3450, %v3558
        %v3560 = vpop.f32.mrf.mxu0
        %v3561 = vadd.f32 %v3452, %v3560
        %3562 = vmatmul.bf16.gmra.mxu0 %v2367
        %v3563 = vpop.f32.mrf.mxu0
        %v3564 = vadd.f32 %v3455, %v3563
        %v3565 = vpop.f32.mrf.mxu0
        %v3566 = vadd.f32 %v3457, %v3565
        %3567 = vdwg.mxu0
        %3568 = vmatpush.bf16.msra.mxu0 %v2841
        %3569 = vmatpush.bf16.msra.mxu0 %v2840
        %3570 = vmatpush.bf16.msra.mxu0 %v2839
        %3571 = vmatpush.bf16.msra.mxu0 %v2838
        %3572 = vmatpush.bf16.msra.mxu0 %v2837
        %3573 = vmatpush.bf16.msra.mxu0 %v2836
        %3574 = vmatpush.bf16.msra.mxu0 %v2835
        %3575 = vmatpush.bf16.msra.mxu0 %v2834
        %3576 = vmatmul.bf16.gmra.mxu0 %v2216
        %v3577 = vpop.f32.mrf.mxu0
        %v3578 = vadd.f32 %v3469, %v3577
        %v3579 = vpop.f32.mrf.mxu0
        %v3580 = vadd.f32 %v3471, %v3579
        %3581 = vmatmul.bf16.gmra.mxu0 %v2224
        %v3582 = vpop.f32.mrf.mxu0
        %v3583 = vadd.f32 %v3474, %v3582
        %v3584 = vpop.f32.mrf.mxu0
        %v3585 = vadd.f32 %v3476, %v3584
        %3586 = vmatmul.bf16.gmra.mxu0 %v2232
        %v3587 = vpop.f32.mrf.mxu0
        %v3588 = vadd.f32 %v3479, %v3587
        %v3589 = vpop.f32.mrf.mxu0
        %v3590 = vadd.f32 %v3481, %v3589
        %3591 = vmatmul.bf16.gmra.mxu0 %v2240
        %v3592 = vpop.f32.mrf.mxu0
        %v3593 = vadd.f32 %v3484, %v3592
        %v3594 = vpop.f32.mrf.mxu0
        %v3595 = vadd.f32 %v3486, %v3594
        %3596 = vmatmul.bf16.gmra.mxu0 %v2248
        %v3597 = vpop.f32.mrf.mxu0
        %v3598 = vadd.f32 %v3489, %v3597
        %v3599 = vpop.f32.mrf.mxu0
        %v3600 = vadd.f32 %v3491, %v3599
        %3601 = vmatmul.bf16.gmra.mxu0 %v2256
        %v3602 = vpop.f32.mrf.mxu0
        %v3603 = vadd.f32 %v3494, %v3602
        %v3604 = vpop.f32.mrf.mxu0
        %v3605 = vadd.f32 %v3496, %v3604
        %3606 = vmatmul.bf16.gmra.mxu0 %v2264
        %v3607 = vpop.f32.mrf.mxu0
        %v3608 = vadd.f32 %v3499, %v3607
        %v3609 = vpop.f32.mrf.mxu0
        %v3610 = vadd.f32 %v3501, %v3609
        %3611 = vmatmul.bf16.gmra.mxu0 %v2272
        %v3612 = vpop.f32.mrf.mxu0
        %v3613 = vadd.f32 %v3504, %v3612
        %v3614 = vpop.f32.mrf.mxu0
        %v3615 = vadd.f32 %v3506, %v3614
        %3616 = vmatmul.bf16.gmra.mxu0 %v2280
        %v3617 = vpop.f32.mrf.mxu0
        %v3618 = vadd.f32 %v3509, %v3617
        %v3619 = vpop.f32.mrf.mxu0
        %v3620 = vadd.f32 %v3511, %v3619
        %3621 = vmatmul.bf16.gmra.mxu0 %v2288
        %v3622 = vpop.f32.mrf.mxu0
        %v3623 = vadd.f32 %v3514, %v3622
        %v3624 = vpop.f32.mrf.mxu0
        %v3625 = vadd.f32 %v3516, %v3624
        %3626 = vmatmul.bf16.gmra.mxu0 %v2296
        %v3627 = vpop.f32.mrf.mxu0
        %v3628 = vadd.f32 %v3519, %v3627
        %v3629 = vpop.f32.mrf.mxu0
        %v3630 = vadd.f32 %v3521, %v3629
        %3631 = vmatmul.bf16.gmra.mxu0 %v2304
        %v3632 = vpop.f32.mrf.mxu0
        %v3633 = vadd.f32 %v3524, %v3632
        %v3634 = vpop.f32.mrf.mxu0
        %v3635 = vadd.f32 %v3526, %v3634
        %3636 = vmatmul.bf16.gmra.mxu0 %v2312
        %v3637 = vpop.f32.mrf.mxu0
        %v3638 = vadd.f32 %v3529, %v3637
        %v3639 = vpop.f32.mrf.mxu0
        %v3640 = vadd.f32 %v3531, %v3639
        %3641 = vmatmul.bf16.gmra.mxu0 %v2320
        %v3642 = vpop.f32.mrf.mxu0
        %v3643 = vadd.f32 %v3534, %v3642
        %v3644 = vpop.f32.mrf.mxu0
        %v3645 = vadd.f32 %v3536, %v3644
        %3646 = vmatmul.bf16.gmra.mxu0 %v2328
        %v3647 = vpop.f32.mrf.mxu0
        %v3648 = vadd.f32 %v3539, %v3647
        %v3649 = vpop.f32.mrf.mxu0
        %v3650 = vadd.f32 %v3541, %v3649
        %3651 = vmatmul.bf16.gmra.mxu0 %v2336
        %v3652 = vpop.f32.mrf.mxu0
        %v3653 = vadd.f32 %v3544, %v3652
        %v3654 = vpop.f32.mrf.mxu0
        %v3655 = vadd.f32 %v3546, %v3654
        %3656 = vmatmul.bf16.gmra.mxu0 %v2344
        %v3657 = vpop.f32.mrf.mxu0
        %v3658 = vadd.f32 %v3549, %v3657
        %v3659 = vpop.f32.mrf.mxu0
        %v3660 = vadd.f32 %v3551, %v3659
        %3661 = vmatmul.bf16.gmra.mxu0 %v2352
        %v3662 = vpop.f32.mrf.mxu0
        %v3663 = vadd.f32 %v3554, %v3662
        %v3664 = vpop.f32.mrf.mxu0
        %v3665 = vadd.f32 %v3556, %v3664
        %3666 = vmatmul.bf16.gmra.mxu0 %v2360
        %v3667 = vpop.f32.mrf.mxu0
        %v3668 = vadd.f32 %v3559, %v3667
        %v3669 = vpop.f32.mrf.mxu0
        %v3670 = vadd.f32 %v3561, %v3669
        %3671 = vmatmul.bf16.gmra.mxu0 %v2368
        %v3672 = vpop.f32.mrf.mxu0
        %v3673 = vadd.f32 %v3564, %v3672
        %v3674 = vpop.f32.mrf.mxu0
        %v3675 = vadd.f32 %v3566, %v3674
        %3676 = vdwg.mxu0
        %3677 = vmatpush.bf16.msra.mxu0 %v2849
        %3678 = vmatpush.bf16.msra.mxu0 %v2848
        %3679 = vmatpush.bf16.msra.mxu0 %v2847
        %3680 = vmatpush.bf16.msra.mxu0 %v2846
        %3681 = vmatpush.bf16.msra.mxu0 %v2845
        %3682 = vmatpush.bf16.msra.mxu0 %v2844
        %3683 = vmatpush.bf16.msra.mxu0 %v2843
        %3684 = vmatpush.bf16.msra.mxu0 %v2842
        %3685 = vmatmul.bf16.gmra.mxu0 %v2217
        %v3686 = vpop.f32.mrf.mxu0
        %v3687 = vadd.f32 %v3578, %v3686
        %v3688 = vpop.f32.mrf.mxu0
        %v3689 = vadd.f32 %v3580, %v3688
        %3690 = vmatmul.bf16.gmra.mxu0 %v2225
        %v3691 = vpop.f32.mrf.mxu0
        %v3692 = vadd.f32 %v3583, %v3691
        %v3693 = vpop.f32.mrf.mxu0
        %v3694 = vadd.f32 %v3585, %v3693
        %3695 = vmatmul.bf16.gmra.mxu0 %v2233
        %v3696 = vpop.f32.mrf.mxu0
        %v3697 = vadd.f32 %v3588, %v3696
        %v3698 = vpop.f32.mrf.mxu0
        %v3699 = vadd.f32 %v3590, %v3698
        %3700 = vmatmul.bf16.gmra.mxu0 %v2241
        %v3701 = vpop.f32.mrf.mxu0
        %v3702 = vadd.f32 %v3593, %v3701
        %v3703 = vpop.f32.mrf.mxu0
        %v3704 = vadd.f32 %v3595, %v3703
        %3705 = vmatmul.bf16.gmra.mxu0 %v2249
        %v3706 = vpop.f32.mrf.mxu0
        %v3707 = vadd.f32 %v3598, %v3706
        %v3708 = vpop.f32.mrf.mxu0
        %v3709 = vadd.f32 %v3600, %v3708
        %3710 = vmatmul.bf16.gmra.mxu0 %v2257
        %v3711 = vpop.f32.mrf.mxu0
        %v3712 = vadd.f32 %v3603, %v3711
        %v3713 = vpop.f32.mrf.mxu0
        %v3714 = vadd.f32 %v3605, %v3713
        %3715 = vmatmul.bf16.gmra.mxu0 %v2265
        %v3716 = vpop.f32.mrf.mxu0
        %v3717 = vadd.f32 %v3608, %v3716
        %v3718 = vpop.f32.mrf.mxu0
        %v3719 = vadd.f32 %v3610, %v3718
        %3720 = vmatmul.bf16.gmra.mxu0 %v2273
        %v3721 = vpop.f32.mrf.mxu0
        %v3722 = vadd.f32 %v3613, %v3721
        %v3723 = vpop.f32.mrf.mxu0
        %v3724 = vadd.f32 %v3615, %v3723
        %3725 = vmatmul.bf16.gmra.mxu0 %v2281
        %v3726 = vpop.f32.mrf.mxu0
        %v3727 = vadd.f32 %v3618, %v3726
        %v3728 = vpop.f32.mrf.mxu0
        %v3729 = vadd.f32 %v3620, %v3728
        %3730 = vmatmul.bf16.gmra.mxu0 %v2289
        %v3731 = vpop.f32.mrf.mxu0
        %v3732 = vadd.f32 %v3623, %v3731
        %v3733 = vpop.f32.mrf.mxu0
        %v3734 = vadd.f32 %v3625, %v3733
        %3735 = vmatmul.bf16.gmra.mxu0 %v2297
        %v3736 = vpop.f32.mrf.mxu0
        %v3737 = vadd.f32 %v3628, %v3736
        %v3738 = vpop.f32.mrf.mxu0
        %v3739 = vadd.f32 %v3630, %v3738
        %3740 = vmatmul.bf16.gmra.mxu0 %v2305
        %v3741 = vpop.f32.mrf.mxu0
        %v3742 = vadd.f32 %v3633, %v3741
        %v3743 = vpop.f32.mrf.mxu0
        %v3744 = vadd.f32 %v3635, %v3743
        %3745 = vmatmul.bf16.gmra.mxu0 %v2313
        %v3746 = vpop.f32.mrf.mxu0
        %v3747 = vadd.f32 %v3638, %v3746
        %v3748 = vpop.f32.mrf.mxu0
        %v3749 = vadd.f32 %v3640, %v3748
        %3750 = vmatmul.bf16.gmra.mxu0 %v2321
        %v3751 = vpop.f32.mrf.mxu0
        %v3752 = vadd.f32 %v3643, %v3751
        %v3753 = vpop.f32.mrf.mxu0
        %v3754 = vadd.f32 %v3645, %v3753
        %3755 = vmatmul.bf16.gmra.mxu0 %v2329
        %v3756 = vpop.f32.mrf.mxu0
        %v3757 = vadd.f32 %v3648, %v3756
        %v3758 = vpop.f32.mrf.mxu0
        %v3759 = vadd.f32 %v3650, %v3758
        %3760 = vmatmul.bf16.gmra.mxu0 %v2337
        %v3761 = vpop.f32.mrf.mxu0
        %v3762 = vadd.f32 %v3653, %v3761
        %v3763 = vpop.f32.mrf.mxu0
        %v3764 = vadd.f32 %v3655, %v3763
        %3765 = vmatmul.bf16.gmra.mxu0 %v2345
        %v3766 = vpop.f32.mrf.mxu0
        %v3767 = vadd.f32 %v3658, %v3766
        %v3768 = vpop.f32.mrf.mxu0
        %v3769 = vadd.f32 %v3660, %v3768
        %3770 = vmatmul.bf16.gmra.mxu0 %v2353
        %v3771 = vpop.f32.mrf.mxu0
        %v3772 = vadd.f32 %v3663, %v3771
        %v3773 = vpop.f32.mrf.mxu0
        %v3774 = vadd.f32 %v3665, %v3773
        %3775 = vmatmul.bf16.gmra.mxu0 %v2361
        %v3776 = vpop.f32.mrf.mxu0
        %v3777 = vadd.f32 %v3668, %v3776
        %v3778 = vpop.f32.mrf.mxu0
        %v3779 = vadd.f32 %v3670, %v3778
        %3780 = vmatmul.bf16.gmra.mxu0 %v2369
        %v3781 = vpop.f32.mrf.mxu0
        %v3782 = vadd.f32 %v3673, %v3781
        %v3783 = vpop.f32.mrf.mxu0
        %v3784 = vadd.f32 %v3675, %v3783
        %3785 = vdwg.mxu0
        %v3786 = vadd.f32 %v1398, %v3687
        %v3787 = vadd.f32 %v1399, %v3689
        %v3788 = vadd.f32 %v1400, %v3692
        %v3789 = vadd.f32 %v1401, %v3694
        %v3790 = vadd.f32 %v1402, %v3697
        %v3791 = vadd.f32 %v1403, %v3699
        %v3792 = vadd.f32 %v1404, %v3702
        %v3793 = vadd.f32 %v1405, %v3704
        %v3794 = vadd.f32 %v1406, %v3707
        %v3795 = vadd.f32 %v1407, %v3709
        %v3796 = vadd.f32 %v1408, %v3712
        %v3797 = vadd.f32 %v1409, %v3714
        %v3798 = vadd.f32 %v1410, %v3717
        %v3799 = vadd.f32 %v1411, %v3719
        %v3800 = vadd.f32 %v1412, %v3722
        %v3801 = vadd.f32 %v1413, %v3724
        %v3802 = vadd.f32 %v1414, %v3727
        %v3803 = vadd.f32 %v1415, %v3729
        %v3804 = vadd.f32 %v1416, %v3732
        %v3805 = vadd.f32 %v1417, %v3734
        %v3806 = vadd.f32 %v1418, %v3737
        %v3807 = vadd.f32 %v1419, %v3739
        %v3808 = vadd.f32 %v1420, %v3742
        %v3809 = vadd.f32 %v1421, %v3744
        %v3810 = vadd.f32 %v1422, %v3747
        %v3811 = vadd.f32 %v1423, %v3749
        %v3812 = vadd.f32 %v1424, %v3752
        %v3813 = vadd.f32 %v1425, %v3754
        %v3814 = vadd.f32 %v1426, %v3757
        %v3815 = vadd.f32 %v1427, %v3759
        %v3816 = vadd.f32 %v1428, %v3762
        %v3817 = vadd.f32 %v1429, %v3764
        %v3818 = vadd.f32 %v1430, %v3767
        %v3819 = vadd.f32 %v1431, %v3769
        %v3820 = vadd.f32 %v1432, %v3772
        %v3821 = vadd.f32 %v1433, %v3774
        %v3822 = vadd.f32 %v1434, %v3777
        %v3823 = vadd.f32 %v1435, %v3779
        %v3824 = vadd.f32 %v1436, %v3782
        %v3825 = vadd.f32 %v1437, %v3784
        %vm3826 = vcmask 203776
        %3827 = vst.msk [vmem:[%s581] sm:$0xff] %vm3826, %v3786
        %3828 = vst.msk [vmem:[%s581 + $0x8] sm:$0xff] %vm3826, %v3787
        %3829 = vst.msk [vmem:[%s581 + $0x10] sm:$0xff] %vm3826, %v3788
        %3830 = vst.msk [vmem:[%s581 + $0x18] sm:$0xff] %vm3826, %v3789
        %3831 = vst.msk [vmem:[%s581 + $0x20] sm:$0xff] %vm3826, %v3790
        %3832 = vst.msk [vmem:[%s581 + $0x28] sm:$0xff] %vm3826, %v3791
        %3833 = vst.msk [vmem:[%s581 + $0x30] sm:$0xff] %vm3826, %v3792
        %3834 = vst.msk [vmem:[%s581 + $0x38] sm:$0xff] %vm3826, %v3793
        %3835 = vst.msk [vmem:[%s581 + $0x40] sm:$0xff] %vm3826, %v3794
        %3836 = vst.msk [vmem:[%s581 + $0x48] sm:$0xff] %vm3826, %v3795
        %3837 = vst.msk [vmem:[%s581 + $0x50] sm:$0xff] %vm3826, %v3796
        %3838 = vst.msk [vmem:[%s581 + $0x58] sm:$0xff] %vm3826, %v3797
        %3839 = vst.msk [vmem:[%s581 + $0x60] sm:$0xff] %vm3826, %v3798
        %3840 = vst.msk [vmem:[%s581 + $0x68] sm:$0xff] %vm3826, %v3799
        %3841 = vst.msk [vmem:[%s581 + $0x70] sm:$0xff] %vm3826, %v3800
        %3842 = vst.msk [vmem:[%s581 + $0x78] sm:$0xff] %vm3826, %v3801
        %3843 = vst.msk [vmem:[%s581 + $0x80] sm:$0xff] %vm3826, %v3802
        %3844 = vst.msk [vmem:[%s581 + $0x88] sm:$0xff] %vm3826, %v3803
        %3845 = vst.msk [vmem:[%s581 + $0x90] sm:$0xff] %vm3826, %v3804
        %3846 = vst.msk [vmem:[%s581 + $0x98] sm:$0xff] %vm3826, %v3805
        %3847 = vst.msk [vmem:[%s581 + $0xa0] sm:$0xff] %vm3826, %v3806
        %3848 = vst.msk [vmem:[%s581 + $0xa8] sm:$0xff] %vm3826, %v3807
        %3849 = vst.msk [vmem:[%s581 + $0xb0] sm:$0xff] %vm3826, %v3808
        %3850 = vst.msk [vmem:[%s581 + $0xb8] sm:$0xff] %vm3826, %v3809
        %3851 = vst.msk [vmem:[%s581 + $0xc0] sm:$0xff] %vm3826, %v3810
        %3852 = vst.msk [vmem:[%s581 + $0xc8] sm:$0xff] %vm3826, %v3811
        %3853 = vst.msk [vmem:[%s581 + $0xd0] sm:$0xff] %vm3826, %v3812
        %3854 = vst.msk [vmem:[%s581 + $0xd8] sm:$0xff] %vm3826, %v3813
        %3855 = vst.msk [vmem:[%s581 + $0xe0] sm:$0xff] %vm3826, %v3814
        %3856 = vst.msk [vmem:[%s581 + $0xe8] sm:$0xff] %vm3826, %v3815
        %3857 = vst.msk [vmem:[%s581 + $0xf0] sm:$0xff] %vm3826, %v3816
        %3858 = vst.msk [vmem:[%s581 + $0xf8] sm:$0xff] %vm3826, %v3817
        %3859 = vst.msk [vmem:[%s581 + $0x100] sm:$0xff] %vm3826, %v3818
        %3860 = vst.msk [vmem:[%s581 + $0x108] sm:$0xff] %vm3826, %v3819
        %3861 = vst.msk [vmem:[%s581 + $0x110] sm:$0xff] %vm3826, %v3820
        %3862 = vst.msk [vmem:[%s581 + $0x118] sm:$0xff] %vm3826, %v3821
        %3863 = vst.msk [vmem:[%s581 + $0x120] sm:$0xff] %vm3826, %v3822
        %3864 = vst.msk [vmem:[%s581 + $0x128] sm:$0xff] %vm3826, %v3823
        %3865 = vst.msk [vmem:[%s581 + $0x130] sm:$0xff] %vm3826, %v3824
        %3866 = vst.msk [vmem:[%s581 + $0x138] sm:$0xff] %vm3826, %v3825
        %s3867 = smul.u32 40, %s20
        %p3868 = scmp.lt.s32.totalorder %s3867, 39
        %s3869 = scalar_select %p3868, %s3867, 39
        %s3870 = smul.addr %s3869, 8
        %s3871 = scalar_lea.vmem %s5, %s3870
        // Predicated region
        $region68: #{tpu_custom_call.1} parent=58 // pred_check
          %p3872 = pneg %p158
        $region69: #{tpu_custom_call.1} parent=58 // pred_check_branch
          %3874 = sbr.rel (%p3872) target = $region71
        $region70: #{tpu_custom_call.1} parent=58 // pred_region
          %s3875 = smul.u32 40, %s20
        $region71: #{tpu_custom_call.1} parent=58 // pred_fallthru
          _
        // Predicated region
        $region72: #{tpu_custom_call.1} parent=58 // pred_check
          %p3876 = pneg %p158
        $region73: #{tpu_custom_call.1} parent=58 // pred_check_branch
          %3878 = sbr.rel (%p3876) target = $region75
        $region74: #{tpu_custom_call.1} parent=58 // pred_region
          %s3879 = smul.u32 40, %s20
          %p3880 = scmp.lt.s32.totalorder %s3879, 39
          %s3881 = scalar_select %p3880, %s3879, 39
          %s3882 = smul.addr %s3881, 8
          %s3883 = scalar_lea.vmem %s5, %s3882
        $region75: #{tpu_custom_call.1} parent=58 // pred_fallthru
          _
      $region59: #{tpu_custom_call.1} parent=5 // pred_fallthru
        _
      %p3884 = scmp.le.s32.totalorder 2, %s11
      // Predicated region
      $region76: #{tpu_custom_call.1} parent=5 // pred_check
        %p3885 = pneg %p3884
      $region77: #{tpu_custom_call.1} parent=5 // pred_check_branch
        %3887 = sbr.rel (%p3885) target = $region79
      $region78: #{tpu_custom_call.1} parent=5 // pred_region
        %s3888 = ssub.s32 %s11, 2
      $region79: #{tpu_custom_call.1} parent=5 // pred_fallthru
        _
    $region6: #{tpu_custom_call.1} parent=1 // loop_footer
      %s15 = sadd.s32 1, %s11
    $region7: #{tpu_custom_call.1} parent=1 // loop_footer_branch
      %10 = sbr.rel target = $region3
    $region8: #{tpu_custom_call.1} parent=1 // loop_exit
      _

</llo_original>
